<compile_context>
chip_gen: v6e
topology: v6e:2x2x1
jax: 0.10.0
libtpu: 0.0.40
codegen_flags: <defaults>
</compile_context>

<pallas_src>
import functools

import jax
import jax.numpy as jnp
from jax.experimental import pallas as pl
from jax.experimental.pallas import tpu as pltpu

EXPANSION = 4


# ----------------------------------------------------------------------------
# Fused bottleneck kernel (one batch element per grid point)
# ----------------------------------------------------------------------------
def _make_bottleneck_kernel(H, W, Cin, Cmid, Cexp, stride, project):
    Ho = (H - 1) // stride + 1
    Wo = (W - 1) // stride + 1

    def kernel(x_ref, w1_ref, s1_ref, b1_ref,
               w2_ref, s2_ref, b2_ref,
               w3_ref, s3_ref, b3_ref, *rest):
        if project:
            ws_ref, ss_ref, bs_ref, o_ref, pad_ref = rest
        else:
            o_ref, pad_ref = rest

        x = x_ref[0]                                   # (H, W, Cin) bf16

        # ---- conv1 (1x1) + BN + ReLU : stays in VMEM, never hits HBM ----
        h1 = jnp.dot(x.reshape(H * W, Cin), w1_ref[...],
                     preferred_element_type=jnp.float32)
        h1 = jnp.maximum(h1 * s1_ref[...] + b1_ref[...], 0.0)

        # ---- in-kernel zero padding for the 3x3 conv (no host jnp.pad) ----
        pad_ref[...] = jnp.zeros_like(pad_ref)
        pad_ref[1:H + 1, 1:W + 1, :] = (
            h1.reshape(H, W, Cmid).astype(pad_ref.dtype))
        xp = pad_ref[...]                              # (H+2, W+2, Cmid) bf16

        # ---- conv2 (3x3, stride, pad=1) + BN + ReLU: 9 MXU taps ----
        def tap(kh, kw):
            p = xp[kh:kh + (Ho - 1) * stride + 1:stride,
                   kw:kw + (Wo - 1) * stride + 1:stride, :]
            return jnp.dot(p.reshape(Ho * Wo, Cmid), w2_ref[kh * 3 + kw],
                           preferred_element_type=jnp.float32)

        acc = tap(0, 0)                                # init from first tap
        for kh in range(3):
            for kw in range(3):
                if kh or kw:
                    acc = acc + tap(kh, kw)
        h2 = jnp.maximum(acc * s2_ref[...] + b2_ref[...], 0.0)

        # ---- conv3 (1x1) + BN (no ReLU) ----
        y = jnp.dot(h2.astype(jnp.bfloat16), w3_ref[...],
                    preferred_element_type=jnp.float32)
        y = y * s3_ref[...] + b3_ref[...]

        # ---- shortcut: fused strided decimation + 1x1 proj + BN, or identity
        if project:
            xs = x[::stride, ::stride, :].reshape(Ho * Wo, Cin)
            sc = jnp.dot(xs, ws_ref[...], preferred_element_type=jnp.float32)
            sc = sc * ss_ref[...] + bs_ref[...]
        else:
            sc = x.reshape(Ho * Wo, Cexp).astype(jnp.float32)

        # ---- residual add + final ReLU ----
        out = jnp.maximum(y + sc, 0.0)
        o_ref[...] = out.reshape(1, Ho, Wo, Cexp).astype(o_ref.dtype)

    return kernel


# ----------------------------------------------------------------------------
# pallas_call wrapper (NHWC)
# ----------------------------------------------------------------------------
def bottleneck_forward_nhwc(params, x_nhwc, *, stride=1):
    N, H, W, Cin = x_nhwc.shape
    Cmid = params["w1"].shape[1]
    Cexp = params["w3"].shape[1]
    Ho = (H - 1) // stride + 1
    Wo = (W - 1) // stride + 1
    project = (stride != 1) or (Cin != Cexp)

    s1, b1 = params["bn1"]
    s2, b2 = params["bn2"]
    s3, b3 = params["bn3"]

    operands = [
        x_nhwc.astype(jnp.bfloat16),
        params["w1"].astype(jnp.bfloat16), s1, b1,
        params["w2"].reshape(9, Cmid, Cmid).astype(jnp.bfloat16), s2, b2,
        params["w3"].astype(jnp.bfloat16), s3, b3,
    ]
    in_specs = [
        pl.BlockSpec((1, H, W, Cin), lambda n: (n, 0, 0, 0)),
        pl.BlockSpec((Cin, Cmid), lambda n: (0, 0)),
        pl.BlockSpec((1, Cmid), lambda n: (0, 0)),
        pl.BlockSpec((1, Cmid), lambda n: (0, 0)),
        pl.BlockSpec((9, Cmid, Cmid), lambda n: (0, 0, 0)),
        pl.BlockSpec((1, Cmid), lambda n: (0, 0)),
        pl.BlockSpec((1, Cmid), lambda n: (0, 0)),
        pl.BlockSpec((Cmid, Cexp), lambda n: (0, 0)),
        pl.BlockSpec((1, Cexp), lambda n: (0, 0)),
        pl.BlockSpec((1, Cexp), lambda n: (0, 0)),
    ]
    if project:
        ss, bs = params["bns"]
        operands += [params["ws"].astype(jnp.bfloat16), ss, bs]
        in_specs += [
            pl.BlockSpec((Cin, Cexp), lambda n: (0, 0)),
            pl.BlockSpec((1, Cexp), lambda n: (0, 0)),
            pl.BlockSpec((1, Cexp), lambda n: (0, 0)),
        ]

    kernel = _make_bottleneck_kernel(H, W, Cin, Cmid, Cexp, stride, project)
    return pl.pallas_call(
        kernel,
        out_shape=jax.ShapeDtypeStruct((N, Ho, Wo, Cexp), jnp.float32),
        grid=(N,),
        in_specs=in_specs,
        out_specs=pl.BlockSpec((1, Ho, Wo, Cexp), lambda n: (n, 0, 0, 0)),
        scratch_shapes=[pltpu.VMEM((H + 2, W + 2, Cmid), jnp.bfloat16)],
        compiler_params=pltpu.CompilerParams(
            dimension_semantics=("parallel",)),
    )(*operands)


def bottleneck_forward(params, x_nchw, *, stride=1):
    """NCHW in / NCHW out, matching the PyTorch module interface."""
    x = jnp.transpose(x_nchw, (0, 2, 3, 1))           # -> NHWC
    y = bottleneck_forward_nhwc(params, x, stride=stride)
    return jnp.transpose(y, (0, 3, 1, 2))             # -> NCHW


# ----------------------------------------------------------------------------
# Deterministic parameter initialization (eval-mode BN folded to scale/bias)
# ----------------------------------------------------------------------------
def _bn_fold(gamma, beta, mean, var, eps=1e-5):
    scale = gamma / jnp.sqrt(var + eps)
    bias = beta - mean * scale
    return (scale.reshape(1, -1).astype(jnp.float32),
            bias.reshape(1, -1).astype(jnp.float32))


def init_bottleneck_params(key, in_channels, out_channels):
    Cexp = out_channels * EXPANSION
    ks = jax.random.split(key, 16)

    def bn_params(k, c):
        k1, k2, k3, k4 = jax.random.split(k, 4)
        gamma = 1.0 + 0.05 * jax.random.normal(k1, (c,), jnp.float32)
        beta = 0.05 * jax.random.normal(k2, (c,), jnp.float32)
        mean = 0.05 * jax.random.normal(k3, (c,), jnp.float32)
        var = 1.0 + 0.1 * jnp.abs(jax.random.normal(k4, (c,), jnp.float32))
        return _bn_fold(gamma, beta, mean, var)

    params = {
        "w1": 0.1 * jax.random.normal(ks[0], (in_channels, out_channels), jnp.float32),
        "bn1": bn_params(ks[1], out_channels),
        "w2": 0.1 * jax.random.normal(ks[2], (3, 3, out_channels, out_channels), jnp.float32),
        "bn2": bn_params(ks[3], out_channels),
        "w3": 0.1 * jax.random.normal(ks[4], (out_channels, Cexp), jnp.float32),
        "bn3": bn_params(ks[5], Cexp),
        "ws": 0.1 * jax.random.normal(ks[6], (in_channels, Cexp), jnp.float32),
        "bns": bn_params(ks[7], Cexp),
    }
    return params


# ----------------------------------------------------------------------------
# Plain-JAX reference (numerical sanity check)
# ----------------------------------------------------------------------------
def _ref_bottleneck(params, x_nchw, *, stride=1):
    x = jnp.transpose(x_nchw, (0, 2, 3, 1))
    dn = ("NHWC", "HWIO", "NHWC")

    def conv(h, w, strides, padding):
        return jax.lax.conv_general_dilated(h, w, window_strides=strides,
                                            padding=padding, dimension_numbers=dn)

    def bn(h, sb):
        scale, bias = sb
        return h * scale.reshape(1, 1, 1, -1) + bias.reshape(1, 1, 1, -1)

    Cin = x.shape[-1]
    Cexp = params["w3"].shape[1]

    r = jax.nn.relu(bn(conv(x, params["w1"][None, None], (1, 1), "VALID"), params["bn1"]))
    r = jax.nn.relu(bn(conv(r, params["w2"], (stride, stride), [(1, 1), (1, 1)]), params["bn2"]))
    r = bn(conv(r, params["w3"][None, None], (1, 1), "VALID"), params["bn3"])

    if stride != 1 or Cin != Cexp:
        s = bn(conv(x, params["ws"][None, None], (stride, stride), "VALID"), params["bns"])
    else:
        s = x
    out = jax.nn.relu(r + s)
    return jnp.transpose(out, (0, 3, 1, 2))


# ----------------------------------------------------------------------------
if __name__ == "__main__":
    key = jax.random.PRNGKey(0)
    k_params, k_x = jax.random.split(key)

    in_channels, out_channels, stride = 8, 4, 1
    N, H, W = 2, 16, 16

    params = init_bottleneck_params(k_params, in_channels, out_channels)
    x = jax.random.normal(k_x, (N, in_channels, H, W), jnp.float32)

    fwd = jax.jit(functools.partial(bottleneck_forward, stride=stride))
    out = fwd(params, x)
    jax.block_until_ready(out)

    ref = _ref_bottleneck(params, x, stride=stride)
    assert out.shape == (N, out_channels * EXPANSION, H // stride, W // stride)
    assert jnp.allclose(out, ref, atol=5e-2, rtol=5e-2), "mismatch vs reference"

    print("KERNEL_OK")
</pallas_src>

<mosaic_0001>
module attributes {stable_mosaic.version = 11 : i64} {
  func.func @kernel(%arg0: i32, %arg1: memref<1x16x16x8xbf16, #tpu.memory_space<vmem>>, %arg2: memref<8x4xbf16, #tpu.memory_space<vmem>>, %arg3: memref<1x4xf32, #tpu.memory_space<vmem>>, %arg4: memref<1x4xf32, #tpu.memory_space<vmem>>, %arg5: memref<9x4x4xbf16, #tpu.memory_space<vmem>>, %arg6: memref<1x4xf32, #tpu.memory_space<vmem>>, %arg7: memref<1x4xf32, #tpu.memory_space<vmem>>, %arg8: memref<4x16xbf16, #tpu.memory_space<vmem>>, %arg9: memref<1x16xf32, #tpu.memory_space<vmem>>, %arg10: memref<1x16xf32, #tpu.memory_space<vmem>>, %arg11: memref<8x16xbf16, #tpu.memory_space<vmem>>, %arg12: memref<1x16xf32, #tpu.memory_space<vmem>>, %arg13: memref<1x16xf32, #tpu.memory_space<vmem>>, %arg14: memref<1x16x16x16xf32, #tpu.memory_space<vmem>>, %arg15: memref<18x18x4xbf16, #tpu.memory_space<vmem>>) attributes {dimension_semantics = [#tpu.dimension_semantics<parallel>], iteration_bounds = array<i64: 2>, scalar_prefetch = 0 : i64, scratch_operands = 1 : i64, tpu.core_type = #tpu.core_type<tc>, window_params = [{transform_indices = @transform_0, window_bounds = array<i64: 1, 16, 16, 8>}, {pipeline_mode = #tpu.pipeline_mode<synchronous>, transform_indices = @transform_1, window_bounds = array<i64: 8, 4>}, {pipeline_mode = #tpu.pipeline_mode<synchronous>, transform_indices = @transform_2, window_bounds = array<i64: 1, 4>}, {pipeline_mode = #tpu.pipeline_mode<synchronous>, transform_indices = @transform_3, window_bounds = array<i64: 1, 4>}, {pipeline_mode = #tpu.pipeline_mode<synchronous>, transform_indices = @transform_4, window_bounds = array<i64: 9, 4, 4>}, {pipeline_mode = #tpu.pipeline_mode<synchronous>, transform_indices = @transform_5, window_bounds = array<i64: 1, 4>}, {pipeline_mode = #tpu.pipeline_mode<synchronous>, transform_indices = @transform_6, window_bounds = array<i64: 1, 4>}, {pipeline_mode = #tpu.pipeline_mode<synchronous>, transform_indices = @transform_7, window_bounds = array<i64: 4, 16>}, {pipeline_mode = #tpu.pipeline_mode<synchronous>, transform_indices = @transform_8, window_bounds = array<i64: 1, 16>}, {pipeline_mode = #tpu.pipeline_mode<synchronous>, transform_indices = @transform_9, window_bounds = array<i64: 1, 16>}, {pipeline_mode = #tpu.pipeline_mode<synchronous>, transform_indices = @transform_10, window_bounds = array<i64: 8, 16>}, {pipeline_mode = #tpu.pipeline_mode<synchronous>, transform_indices = @transform_11, window_bounds = array<i64: 1, 16>}, {pipeline_mode = #tpu.pipeline_mode<synchronous>, transform_indices = @transform_12, window_bounds = array<i64: 1, 16>}, {transform_indices = @transform_13, window_bounds = array<i64: 1, 16, 16, 16>}]} {
    %c0 = arith.constant 0 : index
    %c0_0 = arith.constant 0 : index
    %c0_1 = arith.constant 0 : index
    %c0_2 = arith.constant 0 : index
    %0 = vector.load %arg1[%c0, %c0_0, %c0_1, %c0_2] : memref<1x16x16x8xbf16, #tpu.memory_space<vmem>>, vector<1x16x16x8xbf16>
    %1 = vector.shape_cast %0 : vector<1x16x16x8xbf16> to vector<16x16x8xbf16>
    %2 = vector.shape_cast %1 : vector<16x16x8xbf16> to vector<256x8xbf16>
    %c0_3 = arith.constant 0 : index
    %c0_4 = arith.constant 0 : index
    %3 = vector.load %arg2[%c0_3, %c0_4] : memref<8x4xbf16, #tpu.memory_space<vmem>>, vector<8x4xbf16>
    %cst = arith.constant dense<0.000000e+00> : vector<256x4xf32>
    %4 = tpu.matmul %2, %3, %cst {dimension_numbers = #tpu.dot_dimension_numbers<[1], [0], [0], [1], [0, 0, 1, 1], [], []>} : vector<256x8xbf16>, vector<8x4xbf16>, vector<256x4xf32> -> vector<256x4xf32>
    %c0_5 = arith.constant 0 : index
    %c0_6 = arith.constant 0 : index
    %5 = vector.load %arg3[%c0_5, %c0_6] : memref<1x4xf32, #tpu.memory_space<vmem>>, vector<1x4xf32>
    %6 = vector.broadcast %5 : vector<1x4xf32> to vector<256x4xf32>
    %7 = arith.mulf %4, %6 : vector<256x4xf32>
    %c0_7 = arith.constant 0 : index
    %c0_8 = arith.constant 0 : index
    %8 = vector.load %arg4[%c0_7, %c0_8] : memref<1x4xf32, #tpu.memory_space<vmem>>, vector<1x4xf32>
    %9 = vector.broadcast %8 : vector<1x4xf32> to vector<256x4xf32>
    %10 = arith.addf %7, %9 : vector<256x4xf32>
    %cst_9 = arith.constant 0.000000e+00 : f32
    %11 = vector.broadcast %cst_9 : f32 to vector<256x4xf32>
    %12 = arith.maximumf %10, %11 : vector<256x4xf32>
    %cst_10 = arith.constant 0.000000e+00 : bf16
    %13 = vector.broadcast %cst_10 : bf16 to vector<18x18x4xbf16>
    %c0_11 = arith.constant 0 : index
    %c0_12 = arith.constant 0 : index
    %c0_13 = arith.constant 0 : index
    %14 = vector.load %arg15[%c0_11, %c0_12, %c0_13] : memref<18x18x4xbf16, #tpu.memory_space<vmem>>, vector<18x18x4xbf16>
    tpu.vector_store %arg15[%c0_11, %c0_12, %c0_13], %13 {strides = array<i32>} : memref<18x18x4xbf16, #tpu.memory_space<vmem>>, vector<18x18x4xbf16>,
    %15 = vector.shape_cast %12 : vector<256x4xf32> to vector<16x16x4xf32>
    %16 = arith.truncf %15 : vector<16x16x4xf32> to vector<16x16x4xbf16>
    %c1 = arith.constant 1 : index
    %c1_14 = arith.constant 1 : index
    %c0_15 = arith.constant 0 : index
    %17 = vector.load %arg15[%c1, %c1_14, %c0_15] : memref<18x18x4xbf16, #tpu.memory_space<vmem>>, vector<16x16x4xbf16>
    tpu.vector_store %arg15[%c1, %c1_14, %c0_15], %16 {strides = array<i32>} : memref<18x18x4xbf16, #tpu.memory_space<vmem>>, vector<16x16x4xbf16>,
    %c0_16 = arith.constant 0 : index
    %c0_17 = arith.constant 0 : index
    %c0_18 = arith.constant 0 : index
    %18 = vector.load %arg15[%c0_16, %c0_17, %c0_18] : memref<18x18x4xbf16, #tpu.memory_space<vmem>>, vector<18x18x4xbf16>
    %19 = vector.extract_strided_slice %18 {offsets = [0, 0, 0], sizes = [16, 16, 4], strides = [1, 1, 1]} : vector<18x18x4xbf16> to vector<16x16x4xbf16>
    %20 = vector.shape_cast %19 : vector<16x16x4xbf16> to vector<256x4xbf16>
    %c0_19 = arith.constant 0 : index
    %c0_20 = arith.constant 0 : index
    %c0_21 = arith.constant 0 : index
    %21 = vector.load %arg5[%c0_19, %c0_20, %c0_21] : memref<9x4x4xbf16, #tpu.memory_space<vmem>>, vector<1x4x4xbf16>
    %22 = vector.shape_cast %21 : vector<1x4x4xbf16> to vector<4x4xbf16>
    %cst_22 = arith.constant dense<0.000000e+00> : vector<256x4xf32>
    %23 = tpu.matmul %20, %22, %cst_22 {dimension_numbers = #tpu.dot_dimension_numbers<[1], [0], [0], [1], [0, 0, 1, 1], [], []>} : vector<256x4xbf16>, vector<4x4xbf16>, vector<256x4xf32> -> vector<256x4xf32>
    %24 = vector.extract_strided_slice %18 {offsets = [0, 1, 0], sizes = [16, 16, 4], strides = [1, 1, 1]} : vector<18x18x4xbf16> to vector<16x16x4xbf16>
    %25 = vector.shape_cast %24 : vector<16x16x4xbf16> to vector<256x4xbf16>
    %c1_23 = arith.constant 1 : index
    %c0_24 = arith.constant 0 : index
    %c0_25 = arith.constant 0 : index
    %26 = vector.load %arg5[%c1_23, %c0_24, %c0_25] : memref<9x4x4xbf16, #tpu.memory_space<vmem>>, vector<1x4x4xbf16>
    %27 = vector.shape_cast %26 : vector<1x4x4xbf16> to vector<4x4xbf16>
    %cst_26 = arith.constant dense<0.000000e+00> : vector<256x4xf32>
    %28 = tpu.matmul %25, %27, %cst_26 {dimension_numbers = #tpu.dot_dimension_numbers<[1], [0], [0], [1], [0, 0, 1, 1], [], []>} : vector<256x4xbf16>, vector<4x4xbf16>, vector<256x4xf32> -> vector<256x4xf32>
    %29 = arith.addf %23, %28 : vector<256x4xf32>
    %30 = vector.extract_strided_slice %18 {offsets = [0, 2, 0], sizes = [16, 16, 4], strides = [1, 1, 1]} : vector<18x18x4xbf16> to vector<16x16x4xbf16>
    %31 = vector.shape_cast %30 : vector<16x16x4xbf16> to vector<256x4xbf16>
    %c2 = arith.constant 2 : index
    %c0_27 = arith.constant 0 : index
    %c0_28 = arith.constant 0 : index
    %32 = vector.load %arg5[%c2, %c0_27, %c0_28] : memref<9x4x4xbf16, #tpu.memory_space<vmem>>, vector<1x4x4xbf16>
    %33 = vector.shape_cast %32 : vector<1x4x4xbf16> to vector<4x4xbf16>
    %cst_29 = arith.constant dense<0.000000e+00> : vector<256x4xf32>
    %34 = tpu.matmul %31, %33, %cst_29 {dimension_numbers = #tpu.dot_dimension_numbers<[1], [0], [0], [1], [0, 0, 1, 1], [], []>} : vector<256x4xbf16>, vector<4x4xbf16>, vector<256x4xf32> -> vector<256x4xf32>
    %35 = arith.addf %29, %34 : vector<256x4xf32>
    %36 = vector.extract_strided_slice %18 {offsets = [1, 0, 0], sizes = [16, 16, 4], strides = [1, 1, 1]} : vector<18x18x4xbf16> to vector<16x16x4xbf16>
    %37 = vector.shape_cast %36 : vector<16x16x4xbf16> to vector<256x4xbf16>
    %c3 = arith.constant 3 : index
    %c0_30 = arith.constant 0 : index
    %c0_31 = arith.constant 0 : index
    %38 = vector.load %arg5[%c3, %c0_30, %c0_31] : memref<9x4x4xbf16, #tpu.memory_space<vmem>>, vector<1x4x4xbf16>
    %39 = vector.shape_cast %38 : vector<1x4x4xbf16> to vector<4x4xbf16>
    %cst_32 = arith.constant dense<0.000000e+00> : vector<256x4xf32>
    %40 = tpu.matmul %37, %39, %cst_32 {dimension_numbers = #tpu.dot_dimension_numbers<[1], [0], [0], [1], [0, 0, 1, 1], [], []>} : vector<256x4xbf16>, vector<4x4xbf16>, vector<256x4xf32> -> vector<256x4xf32>
    %41 = arith.addf %35, %40 : vector<256x4xf32>
    %42 = vector.extract_strided_slice %18 {offsets = [1, 1, 0], sizes = [16, 16, 4], strides = [1, 1, 1]} : vector<18x18x4xbf16> to vector<16x16x4xbf16>
    %43 = vector.shape_cast %42 : vector<16x16x4xbf16> to vector<256x4xbf16>
    %c4 = arith.constant 4 : index
    %c0_33 = arith.constant 0 : index
    %c0_34 = arith.constant 0 : index
    %44 = vector.load %arg5[%c4, %c0_33, %c0_34] : memref<9x4x4xbf16, #tpu.memory_space<vmem>>, vector<1x4x4xbf16>
    %45 = vector.shape_cast %44 : vector<1x4x4xbf16> to vector<4x4xbf16>
    %cst_35 = arith.constant dense<0.000000e+00> : vector<256x4xf32>
    %46 = tpu.matmul %43, %45, %cst_35 {dimension_numbers = #tpu.dot_dimension_numbers<[1], [0], [0], [1], [0, 0, 1, 1], [], []>} : vector<256x4xbf16>, vector<4x4xbf16>, vector<256x4xf32> -> vector<256x4xf32>
    %47 = arith.addf %41, %46 : vector<256x4xf32>
    %48 = vector.extract_strided_slice %18 {offsets = [1, 2, 0], sizes = [16, 16, 4], strides = [1, 1, 1]} : vector<18x18x4xbf16> to vector<16x16x4xbf16>
    %49 = vector.shape_cast %48 : vector<16x16x4xbf16> to vector<256x4xbf16>
    %c5 = arith.constant 5 : index
    %c0_36 = arith.constant 0 : index
    %c0_37 = arith.constant 0 : index
    %50 = vector.load %arg5[%c5, %c0_36, %c0_37] : memref<9x4x4xbf16, #tpu.memory_space<vmem>>, vector<1x4x4xbf16>
    %51 = vector.shape_cast %50 : vector<1x4x4xbf16> to vector<4x4xbf16>
    %cst_38 = arith.constant dense<0.000000e+00> : vector<256x4xf32>
    %52 = tpu.matmul %49, %51, %cst_38 {dimension_numbers = #tpu.dot_dimension_numbers<[1], [0], [0], [1], [0, 0, 1, 1], [], []>} : vector<256x4xbf16>, vector<4x4xbf16>, vector<256x4xf32> -> vector<256x4xf32>
    %53 = arith.addf %47, %52 : vector<256x4xf32>
    %54 = vector.extract_strided_slice %18 {offsets = [2, 0, 0], sizes = [16, 16, 4], strides = [1, 1, 1]} : vector<18x18x4xbf16> to vector<16x16x4xbf16>
    %55 = vector.shape_cast %54 : vector<16x16x4xbf16> to vector<256x4xbf16>
    %c6 = arith.constant 6 : index
    %c0_39 = arith.constant 0 : index
    %c0_40 = arith.constant 0 : index
    %56 = vector.load %arg5[%c6, %c0_39, %c0_40] : memref<9x4x4xbf16, #tpu.memory_space<vmem>>, vector<1x4x4xbf16>
    %57 = vector.shape_cast %56 : vector<1x4x4xbf16> to vector<4x4xbf16>
    %cst_41 = arith.constant dense<0.000000e+00> : vector<256x4xf32>
    %58 = tpu.matmul %55, %57, %cst_41 {dimension_numbers = #tpu.dot_dimension_numbers<[1], [0], [0], [1], [0, 0, 1, 1], [], []>} : vector<256x4xbf16>, vector<4x4xbf16>, vector<256x4xf32> -> vector<256x4xf32>
    %59 = arith.addf %53, %58 : vector<256x4xf32>
    %60 = vector.extract_strided_slice %18 {offsets = [2, 1, 0], sizes = [16, 16, 4], strides = [1, 1, 1]} : vector<18x18x4xbf16> to vector<16x16x4xbf16>
    %61 = vector.shape_cast %60 : vector<16x16x4xbf16> to vector<256x4xbf16>
    %c7 = arith.constant 7 : index
    %c0_42 = arith.constant 0 : index
    %c0_43 = arith.constant 0 : index
    %62 = vector.load %arg5[%c7, %c0_42, %c0_43] : memref<9x4x4xbf16, #tpu.memory_space<vmem>>, vector<1x4x4xbf16>
    %63 = vector.shape_cast %62 : vector<1x4x4xbf16> to vector<4x4xbf16>
    %cst_44 = arith.constant dense<0.000000e+00> : vector<256x4xf32>
    %64 = tpu.matmul %61, %63, %cst_44 {dimension_numbers = #tpu.dot_dimension_numbers<[1], [0], [0], [1], [0, 0, 1, 1], [], []>} : vector<256x4xbf16>, vector<4x4xbf16>, vector<256x4xf32> -> vector<256x4xf32>
    %65 = arith.addf %59, %64 : vector<256x4xf32>
    %66 = vector.extract_strided_slice %18 {offsets = [2, 2, 0], sizes = [16, 16, 4], strides = [1, 1, 1]} : vector<18x18x4xbf16> to vector<16x16x4xbf16>
    %67 = vector.shape_cast %66 : vector<16x16x4xbf16> to vector<256x4xbf16>
    %c8 = arith.constant 8 : index
    %c0_45 = arith.constant 0 : index
    %c0_46 = arith.constant 0 : index
    %68 = vector.load %arg5[%c8, %c0_45, %c0_46] : memref<9x4x4xbf16, #tpu.memory_space<vmem>>, vector<1x4x4xbf16>
    %69 = vector.shape_cast %68 : vector<1x4x4xbf16> to vector<4x4xbf16>
    %cst_47 = arith.constant dense<0.000000e+00> : vector<256x4xf32>
    %70 = tpu.matmul %67, %69, %cst_47 {dimension_numbers = #tpu.dot_dimension_numbers<[1], [0], [0], [1], [0, 0, 1, 1], [], []>} : vector<256x4xbf16>, vector<4x4xbf16>, vector<256x4xf32> -> vector<256x4xf32>
    %71 = arith.addf %65, %70 : vector<256x4xf32>
    %c0_48 = arith.constant 0 : index
    %c0_49 = arith.constant 0 : index
    %72 = vector.load %arg6[%c0_48, %c0_49] : memref<1x4xf32, #tpu.memory_space<vmem>>, vector<1x4xf32>
    %73 = vector.broadcast %72 : vector<1x4xf32> to vector<256x4xf32>
    %74 = arith.mulf %71, %73 : vector<256x4xf32>
    %c0_50 = arith.constant 0 : index
    %c0_51 = arith.constant 0 : index
    %75 = vector.load %arg7[%c0_50, %c0_51] : memref<1x4xf32, #tpu.memory_space<vmem>>, vector<1x4xf32>
    %76 = vector.broadcast %75 : vector<1x4xf32> to vector<256x4xf32>
    %77 = arith.addf %74, %76 : vector<256x4xf32>
    %cst_52 = arith.constant 0.000000e+00 : f32
    %78 = vector.broadcast %cst_52 : f32 to vector<256x4xf32>
    %79 = arith.maximumf %77, %78 : vector<256x4xf32>
    %80 = arith.truncf %79 : vector<256x4xf32> to vector<256x4xbf16>
    %c0_53 = arith.constant 0 : index
    %c0_54 = arith.constant 0 : index
    %81 = vector.load %arg8[%c0_53, %c0_54] : memref<4x16xbf16, #tpu.memory_space<vmem>>, vector<4x16xbf16>
    %cst_55 = arith.constant dense<0.000000e+00> : vector<256x16xf32>
    %82 = tpu.matmul %80, %81, %cst_55 {dimension_numbers = #tpu.dot_dimension_numbers<[1], [0], [0], [1], [0, 0, 1, 1], [], []>} : vector<256x4xbf16>, vector<4x16xbf16>, vector<256x16xf32> -> vector<256x16xf32>
    %c0_56 = arith.constant 0 : index
    %c0_57 = arith.constant 0 : index
    %83 = vector.load %arg9[%c0_56, %c0_57] : memref<1x16xf32, #tpu.memory_space<vmem>>, vector<1x16xf32>
    %84 = vector.broadcast %83 : vector<1x16xf32> to vector<256x16xf32>
    %85 = arith.mulf %82, %84 : vector<256x16xf32>
    %c0_58 = arith.constant 0 : index
    %c0_59 = arith.constant 0 : index
    %86 = vector.load %arg10[%c0_58, %c0_59] : memref<1x16xf32, #tpu.memory_space<vmem>>, vector<1x16xf32>
    %87 = vector.broadcast %86 : vector<1x16xf32> to vector<256x16xf32>
    %88 = arith.addf %85, %87 : vector<256x16xf32>
    %89 = vector.shape_cast %1 : vector<16x16x8xbf16> to vector<256x8xbf16>
    %c0_60 = arith.constant 0 : index
    %c0_61 = arith.constant 0 : index
    %90 = vector.load %arg11[%c0_60, %c0_61] : memref<8x16xbf16, #tpu.memory_space<vmem>>, vector<8x16xbf16>
    %cst_62 = arith.constant dense<0.000000e+00> : vector<256x16xf32>
    %91 = tpu.matmul %89, %90, %cst_62 {dimension_numbers = #tpu.dot_dimension_numbers<[1], [0], [0], [1], [0, 0, 1, 1], [], []>} : vector<256x8xbf16>, vector<8x16xbf16>, vector<256x16xf32> -> vector<256x16xf32>
    %c0_63 = arith.constant 0 : index
    %c0_64 = arith.constant 0 : index
    %92 = vector.load %arg12[%c0_63, %c0_64] : memref<1x16xf32, #tpu.memory_space<vmem>>, vector<1x16xf32>
    %93 = vector.broadcast %92 : vector<1x16xf32> to vector<256x16xf32>
    %94 = arith.mulf %91, %93 : vector<256x16xf32>
    %c0_65 = arith.constant 0 : index
    %c0_66 = arith.constant 0 : index
    %95 = vector.load %arg13[%c0_65, %c0_66] : memref<1x16xf32, #tpu.memory_space<vmem>>, vector<1x16xf32>
    %96 = vector.broadcast %95 : vector<1x16xf32> to vector<256x16xf32>
    %97 = arith.addf %94, %96 : vector<256x16xf32>
    %98 = arith.addf %88, %97 : vector<256x16xf32>
    %cst_67 = arith.constant 0.000000e+00 : f32
    %99 = vector.broadcast %cst_67 : f32 to vector<256x16xf32>
    %100 = arith.maximumf %98, %99 : vector<256x16xf32>
    %101 = vector.shape_cast %100 : vector<256x16xf32> to vector<1x16x16x16xf32>
    %c0_68 = arith.constant 0 : index
    %c0_69 = arith.constant 0 : index
    %c0_70 = arith.constant 0 : index
    %c0_71 = arith.constant 0 : index
    %102 = vector.load %arg14[%c0_68, %c0_69, %c0_70, %c0_71] : memref<1x16x16x16xf32, #tpu.memory_space<vmem>>, vector<1x16x16x16xf32>
    tpu.vector_store %arg14[%c0_68, %c0_69, %c0_70, %c0_71], %101 {strides = array<i32>} : memref<1x16x16x16xf32, #tpu.memory_space<vmem>>, vector<1x16x16x16xf32>,
    return
  }
  func.func @transform_0(%arg0: i32) -> (i32, i32, i32, i32) {
    %c0_i32 = arith.constant 0 : i32
    %c0_i32_0 = arith.constant 0 : i32
    %c0_i32_1 = arith.constant 0 : i32
    %c0_i32_2 = arith.constant 0 : i32
    return %arg0, %c0_i32, %c0_i32_0, %c0_i32_1 : i32, i32, i32, i32
  }
  func.func @transform_1(%arg0: i32) -> (i32, i32) {
    %c0_i32 = arith.constant 0 : i32
    %c0_i32_0 = arith.constant 0 : i32
    %c0_i32_1 = arith.constant 0 : i32
    return %c0_i32, %c0_i32_0 : i32, i32
  }
  func.func @transform_2(%arg0: i32) -> (i32, i32) {
    %c0_i32 = arith.constant 0 : i32
    %c0_i32_0 = arith.constant 0 : i32
    %c0_i32_1 = arith.constant 0 : i32
    return %c0_i32, %c0_i32_0 : i32, i32
  }
  func.func @transform_3(%arg0: i32) -> (i32, i32) {
    %c0_i32 = arith.constant 0 : i32
    %c0_i32_0 = arith.constant 0 : i32
    %c0_i32_1 = arith.constant 0 : i32
    return %c0_i32, %c0_i32_0 : i32, i32
  }
  func.func @transform_4(%arg0: i32) -> (i32, i32, i32) {
    %c0_i32 = arith.constant 0 : i32
    %c0_i32_0 = arith.constant 0 : i32
    %c0_i32_1 = arith.constant 0 : i32
    %c0_i32_2 = arith.constant 0 : i32
    return %c0_i32, %c0_i32_0, %c0_i32_1 : i32, i32, i32
  }
  func.func @transform_5(%arg0: i32) -> (i32, i32) {
    %c0_i32 = arith.constant 0 : i32
    %c0_i32_0 = arith.constant 0 : i32
    %c0_i32_1 = arith.constant 0 : i32
    return %c0_i32, %c0_i32_0 : i32, i32
  }
  func.func @transform_6(%arg0: i32) -> (i32, i32) {
    %c0_i32 = arith.constant 0 : i32
    %c0_i32_0 = arith.constant 0 : i32
    %c0_i32_1 = arith.constant 0 : i32
    return %c0_i32, %c0_i32_0 : i32, i32
  }
  func.func @transform_7(%arg0: i32) -> (i32, i32) {
    %c0_i32 = arith.constant 0 : i32
    %c0_i32_0 = arith.constant 0 : i32
    %c0_i32_1 = arith.constant 0 : i32
    return %c0_i32, %c0_i32_0 : i32, i32
  }
  func.func @transform_8(%arg0: i32) -> (i32, i32) {
    %c0_i32 = arith.constant 0 : i32
    %c0_i32_0 = arith.constant 0 : i32
    %c0_i32_1 = arith.constant 0 : i32
    return %c0_i32, %c0_i32_0 : i32, i32
  }
  func.func @transform_9(%arg0: i32) -> (i32, i32) {
    %c0_i32 = arith.constant 0 : i32
    %c0_i32_0 = arith.constant 0 : i32
    %c0_i32_1 = arith.constant 0 : i32
    return %c0_i32, %c0_i32_0 : i32, i32
  }
  func.func @transform_10(%arg0: i32) -> (i32, i32) {
    %c0_i32 = arith.constant 0 : i32
    %c0_i32_0 = arith.constant 0 : i32
    %c0_i32_1 = arith.constant 0 : i32
    return %c0_i32, %c0_i32_0 : i32, i32
  }
  func.func @transform_11(%arg0: i32) -> (i32, i32) {
    %c0_i32 = arith.constant 0 : i32
    %c0_i32_0 = arith.constant 0 : i32
    %c0_i32_1 = arith.constant 0 : i32
    return %c0_i32, %c0_i32_0 : i32, i32
  }
  func.func @transform_12(%arg0: i32) -> (i32, i32) {
    %c0_i32 = arith.constant 0 : i32
    %c0_i32_0 = arith.constant 0 : i32
    %c0_i32_1 = arith.constant 0 : i32
    return %c0_i32, %c0_i32_0 : i32, i32
  }
  func.func @transform_13(%arg0: i32) -> (i32, i32, i32, i32) {
    %c0_i32 = arith.constant 0 : i32
    %c0_i32_0 = arith.constant 0 : i32
    %c0_i32_1 = arith.constant 0 : i32
    %c0_i32_2 = arith.constant 0 : i32
    return %arg0, %c0_i32, %c0_i32_0, %c0_i32_1 : i32, i32, i32, i32
  }
}

</mosaic_0001>

<llo_original>
// kernel: bottleneck_forward.1
$region0: #{bottleneck_forward.1}
  #allocation0 [shape = 'u32[]', space=smem, size = 0x4, offset = 0x4, fixed_abs, tag = 'smem constant byte address 0x4 - core index']
  #allocation1 [shape = 'u32[144,128]{1,0:T(1,128)}', space=vmem, size = 0x12000, scoped, tag = 'internal scratch']
  #allocation2 [shape = 'bf16[18,18,4]{2,1,0:T(8,128)(2,1)}', space=vmem, size = 0x1b000, scoped, tag = 'scratch operand']
  %s0 = inlined_call_operand.vmem [shape: bf16[2,16,16,8], index: 0, kind: input, shape index: {}]
  %s1 = inlined_call_operand.vmem [shape: bf16[8,4], index: 1, kind: input, shape index: {}]
  %s2 = inlined_call_operand.vmem [shape: f32[1,4], index: 2, kind: input, shape index: {}]
  %s3 = inlined_call_operand.vmem [shape: f32[1,4], index: 3, kind: input, shape index: {}]
  %s4 = inlined_call_operand.vmem [shape: bf16[9,4,4], index: 4, kind: input, shape index: {}]
  %s5 = inlined_call_operand.vmem [shape: f32[1,4], index: 5, kind: input, shape index: {}]
  %s6 = inlined_call_operand.vmem [shape: f32[1,4], index: 6, kind: input, shape index: {}]
  %s7 = inlined_call_operand.vmem [shape: bf16[4,16], index: 7, kind: input, shape index: {}]
  %s8 = inlined_call_operand.vmem [shape: f32[1,16], index: 8, kind: input, shape index: {}]
  %s9 = inlined_call_operand.vmem [shape: f32[1,16], index: 9, kind: input, shape index: {}]
  %s10 = inlined_call_operand.vmem [shape: bf16[8,16], index: 10, kind: input, shape index: {}]
  %s11 = inlined_call_operand.vmem [shape: f32[1,16], index: 11, kind: input, shape index: {}]
  %s12 = inlined_call_operand.vmem [shape: f32[1,16], index: 12, kind: input, shape index: {}]
  %s13 = inlined_call_operand.vmem [shape: f32[2,16,16,16], index: 13, kind: output, shape index: {}]
  %s14 = sld [smem:[#allocation0]]
  $region85: #{bottleneck_forward.1} parent=0
    _
  %s16 = ssub.s32 1, %s14
  %s17 = scalar_select 0, %s16, %s14
  loop: start=0, step=1, limit=4
  $region2: #{bottleneck_forward.1} parent=0 // loop_pre_header
    _
  $region3: #{bottleneck_forward.1} parent=0 // loop_header
    %s19 = sphi 0, %s23
    %p20 = scmp.ge.s32.totalorder %s19, 4
    %s29 = sphi 0, %s31
    %s32 = sphi 0, %s29
    %s33 = sphi 0, %s32
    %s49 = sphi 0, %s33
    %s53 = sphi 0, %s53
    %s55 = sphi 0, %s53
    %s56 = sphi 0, %s55
    %s70 = sphi 0, %s56
    %s74 = sphi 0, %s74
    %s76 = sphi 0, %s74
    %s77 = sphi 0, %s76
    %s91 = sphi 0, %s77
    %s95 = sphi 0, %s95
    %s97 = sphi 0, %s95
    %s98 = sphi 0, %s97
    %s112 = sphi 0, %s98
    %s116 = sphi 0, %s116
    %s118 = sphi 0, %s116
    %s119 = sphi 0, %s118
    %s133 = sphi 0, %s119
    %s137 = sphi 0, %s137
    %s139 = sphi 0, %s137
    %s140 = sphi 0, %s139
    %s154 = sphi 0, %s140
    %s158 = sphi 0, %s158
    %s160 = sphi 0, %s158
    %s161 = sphi 0, %s160
    %s175 = sphi 0, %s161
    %s179 = sphi 0, %s179
    %s181 = sphi 0, %s179
    %s182 = sphi 0, %s181
    %s196 = sphi 0, %s182
    %s200 = sphi 0, %s200
    %s202 = sphi 0, %s200
    %s203 = sphi 0, %s202
    %s217 = sphi 0, %s203
    %s221 = sphi 0, %s221
    %s223 = sphi 0, %s221
    %s224 = sphi 0, %s223
    %s238 = sphi 0, %s224
    %s242 = sphi 0, %s242
    %s244 = sphi 0, %s242
    %s245 = sphi 0, %s244
    %s259 = sphi 0, %s245
    %s263 = sphi 0, %s263
    %s265 = sphi 0, %s263
    %s266 = sphi 0, %s265
    %s280 = sphi 0, %s266
    %s284 = sphi 0, %s284
    %s286 = sphi 0, %s284
    %s287 = sphi 0, %s286
    %s301 = sphi 0, %s287
    %s307 = sphi 0, %s309
    %s310 = sphi 0, %s307
    %s311 = sphi 0, %s310
    %s327 = sphi 0, %s311
  $region4: #{bottleneck_forward.1} parent=0 // loop_header_branch
    %22 = sbr.rel (%p20) target = $region8
  $region5: #{bottleneck_forward.1} parent=0 // loop_body
    %s24 = ssub.s32 %s19, 1
    %s25 = ssub.s32 %s19, 2
    %s26 = sadd.s32 %s19, 1
    %s27 = ssub.s32 %s19, %s26
    %p28 = scmp.eq.s32.totalorder %s27, 0
    %s30 = sadd.s32 %s29, 1
    %s31 = scalar_select %p28, %s29, %s30
    %p34 = pneg %p28
    %p35 = scmp.eq.s32.totalorder %s19, 1
    %p36 = por %p34, %p35
    %p37 = scmp.ne.s32.totalorder %s29, %s32
    %p38 = scmp.eq.s32.totalorder %s19, 0
    %p39 = por %p37, %p38
    %p40 = scmp.ne.s32.totalorder %s29, %s32
    %p41 = scmp.eq.s32.totalorder %s24, 1
    %p42 = por %p40, %p41
    %p43 = scmp.ne.s32.totalorder %s32, %s33
    %p44 = scmp.eq.s32.totalorder %s24, 0
    %p45 = por %p43, %p44
    %p46 = scmp.ne.s32.totalorder %s32, %s33
    %p47 = scmp.eq.s32.totalorder %s25, 1
    %p48 = por %p46, %p47
    %p50 = scmp.ne.s32.totalorder %s33, %s49
    %p51 = scmp.eq.s32.totalorder %s25, 0
    %p52 = por %p50, %p51
    %s54 = sadd.s32 %s53, 1
    %p57 = scmp.eq.s32.totalorder %s19, 1
    %p58 = scmp.ne.s32.totalorder %s53, %s55
    %p59 = scmp.eq.s32.totalorder %s19, 0
    %p60 = por %p58, %p59
    %p61 = scmp.ne.s32.totalorder %s53, %s55
    %p62 = scmp.eq.s32.totalorder %s24, 1
    %p63 = por %p61, %p62
    %p64 = scmp.ne.s32.totalorder %s55, %s56
    %p65 = scmp.eq.s32.totalorder %s24, 0
    %p66 = por %p64, %p65
    %p67 = scmp.ne.s32.totalorder %s55, %s56
    %p68 = scmp.eq.s32.totalorder %s25, 1
    %p69 = por %p67, %p68
    %p71 = scmp.ne.s32.totalorder %s56, %s70
    %p72 = scmp.eq.s32.totalorder %s25, 0
    %p73 = por %p71, %p72
    %s75 = sadd.s32 %s74, 1
    %p78 = scmp.eq.s32.totalorder %s19, 1
    %p79 = scmp.ne.s32.totalorder %s74, %s76
    %p80 = scmp.eq.s32.totalorder %s19, 0
    %p81 = por %p79, %p80
    %p82 = scmp.ne.s32.totalorder %s74, %s76
    %p83 = scmp.eq.s32.totalorder %s24, 1
    %p84 = por %p82, %p83
    %p85 = scmp.ne.s32.totalorder %s76, %s77
    %p86 = scmp.eq.s32.totalorder %s24, 0
    %p87 = por %p85, %p86
    %p88 = scmp.ne.s32.totalorder %s76, %s77
    %p89 = scmp.eq.s32.totalorder %s25, 1
    %p90 = por %p88, %p89
    %p92 = scmp.ne.s32.totalorder %s77, %s91
    %p93 = scmp.eq.s32.totalorder %s25, 0
    %p94 = por %p92, %p93
    %s96 = sadd.s32 %s95, 1
    %p99 = scmp.eq.s32.totalorder %s19, 1
    %p100 = scmp.ne.s32.totalorder %s95, %s97
    %p101 = scmp.eq.s32.totalorder %s19, 0
    %p102 = por %p100, %p101
    %p103 = scmp.ne.s32.totalorder %s95, %s97
    %p104 = scmp.eq.s32.totalorder %s24, 1
    %p105 = por %p103, %p104
    %p106 = scmp.ne.s32.totalorder %s97, %s98
    %p107 = scmp.eq.s32.totalorder %s24, 0
    %p108 = por %p106, %p107
    %p109 = scmp.ne.s32.totalorder %s97, %s98
    %p110 = scmp.eq.s32.totalorder %s25, 1
    %p111 = por %p109, %p110
    %p113 = scmp.ne.s32.totalorder %s98, %s112
    %p114 = scmp.eq.s32.totalorder %s25, 0
    %p115 = por %p113, %p114
    %s117 = sadd.s32 %s116, 1
    %p120 = scmp.eq.s32.totalorder %s19, 1
    %p121 = scmp.ne.s32.totalorder %s116, %s118
    %p122 = scmp.eq.s32.totalorder %s19, 0
    %p123 = por %p121, %p122
    %p124 = scmp.ne.s32.totalorder %s116, %s118
    %p125 = scmp.eq.s32.totalorder %s24, 1
    %p126 = por %p124, %p125
    %p127 = scmp.ne.s32.totalorder %s118, %s119
    %p128 = scmp.eq.s32.totalorder %s24, 0
    %p129 = por %p127, %p128
    %p130 = scmp.ne.s32.totalorder %s118, %s119
    %p131 = scmp.eq.s32.totalorder %s25, 1
    %p132 = por %p130, %p131
    %p134 = scmp.ne.s32.totalorder %s119, %s133
    %p135 = scmp.eq.s32.totalorder %s25, 0
    %p136 = por %p134, %p135
    %s138 = sadd.s32 %s137, 1
    %p141 = scmp.eq.s32.totalorder %s19, 1
    %p142 = scmp.ne.s32.totalorder %s137, %s139
    %p143 = scmp.eq.s32.totalorder %s19, 0
    %p144 = por %p142, %p143
    %p145 = scmp.ne.s32.totalorder %s137, %s139
    %p146 = scmp.eq.s32.totalorder %s24, 1
    %p147 = por %p145, %p146
    %p148 = scmp.ne.s32.totalorder %s139, %s140
    %p149 = scmp.eq.s32.totalorder %s24, 0
    %p150 = por %p148, %p149
    %p151 = scmp.ne.s32.totalorder %s139, %s140
    %p152 = scmp.eq.s32.totalorder %s25, 1
    %p153 = por %p151, %p152
    %p155 = scmp.ne.s32.totalorder %s140, %s154
    %p156 = scmp.eq.s32.totalorder %s25, 0
    %p157 = por %p155, %p156
    %s159 = sadd.s32 %s158, 1
    %p162 = scmp.eq.s32.totalorder %s19, 1
    %p163 = scmp.ne.s32.totalorder %s158, %s160
    %p164 = scmp.eq.s32.totalorder %s19, 0
    %p165 = por %p163, %p164
    %p166 = scmp.ne.s32.totalorder %s158, %s160
    %p167 = scmp.eq.s32.totalorder %s24, 1
    %p168 = por %p166, %p167
    %p169 = scmp.ne.s32.totalorder %s160, %s161
    %p170 = scmp.eq.s32.totalorder %s24, 0
    %p171 = por %p169, %p170
    %p172 = scmp.ne.s32.totalorder %s160, %s161
    %p173 = scmp.eq.s32.totalorder %s25, 1
    %p174 = por %p172, %p173
    %p176 = scmp.ne.s32.totalorder %s161, %s175
    %p177 = scmp.eq.s32.totalorder %s25, 0
    %p178 = por %p176, %p177
    %s180 = sadd.s32 %s179, 1
    %p183 = scmp.eq.s32.totalorder %s19, 1
    %p184 = scmp.ne.s32.totalorder %s179, %s181
    %p185 = scmp.eq.s32.totalorder %s19, 0
    %p186 = por %p184, %p185
    %p187 = scmp.ne.s32.totalorder %s179, %s181
    %p188 = scmp.eq.s32.totalorder %s24, 1
    %p189 = por %p187, %p188
    %p190 = scmp.ne.s32.totalorder %s181, %s182
    %p191 = scmp.eq.s32.totalorder %s24, 0
    %p192 = por %p190, %p191
    %p193 = scmp.ne.s32.totalorder %s181, %s182
    %p194 = scmp.eq.s32.totalorder %s25, 1
    %p195 = por %p193, %p194
    %p197 = scmp.ne.s32.totalorder %s182, %s196
    %p198 = scmp.eq.s32.totalorder %s25, 0
    %p199 = por %p197, %p198
    %s201 = sadd.s32 %s200, 1
    %p204 = scmp.eq.s32.totalorder %s19, 1
    %p205 = scmp.ne.s32.totalorder %s200, %s202
    %p206 = scmp.eq.s32.totalorder %s19, 0
    %p207 = por %p205, %p206
    %p208 = scmp.ne.s32.totalorder %s200, %s202
    %p209 = scmp.eq.s32.totalorder %s24, 1
    %p210 = por %p208, %p209
    %p211 = scmp.ne.s32.totalorder %s202, %s203
    %p212 = scmp.eq.s32.totalorder %s24, 0
    %p213 = por %p211, %p212
    %p214 = scmp.ne.s32.totalorder %s202, %s203
    %p215 = scmp.eq.s32.totalorder %s25, 1
    %p216 = por %p214, %p215
    %p218 = scmp.ne.s32.totalorder %s203, %s217
    %p219 = scmp.eq.s32.totalorder %s25, 0
    %p220 = por %p218, %p219
    %s222 = sadd.s32 %s221, 1
    %p225 = scmp.eq.s32.totalorder %s19, 1
    %p226 = scmp.ne.s32.totalorder %s221, %s223
    %p227 = scmp.eq.s32.totalorder %s19, 0
    %p228 = por %p226, %p227
    %p229 = scmp.ne.s32.totalorder %s221, %s223
    %p230 = scmp.eq.s32.totalorder %s24, 1
    %p231 = por %p229, %p230
    %p232 = scmp.ne.s32.totalorder %s223, %s224
    %p233 = scmp.eq.s32.totalorder %s24, 0
    %p234 = por %p232, %p233
    %p235 = scmp.ne.s32.totalorder %s223, %s224
    %p236 = scmp.eq.s32.totalorder %s25, 1
    %p237 = por %p235, %p236
    %p239 = scmp.ne.s32.totalorder %s224, %s238
    %p240 = scmp.eq.s32.totalorder %s25, 0
    %p241 = por %p239, %p240
    %s243 = sadd.s32 %s242, 1
    %p246 = scmp.eq.s32.totalorder %s19, 1
    %p247 = scmp.ne.s32.totalorder %s242, %s244
    %p248 = scmp.eq.s32.totalorder %s19, 0
    %p249 = por %p247, %p248
    %p250 = scmp.ne.s32.totalorder %s242, %s244
    %p251 = scmp.eq.s32.totalorder %s24, 1
    %p252 = por %p250, %p251
    %p253 = scmp.ne.s32.totalorder %s244, %s245
    %p254 = scmp.eq.s32.totalorder %s24, 0
    %p255 = por %p253, %p254
    %p256 = scmp.ne.s32.totalorder %s244, %s245
    %p257 = scmp.eq.s32.totalorder %s25, 1
    %p258 = por %p256, %p257
    %p260 = scmp.ne.s32.totalorder %s245, %s259
    %p261 = scmp.eq.s32.totalorder %s25, 0
    %p262 = por %p260, %p261
    %s264 = sadd.s32 %s263, 1
    %p267 = scmp.eq.s32.totalorder %s19, 1
    %p268 = scmp.ne.s32.totalorder %s263, %s265
    %p269 = scmp.eq.s32.totalorder %s19, 0
    %p270 = por %p268, %p269
    %p271 = scmp.ne.s32.totalorder %s263, %s265
    %p272 = scmp.eq.s32.totalorder %s24, 1
    %p273 = por %p271, %p272
    %p274 = scmp.ne.s32.totalorder %s265, %s266
    %p275 = scmp.eq.s32.totalorder %s24, 0
    %p276 = por %p274, %p275
    %p277 = scmp.ne.s32.totalorder %s265, %s266
    %p278 = scmp.eq.s32.totalorder %s25, 1
    %p279 = por %p277, %p278
    %p281 = scmp.ne.s32.totalorder %s266, %s280
    %p282 = scmp.eq.s32.totalorder %s25, 0
    %p283 = por %p281, %p282
    %s285 = sadd.s32 %s284, 1
    %p288 = scmp.eq.s32.totalorder %s19, 1
    %p289 = scmp.ne.s32.totalorder %s284, %s286
    %p290 = scmp.eq.s32.totalorder %s19, 0
    %p291 = por %p289, %p290
    %p292 = scmp.ne.s32.totalorder %s284, %s286
    %p293 = scmp.eq.s32.totalorder %s24, 1
    %p294 = por %p292, %p293
    %p295 = scmp.ne.s32.totalorder %s286, %s287
    %p296 = scmp.eq.s32.totalorder %s24, 0
    %p297 = por %p295, %p296
    %p298 = scmp.ne.s32.totalorder %s286, %s287
    %p299 = scmp.eq.s32.totalorder %s25, 1
    %p300 = por %p298, %p299
    %p302 = scmp.ne.s32.totalorder %s287, %s301
    %p303 = scmp.eq.s32.totalorder %s25, 0
    %p304 = por %p302, %p303
    %s305 = ssub.s32 %s19, %s26
    %p306 = scmp.eq.s32.totalorder %s305, 0
    %s308 = sadd.s32 %s307, 1
    %s309 = scalar_select %p306, %s307, %s308
    %p312 = pneg %p306
    %p313 = scmp.eq.s32.totalorder %s19, 1
    %p314 = por %p312, %p313
    %p315 = scmp.ne.s32.totalorder %s307, %s310
    %p316 = scmp.eq.s32.totalorder %s19, 0
    %p317 = por %p315, %p316
    %p318 = scmp.ne.s32.totalorder %s307, %s310
    %p319 = scmp.eq.s32.totalorder %s24, 1
    %p320 = por %p318, %p319
    %p321 = scmp.ne.s32.totalorder %s310, %s311
    %p322 = scmp.eq.s32.totalorder %s24, 0
    %p323 = por %p321, %p322
    %p324 = scmp.ne.s32.totalorder %s310, %s311
    %p325 = scmp.eq.s32.totalorder %s25, 1
    %p326 = por %p324, %p325
    %p328 = scmp.ne.s32.totalorder %s311, %s327
    %p329 = scmp.eq.s32.totalorder %s25, 0
    %p330 = por %p328, %p329
    %p331 = scmp.le.s32.totalorder 1, %s19
    %p332 = scmp.lt.s32.totalorder %s19, 3
    %p333 = pnand %p331, %p332
    %p334 = pneg %p333
    // Predicated region
    $region9: #{bottleneck_forward.1} parent=5 // pred_check
      _
    $region10: #{bottleneck_forward.1} parent=5 // pred_check_branch
      %336 = sbr.rel (%p333) target = $region12
    $region11: #{bottleneck_forward.1} parent=5 // pred_region
      %s337 = ssub.s32 %s19, 1
      // Predicated region
      $region13: #{bottleneck_forward.1} parent=11 // pred_check
        %p338 = pneg %p66
      $region14: #{bottleneck_forward.1} parent=11 // pred_check_branch
        %340 = sbr.rel (%p338) target = $region16
      $region15: #{bottleneck_forward.1} parent=11 // pred_region
        _
      $region16: #{bottleneck_forward.1} parent=11 // pred_fallthru
        _
      // Predicated region
      $region17: #{bottleneck_forward.1} parent=11 // pred_check
        %p341 = pneg %p87
      $region18: #{bottleneck_forward.1} parent=11 // pred_check_branch
        %343 = sbr.rel (%p341) target = $region20
      $region19: #{bottleneck_forward.1} parent=11 // pred_region
        _
      $region20: #{bottleneck_forward.1} parent=11 // pred_fallthru
        _
      // Predicated region
      $region21: #{bottleneck_forward.1} parent=11 // pred_check
        %p344 = pneg %p108
      $region22: #{bottleneck_forward.1} parent=11 // pred_check_branch
        %346 = sbr.rel (%p344) target = $region24
      $region23: #{bottleneck_forward.1} parent=11 // pred_region
        _
      $region24: #{bottleneck_forward.1} parent=11 // pred_fallthru
        _
      // Predicated region
      $region25: #{bottleneck_forward.1} parent=11 // pred_check
        %p347 = pneg %p129
      $region26: #{bottleneck_forward.1} parent=11 // pred_check_branch
        %349 = sbr.rel (%p347) target = $region28
      $region27: #{bottleneck_forward.1} parent=11 // pred_region
        _
      $region28: #{bottleneck_forward.1} parent=11 // pred_fallthru
        _
      // Predicated region
      $region29: #{bottleneck_forward.1} parent=11 // pred_check
        %p350 = pneg %p150
      $region30: #{bottleneck_forward.1} parent=11 // pred_check_branch
        %352 = sbr.rel (%p350) target = $region32
      $region31: #{bottleneck_forward.1} parent=11 // pred_region
        _
      $region32: #{bottleneck_forward.1} parent=11 // pred_fallthru
        _
      // Predicated region
      $region33: #{bottleneck_forward.1} parent=11 // pred_check
        %p353 = pneg %p171
      $region34: #{bottleneck_forward.1} parent=11 // pred_check_branch
        %355 = sbr.rel (%p353) target = $region36
      $region35: #{bottleneck_forward.1} parent=11 // pred_region
        _
      $region36: #{bottleneck_forward.1} parent=11 // pred_fallthru
        _
      // Predicated region
      $region37: #{bottleneck_forward.1} parent=11 // pred_check
        %p356 = pneg %p192
      $region38: #{bottleneck_forward.1} parent=11 // pred_check_branch
        %358 = sbr.rel (%p356) target = $region40
      $region39: #{bottleneck_forward.1} parent=11 // pred_region
        _
      $region40: #{bottleneck_forward.1} parent=11 // pred_fallthru
        _
      // Predicated region
      $region41: #{bottleneck_forward.1} parent=11 // pred_check
        %p359 = pneg %p213
      $region42: #{bottleneck_forward.1} parent=11 // pred_check_branch
        %361 = sbr.rel (%p359) target = $region44
      $region43: #{bottleneck_forward.1} parent=11 // pred_region
        _
      $region44: #{bottleneck_forward.1} parent=11 // pred_fallthru
        _
      // Predicated region
      $region45: #{bottleneck_forward.1} parent=11 // pred_check
        %p362 = pneg %p234
      $region46: #{bottleneck_forward.1} parent=11 // pred_check_branch
        %364 = sbr.rel (%p362) target = $region48
      $region47: #{bottleneck_forward.1} parent=11 // pred_region
        _
      $region48: #{bottleneck_forward.1} parent=11 // pred_fallthru
        _
      // Predicated region
      $region49: #{bottleneck_forward.1} parent=11 // pred_check
        %p365 = pneg %p255
      $region50: #{bottleneck_forward.1} parent=11 // pred_check_branch
        %367 = sbr.rel (%p365) target = $region52
      $region51: #{bottleneck_forward.1} parent=11 // pred_region
        _
      $region52: #{bottleneck_forward.1} parent=11 // pred_fallthru
        _
      // Predicated region
      $region53: #{bottleneck_forward.1} parent=11 // pred_check
        %p368 = pneg %p276
      $region54: #{bottleneck_forward.1} parent=11 // pred_check_branch
        %370 = sbr.rel (%p368) target = $region56
      $region55: #{bottleneck_forward.1} parent=11 // pred_region
        _
      $region56: #{bottleneck_forward.1} parent=11 // pred_fallthru
        _
      // Predicated region
      $region57: #{bottleneck_forward.1} parent=11 // pred_check
        %p371 = pneg %p297
      $region58: #{bottleneck_forward.1} parent=11 // pred_check_branch
        %373 = sbr.rel (%p371) target = $region60
      $region59: #{bottleneck_forward.1} parent=11 // pred_region
        _
      $region60: #{bottleneck_forward.1} parent=11 // pred_fallthru
        _
    $region12: #{bottleneck_forward.1} parent=5 // pred_fallthru
      _
    %p374 = scmp.lt.s32.totalorder %s19, 2
    // Predicated region
    $region61: #{bottleneck_forward.1} parent=5 // pred_check
      %p375 = pneg %p374
    $region62: #{bottleneck_forward.1} parent=5 // pred_check_branch
      %377 = sbr.rel (%p375) target = $region64
    $region63: #{bottleneck_forward.1} parent=5 // pred_region
      // Predicated region
      $region65: #{bottleneck_forward.1} parent=63 // pred_check
        %p378 = pneg %p39
      $region66: #{bottleneck_forward.1} parent=63 // pred_check_branch
        %380 = sbr.rel (%p378) target = $region68
      $region67: #{bottleneck_forward.1} parent=63 // pred_region
        %p381 = scmp.lt.s32.totalorder %s19, 1
        %s382 = scalar_select %p381, %s19, 1
        %s383 = smul.addr %s382, 32
        %s384 = smul.addr %s383, 4
        %s385 = scalar_lea.vmem %s0, %s384
      $region68: #{bottleneck_forward.1} parent=63 // pred_fallthru
        _
    $region64: #{bottleneck_forward.1} parent=5 // pred_fallthru
      _
    %p386 = scmp.le.s32.totalorder 1, %s19
    %p387 = scmp.lt.s32.totalorder %s19, 3
    %p388 = pnand %p386, %p387
    %p389 = pneg %p388
    // Predicated region
    $region69: #{bottleneck_forward.1} parent=5 // pred_check
      _
    $region70: #{bottleneck_forward.1} parent=5 // pred_check_branch
      %391 = sbr.rel (%p388) target = $region72
    $region71: #{bottleneck_forward.1} parent=5 // pred_region
      %s392 = ssub.s32 %s19, 1
      %p393 = scmp.lt.s32.totalorder %s24, 1
      %s394 = scalar_select %p393, %s24, 1
      %s395 = smul.addr %s394, 32
      %s396 = smul.addr %s395, 4
      %s397 = scalar_lea.vmem %s0, %s396
      %p398 = pneg %p45
      %p399 = pneg %p42
      %p400 = pneg %p66
      %p401 = pneg %p63
      %p402 = pneg %p87
      %p403 = pneg %p84
      %p404 = pneg %p108
      %p405 = pneg %p105
      %p406 = pneg %p129
      %p407 = pneg %p126
      %p408 = pneg %p150
      %p409 = pneg %p147
      %p410 = pneg %p171
      %p411 = pneg %p168
      %p412 = pneg %p192
      %p413 = pneg %p189
      %p414 = pneg %p213
      %p415 = pneg %p210
      %p416 = pneg %p234
      %p417 = pneg %p231
      %p418 = pneg %p255
      %p419 = pneg %p252
      %p420 = pneg %p276
      %p421 = pneg %p273
      %p422 = pneg %p297
      %p423 = pneg %p294
      %p424 = pneg %p323
      %p425 = pneg %p320
      %p426 = scmp.lt.s32.totalorder %s24, 1
      %s427 = scalar_select %p426, %s24, 1
      %s428 = smul.addr %s427, 32
      %s429 = smul.addr %s428, 8
      %s430 = scalar_lea.vmem %s13, %s429
      %p431 = scmp.lt.s32.totalorder %s24, 1
      %s432 = scalar_select %p431, %s24, 1
      %s433 = smul.addr %s432, 32
      %s434 = smul.addr %s433, 4
      %s435 = scalar_lea.vmem %s0, %s434
      %p436 = scmp.lt.s32.totalorder %s24, 1
      %s437 = scalar_select %p436, %s24, 1
      %s438 = smul.addr %s437, 32
      %s439 = smul.addr %s438, 8
      %s440 = scalar_lea.vmem %s13, %s439
      %v442 = vld [vmem:[%s435] sm:$0xf]
      %v443 = vld [vmem:[%s435 + $0x4] sm:$0xf]
      %v444 = vld [vmem:[%s435 + $0x8] sm:$0xf]
      %v445 = vld [vmem:[%s435 + $0xc] sm:$0xf]
      %v446 = vld [vmem:[%s435 + $0x10] sm:$0xf]
      %v447 = vld [vmem:[%s435 + $0x14] sm:$0xf]
      %v448 = vld [vmem:[%s435 + $0x18] sm:$0xf]
      %v449 = vld [vmem:[%s435 + $0x1c] sm:$0xf]
      %v450 = vld [vmem:[%s435 + $0x20] sm:$0xf]
      %v451 = vld [vmem:[%s435 + $0x24] sm:$0xf]
      %v452 = vld [vmem:[%s435 + $0x28] sm:$0xf]
      %v453 = vld [vmem:[%s435 + $0x2c] sm:$0xf]
      %v454 = vld [vmem:[%s435 + $0x30] sm:$0xf]
      %v455 = vld [vmem:[%s435 + $0x34] sm:$0xf]
      %v456 = vld [vmem:[%s435 + $0x38] sm:$0xf]
      %v457 = vld [vmem:[%s435 + $0x3c] sm:$0xf]
      %v458 = vld [vmem:[%s435 + $0x40] sm:$0xf]
      %v459 = vld [vmem:[%s435 + $0x44] sm:$0xf]
      %v460 = vld [vmem:[%s435 + $0x48] sm:$0xf]
      %v461 = vld [vmem:[%s435 + $0x4c] sm:$0xf]
      %v462 = vld [vmem:[%s435 + $0x50] sm:$0xf]
      %v463 = vld [vmem:[%s435 + $0x54] sm:$0xf]
      %v464 = vld [vmem:[%s435 + $0x58] sm:$0xf]
      %v465 = vld [vmem:[%s435 + $0x5c] sm:$0xf]
      %v466 = vld [vmem:[%s435 + $0x60] sm:$0xf]
      %v467 = vld [vmem:[%s435 + $0x64] sm:$0xf]
      %v468 = vld [vmem:[%s435 + $0x68] sm:$0xf]
      %v469 = vld [vmem:[%s435 + $0x6c] sm:$0xf]
      %v470 = vld [vmem:[%s435 + $0x70] sm:$0xf]
      %v471 = vld [vmem:[%s435 + $0x74] sm:$0xf]
      %v472 = vld [vmem:[%s435 + $0x78] sm:$0xf]
      %v473 = vld [vmem:[%s435 + $0x7c] sm:$0xf]
      %v474 = vld [vmem:[%s1] sm:$0xf]
      %v507 = vunpack.c.l.b16 %v442
      %v508 = vunpack.c.l.b16 %v443
      %v509 = vunpack.c.l.b16 %v444
      %v510 = vunpack.c.l.b16 %v445
      %v511 = vunpack.c.l.b16 %v446
      %v512 = vunpack.c.l.b16 %v447
      %v513 = vunpack.c.l.b16 %v448
      %v514 = vunpack.c.l.b16 %v449
      %v515 = vunpack.c.l.b16 %v450
      %v516 = vunpack.c.l.b16 %v451
      %v517 = vunpack.c.l.b16 %v452
      %v518 = vunpack.c.l.b16 %v453
      %v519 = vunpack.c.l.b16 %v454
      %v520 = vunpack.c.l.b16 %v455
      %v521 = vunpack.c.l.b16 %v456
      %v522 = vunpack.c.l.b16 %v457
      %v523 = vunpack.c.l.b16 %v458
      %v524 = vunpack.c.l.b16 %v459
      %v525 = vunpack.c.l.b16 %v460
      %v526 = vunpack.c.l.b16 %v461
      %v527 = vunpack.c.l.b16 %v462
      %v528 = vunpack.c.l.b16 %v463
      %v529 = vunpack.c.l.b16 %v464
      %v530 = vunpack.c.l.b16 %v465
      %v531 = vunpack.c.l.b16 %v466
      %v532 = vunpack.c.l.b16 %v467
      %v533 = vunpack.c.l.b16 %v468
      %v534 = vunpack.c.l.b16 %v469
      %v535 = vunpack.c.l.b16 %v470
      %v536 = vunpack.c.l.b16 %v471
      %v537 = vunpack.c.l.b16 %v472
      %v538 = vunpack.c.l.b16 %v473
      %v539 = vpack.c.b16 %v508, %v507
      %v540 = vpack.c.b16 %v510, %v509
      %v541 = vpack.c.b16 %v512, %v511
      %v542 = vpack.c.b16 %v514, %v513
      %v543 = vpack.c.b16 %v516, %v515
      %v544 = vpack.c.b16 %v518, %v517
      %v545 = vpack.c.b16 %v520, %v519
      %v546 = vpack.c.b16 %v522, %v521
      %v547 = vpack.c.b16 %v524, %v523
      %v548 = vpack.c.b16 %v526, %v525
      %v549 = vpack.c.b16 %v528, %v527
      %v550 = vpack.c.b16 %v530, %v529
      %v551 = vpack.c.b16 %v532, %v531
      %v552 = vpack.c.b16 %v534, %v533
      %v553 = vpack.c.b16 %v536, %v535
      %v554 = vpack.c.b16 %v538, %v537
      %vm555 = vcmask 64512
      %v557 = vsel %vm555, %v539, 0
      %v560 = vsel %vm555, %v540, 0
      %v563 = vsel %vm555, %v541, 0
      %v566 = vsel %vm555, %v542, 0
      %v569 = vsel %vm555, %v543, 0
      %v572 = vsel %vm555, %v544, 0
      %v575 = vsel %vm555, %v545, 0
      %v578 = vsel %vm555, %v546, 0
      %v581 = vsel %vm555, %v547, 0
      %v584 = vsel %vm555, %v548, 0
      %v587 = vsel %vm555, %v549, 0
      %v590 = vsel %vm555, %v550, 0
      %v593 = vsel %vm555, %v551, 0
      %v596 = vsel %vm555, %v552, 0
      %v599 = vsel %vm555, %v553, 0
      %v602 = vsel %vm555, %v554, 0
      %vm604 = vcmask 1043456
      %v606 = vsel %vm604, %v474, 0
      %608 = vmatprep.subr.bf16.mxu0 0
      %609 = vmatpush1.bf16.msra.mxu0 0
      %610 = vmatprep.subr.bf16.mxu0 0
      %611 = vmatpush1.bf16.msra.mxu0 0
      %612 = vmatprep.subr.bf16.mxu0 0
      %613 = vmatpush1.bf16.msra.mxu0 0
      %614 = vmatprep.subr.bf16.mxu0 0
      %615 = vmatpush1.bf16.msra.mxu0 0
      %616 = vmatprep.subr.bf16.mxu0 0
      %617 = vmatpush1.bf16.msra.mxu0 0
      %618 = vmatprep.subr.bf16.mxu0 0
      %619 = vmatpush1.bf16.msra.mxu0 0
      %620 = vmatprep.subr.bf16.mxu0 0
      %621 = vmatpush1.bf16.msra.mxu0 0
      %622 = vmatprep.subr.bf16.mxu0 0
      %623 = vmatpush1.bf16.msra.mxu0 %v606
      %624 = vmatprep.subr.bf16.mxu0 0
      %625 = vmatpush2.bf16.msra.mxu0 0
      %626 = vmatprep.subr.bf16.mxu0 0
      %627 = vmatpush2.bf16.msra.mxu0 0
      %628 = vmatprep.subr.bf16.mxu0 0
      %629 = vmatpush2.bf16.msra.mxu0 0
      %630 = vmatprep.subr.bf16.mxu0 0
      %631 = vmatpush2.bf16.msra.mxu0 0
      %632 = vmatprep.subr.bf16.mxu0 0
      %633 = vmatpush2.bf16.msra.mxu0 0
      %634 = vmatprep.subr.bf16.mxu0 0
      %635 = vmatpush2.bf16.msra.mxu0 0
      %636 = vmatprep.subr.bf16.mxu0 0
      %637 = vmatpush2.bf16.msra.mxu0 0
      %638 = vmatprep.subr.bf16.mxu0 0
      %639 = vmatpush2.bf16.msra.mxu0 0
      %640 = vmatprep.mubr.bf16.mxu0 0
      %641 = vmatmul.mubr.bf16.gmra.mxu0 %v557
      %v642 = vpop.f32.mrf.mxu0
      %v643 = vadd.f32 0.0, %v642
      %v644 = vpop.f32.mrf.mxu0
      %v645 = vpop.f32.mrf.mxu0
      %v646 = vadd.f32 0.0, %v645
      %v647 = vpop.f32.mrf.mxu0
      %648 = vmatprep.mubr.bf16.mxu0 0
      %649 = vmatmul.mubr.bf16.gmra.mxu0 %v560
      %v650 = vpop.f32.mrf.mxu0
      %v651 = vadd.f32 0.0, %v650
      %v652 = vpop.f32.mrf.mxu0
      %v653 = vpop.f32.mrf.mxu0
      %v654 = vadd.f32 0.0, %v653
      %v655 = vpop.f32.mrf.mxu0
      %656 = vmatprep.mubr.bf16.mxu0 0
      %657 = vmatmul.mubr.bf16.gmra.mxu0 %v563
      %v658 = vpop.f32.mrf.mxu0
      %v659 = vadd.f32 0.0, %v658
      %v660 = vpop.f32.mrf.mxu0
      %v661 = vpop.f32.mrf.mxu0
      %v662 = vadd.f32 0.0, %v661
      %v663 = vpop.f32.mrf.mxu0
      %664 = vmatprep.mubr.bf16.mxu0 0
      %665 = vmatmul.mubr.bf16.gmra.mxu0 %v566
      %v666 = vpop.f32.mrf.mxu0
      %v667 = vadd.f32 0.0, %v666
      %v668 = vpop.f32.mrf.mxu0
      %v669 = vpop.f32.mrf.mxu0
      %v670 = vadd.f32 0.0, %v669
      %v671 = vpop.f32.mrf.mxu0
      %672 = vmatprep.mubr.bf16.mxu0 0
      %673 = vmatmul.mubr.bf16.gmra.mxu0 %v569
      %v674 = vpop.f32.mrf.mxu0
      %v675 = vadd.f32 0.0, %v674
      %v676 = vpop.f32.mrf.mxu0
      %v677 = vpop.f32.mrf.mxu0
      %v678 = vadd.f32 0.0, %v677
      %v679 = vpop.f32.mrf.mxu0
      %680 = vmatprep.mubr.bf16.mxu0 0
      %681 = vmatmul.mubr.bf16.gmra.mxu0 %v572
      %v682 = vpop.f32.mrf.mxu0
      %v683 = vadd.f32 0.0, %v682
      %v684 = vpop.f32.mrf.mxu0
      %v685 = vpop.f32.mrf.mxu0
      %v686 = vadd.f32 0.0, %v685
      %v687 = vpop.f32.mrf.mxu0
      %688 = vmatprep.mubr.bf16.mxu0 0
      %689 = vmatmul.mubr.bf16.gmra.mxu0 %v575
      %v690 = vpop.f32.mrf.mxu0
      %v691 = vadd.f32 0.0, %v690
      %v692 = vpop.f32.mrf.mxu0
      %v693 = vpop.f32.mrf.mxu0
      %v694 = vadd.f32 0.0, %v693
      %v695 = vpop.f32.mrf.mxu0
      %696 = vmatprep.mubr.bf16.mxu0 0
      %697 = vmatmul.mubr.bf16.gmra.mxu0 %v578
      %v698 = vpop.f32.mrf.mxu0
      %v699 = vadd.f32 0.0, %v698
      %v700 = vpop.f32.mrf.mxu0
      %v701 = vpop.f32.mrf.mxu0
      %v702 = vadd.f32 0.0, %v701
      %v703 = vpop.f32.mrf.mxu0
      %704 = vmatprep.mubr.bf16.mxu0 0
      %705 = vmatmul.mubr.bf16.gmra.mxu0 %v581
      %v706 = vpop.f32.mrf.mxu0
      %v707 = vadd.f32 0.0, %v706
      %v708 = vpop.f32.mrf.mxu0
      %v709 = vpop.f32.mrf.mxu0
      %v710 = vadd.f32 0.0, %v709
      %v711 = vpop.f32.mrf.mxu0
      %712 = vmatprep.mubr.bf16.mxu0 0
      %713 = vmatmul.mubr.bf16.gmra.mxu0 %v584
      %v714 = vpop.f32.mrf.mxu0
      %v715 = vadd.f32 0.0, %v714
      %v716 = vpop.f32.mrf.mxu0
      %v717 = vpop.f32.mrf.mxu0
      %v718 = vadd.f32 0.0, %v717
      %v719 = vpop.f32.mrf.mxu0
      %720 = vmatprep.mubr.bf16.mxu0 0
      %721 = vmatmul.mubr.bf16.gmra.mxu0 %v587
      %v722 = vpop.f32.mrf.mxu0
      %v723 = vadd.f32 0.0, %v722
      %v724 = vpop.f32.mrf.mxu0
      %v725 = vpop.f32.mrf.mxu0
      %v726 = vadd.f32 0.0, %v725
      %v727 = vpop.f32.mrf.mxu0
      %728 = vmatprep.mubr.bf16.mxu0 0
      %729 = vmatmul.mubr.bf16.gmra.mxu0 %v590
      %v730 = vpop.f32.mrf.mxu0
      %v731 = vadd.f32 0.0, %v730
      %v732 = vpop.f32.mrf.mxu0
      %v733 = vpop.f32.mrf.mxu0
      %v734 = vadd.f32 0.0, %v733
      %v735 = vpop.f32.mrf.mxu0
      %736 = vmatprep.mubr.bf16.mxu0 0
      %737 = vmatmul.mubr.bf16.gmra.mxu0 %v593
      %v738 = vpop.f32.mrf.mxu0
      %v739 = vadd.f32 0.0, %v738
      %v740 = vpop.f32.mrf.mxu0
      %v741 = vpop.f32.mrf.mxu0
      %v742 = vadd.f32 0.0, %v741
      %v743 = vpop.f32.mrf.mxu0
      %744 = vmatprep.mubr.bf16.mxu0 0
      %745 = vmatmul.mubr.bf16.gmra.mxu0 %v596
      %v746 = vpop.f32.mrf.mxu0
      %v747 = vadd.f32 0.0, %v746
      %v748 = vpop.f32.mrf.mxu0
      %v749 = vpop.f32.mrf.mxu0
      %v750 = vadd.f32 0.0, %v749
      %v751 = vpop.f32.mrf.mxu0
      %752 = vmatprep.mubr.bf16.mxu0 0
      %753 = vmatmul.mubr.bf16.gmra.mxu0 %v599
      %v754 = vpop.f32.mrf.mxu0
      %v755 = vadd.f32 0.0, %v754
      %v756 = vpop.f32.mrf.mxu0
      %v757 = vpop.f32.mrf.mxu0
      %v758 = vadd.f32 0.0, %v757
      %v759 = vpop.f32.mrf.mxu0
      %760 = vmatprep.mubr.bf16.mxu0 0
      %761 = vmatmul.mubr.bf16.gmra.mxu0 %v602
      %v762 = vpop.f32.mrf.mxu0
      %v763 = vadd.f32 0.0, %v762
      %v764 = vpop.f32.mrf.mxu0
      %v765 = vpop.f32.mrf.mxu0
      %v766 = vadd.f32 0.0, %v765
      %v767 = vpop.f32.mrf.mxu0
      %768 = vdwg.mxu0
      %v769 = vld [vmem:[%s2] sm:$0x1]
      %v771 = vlaneseq
      %v772 = vshrl.u32 %v771, 7
      %v773 = vsub.s32 0, %v772
      %v774 = vrot.slane %v769, %v773
      %v776 = vmul.f32 %v643, %v774
      %v777 = vmul.f32 %v646, %v774
      %v778 = vmul.f32 %v651, %v774
      %v779 = vmul.f32 %v654, %v774
      %v780 = vmul.f32 %v659, %v774
      %v781 = vmul.f32 %v662, %v774
      %v782 = vmul.f32 %v667, %v774
      %v783 = vmul.f32 %v670, %v774
      %v784 = vmul.f32 %v675, %v774
      %v785 = vmul.f32 %v678, %v774
      %v786 = vmul.f32 %v683, %v774
      %v787 = vmul.f32 %v686, %v774
      %v788 = vmul.f32 %v691, %v774
      %v789 = vmul.f32 %v694, %v774
      %v790 = vmul.f32 %v699, %v774
      %v791 = vmul.f32 %v702, %v774
      %v792 = vmul.f32 %v707, %v774
      %v793 = vmul.f32 %v710, %v774
      %v794 = vmul.f32 %v715, %v774
      %v795 = vmul.f32 %v718, %v774
      %v796 = vmul.f32 %v723, %v774
      %v797 = vmul.f32 %v726, %v774
      %v798 = vmul.f32 %v731, %v774
      %v799 = vmul.f32 %v734, %v774
      %v800 = vmul.f32 %v739, %v774
      %v801 = vmul.f32 %v742, %v774
      %v802 = vmul.f32 %v747, %v774
      %v803 = vmul.f32 %v750, %v774
      %v804 = vmul.f32 %v755, %v774
      %v805 = vmul.f32 %v758, %v774
      %v806 = vmul.f32 %v763, %v774
      %v807 = vmul.f32 %v766, %v774
      %v808 = vld [vmem:[%s3] sm:$0x1]
      %v810 = vlaneseq
      %v811 = vshrl.u32 %v810, 7
      %v812 = vsub.s32 0, %v811
      %v813 = vrot.slane %v808, %v812
      %v815 = vadd.f32 %v776, %v813
      %v816 = vadd.f32 %v777, %v813
      %v817 = vadd.f32 %v778, %v813
      %v818 = vadd.f32 %v779, %v813
      %v819 = vadd.f32 %v780, %v813
      %v820 = vadd.f32 %v781, %v813
      %v821 = vadd.f32 %v782, %v813
      %v822 = vadd.f32 %v783, %v813
      %v823 = vadd.f32 %v784, %v813
      %v824 = vadd.f32 %v785, %v813
      %v825 = vadd.f32 %v786, %v813
      %v826 = vadd.f32 %v787, %v813
      %v827 = vadd.f32 %v788, %v813
      %v828 = vadd.f32 %v789, %v813
      %v829 = vadd.f32 %v790, %v813
      %v830 = vadd.f32 %v791, %v813
      %v831 = vadd.f32 %v792, %v813
      %v832 = vadd.f32 %v793, %v813
      %v833 = vadd.f32 %v794, %v813
      %v834 = vadd.f32 %v795, %v813
      %v835 = vadd.f32 %v796, %v813
      %v836 = vadd.f32 %v797, %v813
      %v837 = vadd.f32 %v798, %v813
      %v838 = vadd.f32 %v799, %v813
      %v839 = vadd.f32 %v800, %v813
      %v840 = vadd.f32 %v801, %v813
      %v841 = vadd.f32 %v802, %v813
      %v842 = vadd.f32 %v803, %v813
      %v843 = vadd.f32 %v804, %v813
      %v844 = vadd.f32 %v805, %v813
      %v845 = vadd.f32 %v806, %v813
      %v846 = vadd.f32 %v807, %v813
      %v847 = vmax.f32 %v815, 0.0
      %v848 = vmax.f32 %v816, 0.0
      %v849 = vmax.f32 %v817, 0.0
      %v850 = vmax.f32 %v818, 0.0
      %v851 = vmax.f32 %v819, 0.0
      %v852 = vmax.f32 %v820, 0.0
      %v853 = vmax.f32 %v821, 0.0
      %v854 = vmax.f32 %v822, 0.0
      %v855 = vmax.f32 %v823, 0.0
      %v856 = vmax.f32 %v824, 0.0
      %v857 = vmax.f32 %v825, 0.0
      %v858 = vmax.f32 %v826, 0.0
      %v859 = vmax.f32 %v827, 0.0
      %v860 = vmax.f32 %v828, 0.0
      %v861 = vmax.f32 %v829, 0.0
      %v862 = vmax.f32 %v830, 0.0
      %v863 = vmax.f32 %v831, 0.0
      %v864 = vmax.f32 %v832, 0.0
      %v865 = vmax.f32 %v833, 0.0
      %v866 = vmax.f32 %v834, 0.0
      %v867 = vmax.f32 %v835, 0.0
      %v868 = vmax.f32 %v836, 0.0
      %v869 = vmax.f32 %v837, 0.0
      %v870 = vmax.f32 %v838, 0.0
      %v871 = vmax.f32 %v839, 0.0
      %v872 = vmax.f32 %v840, 0.0
      %v873 = vmax.f32 %v841, 0.0
      %v874 = vmax.f32 %v842, 0.0
      %v875 = vmax.f32 %v843, 0.0
      %v876 = vmax.f32 %v844, 0.0
      %v877 = vmax.f32 %v845, 0.0
      %v878 = vmax.f32 %v846, 0.0
      %vm879 = vcmask 27648
      %880 = vst.msk [vmem:[#allocation2] sm:$0xf] %vm879, 0
      %881 = vst.msk [vmem:[#allocation2 + $0x4] sm:$0xf] %vm879, 0
      %vm882 = vcmask 24576
      %883 = vst.msk [vmem:[#allocation2 + $0x8] sm:$0x1] %vm882, 0
      %884 = vst.msk [vmem:[#allocation2 + $0xc] sm:$0xf] %vm879, 0
      %885 = vst.msk [vmem:[#allocation2 + $0x10] sm:$0xf] %vm879, 0
      %886 = vst.msk [vmem:[#allocation2 + $0x14] sm:$0x1] %vm882, 0
      %887 = vst.msk [vmem:[#allocation2 + $0x18] sm:$0xf] %vm879, 0
      %888 = vst.msk [vmem:[#allocation2 + $0x1c] sm:$0xf] %vm879, 0
      %889 = vst.msk [vmem:[#allocation2 + $0x20] sm:$0x1] %vm882, 0
      %890 = vst.msk [vmem:[#allocation2 + $0x24] sm:$0xf] %vm879, 0
      %891 = vst.msk [vmem:[#allocation2 + $0x28] sm:$0xf] %vm879, 0
      %892 = vst.msk [vmem:[#allocation2 + $0x2c] sm:$0x1] %vm882, 0
      %893 = vst.msk [vmem:[#allocation2 + $0x30] sm:$0xf] %vm879, 0
      %894 = vst.msk [vmem:[#allocation2 + $0x34] sm:$0xf] %vm879, 0
      %895 = vst.msk [vmem:[#allocation2 + $0x38] sm:$0x1] %vm882, 0
      %896 = vst.msk [vmem:[#allocation2 + $0x3c] sm:$0xf] %vm879, 0
      %897 = vst.msk [vmem:[#allocation2 + $0x40] sm:$0xf] %vm879, 0
      %898 = vst.msk [vmem:[#allocation2 + $0x44] sm:$0x1] %vm882, 0
      %899 = vst.msk [vmem:[#allocation2 + $0x48] sm:$0xf] %vm879, 0
      %900 = vst.msk [vmem:[#allocation2 + $0x4c] sm:$0xf] %vm879, 0
      %901 = vst.msk [vmem:[#allocation2 + $0x50] sm:$0x1] %vm882, 0
      %902 = vst.msk [vmem:[#allocation2 + $0x54] sm:$0xf] %vm879, 0
      %903 = vst.msk [vmem:[#allocation2 + $0x58] sm:$0xf] %vm879, 0
      %904 = vst.msk [vmem:[#allocation2 + $0x5c] sm:$0x1] %vm882, 0
      %905 = vst.msk [vmem:[#allocation2 + $0x60] sm:$0xf] %vm879, 0
      %906 = vst.msk [vmem:[#allocation2 + $0x64] sm:$0xf] %vm879, 0
      %907 = vst.msk [vmem:[#allocation2 + $0x68] sm:$0x1] %vm882, 0
      %908 = vst.msk [vmem:[#allocation2 + $0x6c] sm:$0xf] %vm879, 0
      %909 = vst.msk [vmem:[#allocation2 + $0x70] sm:$0xf] %vm879, 0
      %910 = vst.msk [vmem:[#allocation2 + $0x74] sm:$0x1] %vm882, 0
      %911 = vst.msk [vmem:[#allocation2 + $0x78] sm:$0xf] %vm879, 0
      %912 = vst.msk [vmem:[#allocation2 + $0x7c] sm:$0xf] %vm879, 0
      %913 = vst.msk [vmem:[#allocation2 + $0x80] sm:$0x1] %vm882, 0
      %914 = vst.msk [vmem:[#allocation2 + $0x84] sm:$0xf] %vm879, 0
      %915 = vst.msk [vmem:[#allocation2 + $0x88] sm:$0xf] %vm879, 0
      %916 = vst.msk [vmem:[#allocation2 + $0x8c] sm:$0x1] %vm882, 0
      %917 = vst.msk [vmem:[#allocation2 + $0x90] sm:$0xf] %vm879, 0
      %918 = vst.msk [vmem:[#allocation2 + $0x94] sm:$0xf] %vm879, 0
      %919 = vst.msk [vmem:[#allocation2 + $0x98] sm:$0x1] %vm882, 0
      %920 = vst.msk [vmem:[#allocation2 + $0x9c] sm:$0xf] %vm879, 0
      %921 = vst.msk [vmem:[#allocation2 + $0xa0] sm:$0xf] %vm879, 0
      %922 = vst.msk [vmem:[#allocation2 + $0xa4] sm:$0x1] %vm882, 0
      %923 = vst.msk [vmem:[#allocation2 + $0xa8] sm:$0xf] %vm879, 0
      %924 = vst.msk [vmem:[#allocation2 + $0xac] sm:$0xf] %vm879, 0
      %925 = vst.msk [vmem:[#allocation2 + $0xb0] sm:$0x1] %vm882, 0
      %926 = vst.msk [vmem:[#allocation2 + $0xb4] sm:$0xf] %vm879, 0
      %927 = vst.msk [vmem:[#allocation2 + $0xb8] sm:$0xf] %vm879, 0
      %928 = vst.msk [vmem:[#allocation2 + $0xbc] sm:$0x1] %vm882, 0
      %929 = vst.msk [vmem:[#allocation2 + $0xc0] sm:$0xf] %vm879, 0
      %930 = vst.msk [vmem:[#allocation2 + $0xc4] sm:$0xf] %vm879, 0
      %931 = vst.msk [vmem:[#allocation2 + $0xc8] sm:$0x1] %vm882, 0
      %932 = vst.msk [vmem:[#allocation2 + $0xcc] sm:$0xf] %vm879, 0
      %933 = vst.msk [vmem:[#allocation2 + $0xd0] sm:$0xf] %vm879, 0
      %934 = vst.msk [vmem:[#allocation2 + $0xd4] sm:$0x1] %vm882, 0
      %v935 = vpack.c.bf16 %v848, %v847
      %v936 = vpack.c.bf16 %v850, %v849
      %v937 = vpack.c.bf16 %v852, %v851
      %v938 = vpack.c.bf16 %v854, %v853
      %v939 = vpack.c.bf16 %v856, %v855
      %v940 = vpack.c.bf16 %v858, %v857
      %v941 = vpack.c.bf16 %v860, %v859
      %v942 = vpack.c.bf16 %v862, %v861
      %v943 = vpack.c.bf16 %v864, %v863
      %v944 = vpack.c.bf16 %v866, %v865
      %v945 = vpack.c.bf16 %v868, %v867
      %v946 = vpack.c.bf16 %v870, %v869
      %v947 = vpack.c.bf16 %v872, %v871
      %v948 = vpack.c.bf16 %v874, %v873
      %v949 = vpack.c.bf16 %v876, %v875
      %v950 = vpack.c.bf16 %v878, %v877
      %v967 = vunpack.c.l.b16 %v935
      %v968 = vunpack.c.h.b16 %v935
      %v969 = vunpack.c.l.b16 %v936
      %v970 = vunpack.c.h.b16 %v936
      %v971 = vunpack.c.l.b16 %v937
      %v972 = vunpack.c.h.b16 %v937
      %v973 = vunpack.c.l.b16 %v938
      %v974 = vunpack.c.h.b16 %v938
      %v975 = vunpack.c.l.b16 %v939
      %v976 = vunpack.c.h.b16 %v939
      %v977 = vunpack.c.l.b16 %v940
      %v978 = vunpack.c.h.b16 %v940
      %v979 = vunpack.c.l.b16 %v941
      %v980 = vunpack.c.h.b16 %v941
      %v981 = vunpack.c.l.b16 %v942
      %v982 = vunpack.c.h.b16 %v942
      %v983 = vunpack.c.l.b16 %v943
      %v984 = vunpack.c.h.b16 %v943
      %v985 = vunpack.c.l.b16 %v944
      %v986 = vunpack.c.h.b16 %v944
      %v987 = vunpack.c.l.b16 %v945
      %v988 = vunpack.c.h.b16 %v945
      %v989 = vunpack.c.l.b16 %v946
      %v990 = vunpack.c.h.b16 %v946
      %v991 = vunpack.c.l.b16 %v947
      %v992 = vunpack.c.h.b16 %v947
      %v993 = vunpack.c.l.b16 %v948
      %v994 = vunpack.c.h.b16 %v948
      %v995 = vunpack.c.l.b16 %v949
      %v996 = vunpack.c.h.b16 %v949
      %v997 = vunpack.c.l.b16 %v950
      %v998 = vunpack.c.h.b16 %v950
      %v999 = vpack.c.b16 %v967, %v967
      %v1000 = vpack.c.b16 %v968, %v968
      %v1001 = vpack.c.b16 %v969, %v969
      %v1002 = vpack.c.b16 %v970, %v970
      %v1003 = vpack.c.b16 %v971, %v971
      %v1004 = vpack.c.b16 %v972, %v972
      %v1005 = vpack.c.b16 %v973, %v973
      %v1006 = vpack.c.b16 %v974, %v974
      %v1007 = vpack.c.b16 %v975, %v975
      %v1008 = vpack.c.b16 %v976, %v976
      %v1009 = vpack.c.b16 %v977, %v977
      %v1010 = vpack.c.b16 %v978, %v978
      %v1011 = vpack.c.b16 %v979, %v979
      %v1012 = vpack.c.b16 %v980, %v980
      %v1013 = vpack.c.b16 %v981, %v981
      %v1014 = vpack.c.b16 %v982, %v982
      %v1015 = vpack.c.b16 %v983, %v983
      %v1016 = vpack.c.b16 %v984, %v984
      %v1017 = vpack.c.b16 %v985, %v985
      %v1018 = vpack.c.b16 %v986, %v986
      %v1019 = vpack.c.b16 %v987, %v987
      %v1020 = vpack.c.b16 %v988, %v988
      %v1021 = vpack.c.b16 %v989, %v989
      %v1022 = vpack.c.b16 %v990, %v990
      %v1023 = vpack.c.b16 %v991, %v991
      %v1024 = vpack.c.b16 %v992, %v992
      %v1025 = vpack.c.b16 %v993, %v993
      %v1026 = vpack.c.b16 %v994, %v994
      %v1027 = vpack.c.b16 %v995, %v995
      %v1028 = vpack.c.b16 %v996, %v996
      %v1029 = vpack.c.b16 %v997, %v997
      %v1030 = vpack.c.b16 %v998, %v998
      %vm1031 = vsmask.f32 256
      %vm1032 = vsmask.f32 4368
      %vm1033 = vmor %vm1031, %vm1032
      %v1035 = vshrl.u32 %v999, 16
      %v1037 = vrot.slane %v1035, 7
      %v1038 = vshll.u32 %v999, 16
      %v1040 = vor.u32 %v1037, %v1038
      %v1041 = vrot.slane %v1037, 4
      %v1043 = vshrl.u32 %v1000, 16
      %v1045 = vrot.slane %v1043, 7
      %v1046 = vshll.u32 %v1000, 16
      %v1048 = vor.u32 %v1045, %v1046
      %v1049 = vsel %vm1033, %v1041, %v1048
      %v1050 = vrot.slane %v1045, 4
      %v1052 = vshrl.u32 %v1001, 16
      %v1054 = vrot.slane %v1052, 7
      %v1055 = vshll.u32 %v1001, 16
      %v1057 = vor.u32 %v1054, %v1055
      %v1058 = vrot.slane %v1054, 4
      %v1060 = vshrl.u32 %v1002, 16
      %v1062 = vrot.slane %v1060, 7
      %v1063 = vshll.u32 %v1002, 16
      %v1065 = vor.u32 %v1062, %v1063
      %v1066 = vsel %vm1033, %v1058, %v1065
      %v1067 = vrot.slane %v1062, 4
      %v1069 = vshrl.u32 %v1003, 16
      %v1071 = vrot.slane %v1069, 7
      %v1072 = vshll.u32 %v1003, 16
      %v1074 = vor.u32 %v1071, %v1072
      %v1075 = vrot.slane %v1071, 4
      %v1077 = vshrl.u32 %v1004, 16
      %v1079 = vrot.slane %v1077, 7
      %v1080 = vshll.u32 %v1004, 16
      %v1082 = vor.u32 %v1079, %v1080
      %v1083 = vsel %vm1033, %v1075, %v1082
      %v1084 = vrot.slane %v1079, 4
      %v1086 = vshrl.u32 %v1005, 16
      %v1088 = vrot.slane %v1086, 7
      %v1089 = vshll.u32 %v1005, 16
      %v1091 = vor.u32 %v1088, %v1089
      %v1092 = vrot.slane %v1088, 4
      %v1094 = vshrl.u32 %v1006, 16
      %v1096 = vrot.slane %v1094, 7
      %v1097 = vshll.u32 %v1006, 16
      %v1099 = vor.u32 %v1096, %v1097
      %v1100 = vsel %vm1033, %v1092, %v1099
      %v1101 = vrot.slane %v1096, 4
      %v1103 = vshrl.u32 %v1007, 16
      %v1105 = vrot.slane %v1103, 7
      %v1106 = vshll.u32 %v1007, 16
      %v1108 = vor.u32 %v1105, %v1106
      %v1109 = vrot.slane %v1105, 4
      %v1111 = vshrl.u32 %v1008, 16
      %v1113 = vrot.slane %v1111, 7
      %v1114 = vshll.u32 %v1008, 16
      %v1116 = vor.u32 %v1113, %v1114
      %v1117 = vsel %vm1033, %v1109, %v1116
      %v1118 = vrot.slane %v1113, 4
      %v1120 = vshrl.u32 %v1009, 16
      %v1122 = vrot.slane %v1120, 7
      %v1123 = vshll.u32 %v1009, 16
      %v1125 = vor.u32 %v1122, %v1123
      %v1126 = vrot.slane %v1122, 4
      %v1128 = vshrl.u32 %v1010, 16
      %v1130 = vrot.slane %v1128, 7
      %v1131 = vshll.u32 %v1010, 16
      %v1133 = vor.u32 %v1130, %v1131
      %v1134 = vsel %vm1033, %v1126, %v1133
      %v1135 = vrot.slane %v1130, 4
      %v1137 = vshrl.u32 %v1011, 16
      %v1139 = vrot.slane %v1137, 7
      %v1140 = vshll.u32 %v1011, 16
      %v1142 = vor.u32 %v1139, %v1140
      %v1143 = vrot.slane %v1139, 4
      %v1145 = vshrl.u32 %v1012, 16
      %v1147 = vrot.slane %v1145, 7
      %v1148 = vshll.u32 %v1012, 16
      %v1150 = vor.u32 %v1147, %v1148
      %v1151 = vsel %vm1033, %v1143, %v1150
      %v1152 = vrot.slane %v1147, 4
      %v1154 = vshrl.u32 %v1013, 16
      %v1156 = vrot.slane %v1154, 7
      %v1157 = vshll.u32 %v1013, 16
      %v1159 = vor.u32 %v1156, %v1157
      %v1160 = vrot.slane %v1156, 4
      %v1162 = vshrl.u32 %v1014, 16
      %v1164 = vrot.slane %v1162, 7
      %v1165 = vshll.u32 %v1014, 16
      %v1167 = vor.u32 %v1164, %v1165
      %v1168 = vsel %vm1033, %v1160, %v1167
      %v1169 = vrot.slane %v1164, 4
      %v1171 = vshrl.u32 %v1015, 16
      %v1173 = vrot.slane %v1171, 7
      %v1174 = vshll.u32 %v1015, 16
      %v1176 = vor.u32 %v1173, %v1174
      %v1177 = vrot.slane %v1173, 4
      %v1179 = vshrl.u32 %v1016, 16
      %v1181 = vrot.slane %v1179, 7
      %v1182 = vshll.u32 %v1016, 16
      %v1184 = vor.u32 %v1181, %v1182
      %v1185 = vsel %vm1033, %v1177, %v1184
      %v1186 = vrot.slane %v1181, 4
      %v1188 = vshrl.u32 %v1017, 16
      %v1190 = vrot.slane %v1188, 7
      %v1191 = vshll.u32 %v1017, 16
      %v1193 = vor.u32 %v1190, %v1191
      %v1194 = vrot.slane %v1190, 4
      %v1196 = vshrl.u32 %v1018, 16
      %v1198 = vrot.slane %v1196, 7
      %v1199 = vshll.u32 %v1018, 16
      %v1201 = vor.u32 %v1198, %v1199
      %v1202 = vsel %vm1033, %v1194, %v1201
      %v1203 = vrot.slane %v1198, 4
      %v1205 = vshrl.u32 %v1019, 16
      %v1207 = vrot.slane %v1205, 7
      %v1208 = vshll.u32 %v1019, 16
      %v1210 = vor.u32 %v1207, %v1208
      %v1211 = vrot.slane %v1207, 4
      %v1213 = vshrl.u32 %v1020, 16
      %v1215 = vrot.slane %v1213, 7
      %v1216 = vshll.u32 %v1020, 16
      %v1218 = vor.u32 %v1215, %v1216
      %v1219 = vsel %vm1033, %v1211, %v1218
      %v1220 = vrot.slane %v1215, 4
      %v1222 = vshrl.u32 %v1021, 16
      %v1224 = vrot.slane %v1222, 7
      %v1225 = vshll.u32 %v1021, 16
      %v1227 = vor.u32 %v1224, %v1225
      %v1228 = vrot.slane %v1224, 4
      %v1230 = vshrl.u32 %v1022, 16
      %v1232 = vrot.slane %v1230, 7
      %v1233 = vshll.u32 %v1022, 16
      %v1235 = vor.u32 %v1232, %v1233
      %v1236 = vsel %vm1033, %v1228, %v1235
      %v1237 = vrot.slane %v1232, 4
      %v1239 = vshrl.u32 %v1023, 16
      %v1241 = vrot.slane %v1239, 7
      %v1242 = vshll.u32 %v1023, 16
      %v1244 = vor.u32 %v1241, %v1242
      %v1245 = vrot.slane %v1241, 4
      %v1247 = vshrl.u32 %v1024, 16
      %v1249 = vrot.slane %v1247, 7
      %v1250 = vshll.u32 %v1024, 16
      %v1252 = vor.u32 %v1249, %v1250
      %v1253 = vsel %vm1033, %v1245, %v1252
      %v1254 = vrot.slane %v1249, 4
      %v1256 = vshrl.u32 %v1025, 16
      %v1258 = vrot.slane %v1256, 7
      %v1259 = vshll.u32 %v1025, 16
      %v1261 = vor.u32 %v1258, %v1259
      %v1262 = vrot.slane %v1258, 4
      %v1264 = vshrl.u32 %v1026, 16
      %v1266 = vrot.slane %v1264, 7
      %v1267 = vshll.u32 %v1026, 16
      %v1269 = vor.u32 %v1266, %v1267
      %v1270 = vsel %vm1033, %v1262, %v1269
      %v1271 = vrot.slane %v1266, 4
      %v1273 = vshrl.u32 %v1027, 16
      %v1275 = vrot.slane %v1273, 7
      %v1276 = vshll.u32 %v1027, 16
      %v1278 = vor.u32 %v1275, %v1276
      %v1279 = vrot.slane %v1275, 4
      %v1281 = vshrl.u32 %v1028, 16
      %v1283 = vrot.slane %v1281, 7
      %v1284 = vshll.u32 %v1028, 16
      %v1286 = vor.u32 %v1283, %v1284
      %v1287 = vsel %vm1033, %v1279, %v1286
      %v1288 = vrot.slane %v1283, 4
      %v1290 = vshrl.u32 %v1029, 16
      %v1292 = vrot.slane %v1290, 7
      %v1293 = vshll.u32 %v1029, 16
      %v1295 = vor.u32 %v1292, %v1293
      %v1296 = vrot.slane %v1292, 4
      %v1298 = vshrl.u32 %v1030, 16
      %v1300 = vrot.slane %v1298, 7
      %v1301 = vshll.u32 %v1030, 16
      %v1303 = vor.u32 %v1300, %v1301
      %v1304 = vsel %vm1033, %v1296, %v1303
      %v1305 = vrot.slane %v1300, 4
      %s1354 = scalar_lea.vmem [#allocation2], 12
      %vm1355 = vcmask 27648
      %vm1356 = vsmask.f32 7938
      %vm1357 = vmand %vm1355, %vm1356
      %v1358 = vld [vmem:[%s1354] sm:$0xf]
      %v1359 = vsel %vm1357, %v1040, %v1358
      %1360 = vst [vmem:[%s1354] sm:$0xf] %v1359
      %1361 = vst.msk [vmem:[%s1354 + $0x4] sm:$0xf] %vm879, %v1049
      %vm1362 = vcmask 24576
      %vm1363 = vmand %vm1362, %vm1031
      %v1364 = vld [vmem:[%s1354 + $0x8] sm:$0x1]
      %v1365 = vsel %vm1363, %v1050, %v1364
      %1366 = vst [vmem:[%s1354 + $0x8] sm:$0x1] %v1365
      %v1367 = vld [vmem:[%s1354 + $0xc] sm:$0xf]
      %v1368 = vsel %vm1357, %v1057, %v1367
      %1369 = vst [vmem:[%s1354 + $0xc] sm:$0xf] %v1368
      %1370 = vst.msk [vmem:[%s1354 + $0x10] sm:$0xf] %vm879, %v1066
      %v1371 = vld [vmem:[%s1354 + $0x14] sm:$0x1]
      %v1372 = vsel %vm1363, %v1067, %v1371
      %1373 = vst [vmem:[%s1354 + $0x14] sm:$0x1] %v1372
      %v1374 = vld [vmem:[%s1354 + $0x18] sm:$0xf]
      %v1375 = vsel %vm1357, %v1074, %v1374
      %1376 = vst [vmem:[%s1354 + $0x18] sm:$0xf] %v1375
      %1377 = vst.msk [vmem:[%s1354 + $0x1c] sm:$0xf] %vm879, %v1083
      %v1378 = vld [vmem:[%s1354 + $0x20] sm:$0x1]
      %v1379 = vsel %vm1363, %v1084, %v1378
      %1380 = vst [vmem:[%s1354 + $0x20] sm:$0x1] %v1379
      %v1381 = vld [vmem:[%s1354 + $0x24] sm:$0xf]
      %v1382 = vsel %vm1357, %v1091, %v1381
      %1383 = vst [vmem:[%s1354 + $0x24] sm:$0xf] %v1382
      %1384 = vst.msk [vmem:[%s1354 + $0x28] sm:$0xf] %vm879, %v1100
      %v1385 = vld [vmem:[%s1354 + $0x2c] sm:$0x1]
      %v1386 = vsel %vm1363, %v1101, %v1385
      %1387 = vst [vmem:[%s1354 + $0x2c] sm:$0x1] %v1386
      %v1388 = vld [vmem:[%s1354 + $0x30] sm:$0xf]
      %v1389 = vsel %vm1357, %v1108, %v1388
      %1390 = vst [vmem:[%s1354 + $0x30] sm:$0xf] %v1389
      %1391 = vst.msk [vmem:[%s1354 + $0x34] sm:$0xf] %vm879, %v1117
      %v1392 = vld [vmem:[%s1354 + $0x38] sm:$0x1]
      %v1393 = vsel %vm1363, %v1118, %v1392
      %1394 = vst [vmem:[%s1354 + $0x38] sm:$0x1] %v1393
      %v1395 = vld [vmem:[%s1354 + $0x3c] sm:$0xf]
      %v1396 = vsel %vm1357, %v1125, %v1395
      %1397 = vst [vmem:[%s1354 + $0x3c] sm:$0xf] %v1396
      %1398 = vst.msk [vmem:[%s1354 + $0x40] sm:$0xf] %vm879, %v1134
      %v1399 = vld [vmem:[%s1354 + $0x44] sm:$0x1]
      %v1400 = vsel %vm1363, %v1135, %v1399
      %1401 = vst [vmem:[%s1354 + $0x44] sm:$0x1] %v1400
      %v1402 = vld [vmem:[%s1354 + $0x48] sm:$0xf]
      %v1403 = vsel %vm1357, %v1142, %v1402
      %1404 = vst [vmem:[%s1354 + $0x48] sm:$0xf] %v1403
      %1405 = vst.msk [vmem:[%s1354 + $0x4c] sm:$0xf] %vm879, %v1151
      %v1406 = vld [vmem:[%s1354 + $0x50] sm:$0x1]
      %v1407 = vsel %vm1363, %v1152, %v1406
      %1408 = vst [vmem:[%s1354 + $0x50] sm:$0x1] %v1407
      %v1409 = vld [vmem:[%s1354 + $0x54] sm:$0xf]
      %v1410 = vsel %vm1357, %v1159, %v1409
      %1411 = vst [vmem:[%s1354 + $0x54] sm:$0xf] %v1410
      %1412 = vst.msk [vmem:[%s1354 + $0x58] sm:$0xf] %vm879, %v1168
      %v1413 = vld [vmem:[%s1354 + $0x5c] sm:$0x1]
      %v1414 = vsel %vm1363, %v1169, %v1413
      %1415 = vst [vmem:[%s1354 + $0x5c] sm:$0x1] %v1414
      %v1416 = vld [vmem:[%s1354 + $0x60] sm:$0xf]
      %v1417 = vsel %vm1357, %v1176, %v1416
      %1418 = vst [vmem:[%s1354 + $0x60] sm:$0xf] %v1417
      %1419 = vst.msk [vmem:[%s1354 + $0x64] sm:$0xf] %vm879, %v1185
      %v1420 = vld [vmem:[%s1354 + $0x68] sm:$0x1]
      %v1421 = vsel %vm1363, %v1186, %v1420
      %1422 = vst [vmem:[%s1354 + $0x68] sm:$0x1] %v1421
      %v1423 = vld [vmem:[%s1354 + $0x6c] sm:$0xf]
      %v1424 = vsel %vm1357, %v1193, %v1423
      %1425 = vst [vmem:[%s1354 + $0x6c] sm:$0xf] %v1424
      %1426 = vst.msk [vmem:[%s1354 + $0x70] sm:$0xf] %vm879, %v1202
      %v1427 = vld [vmem:[%s1354 + $0x74] sm:$0x1]
      %v1428 = vsel %vm1363, %v1203, %v1427
      %1429 = vst [vmem:[%s1354 + $0x74] sm:$0x1] %v1428
      %v1430 = vld [vmem:[%s1354 + $0x78] sm:$0xf]
      %v1431 = vsel %vm1357, %v1210, %v1430
      %1432 = vst [vmem:[%s1354 + $0x78] sm:$0xf] %v1431
      %1433 = vst.msk [vmem:[%s1354 + $0x7c] sm:$0xf] %vm879, %v1219
      %v1434 = vld [vmem:[%s1354 + $0x80] sm:$0x1]
      %v1435 = vsel %vm1363, %v1220, %v1434
      %1436 = vst [vmem:[%s1354 + $0x80] sm:$0x1] %v1435
      %v1437 = vld [vmem:[%s1354 + $0x84] sm:$0xf]
      %v1438 = vsel %vm1357, %v1227, %v1437
      %1439 = vst [vmem:[%s1354 + $0x84] sm:$0xf] %v1438
      %1440 = vst.msk [vmem:[%s1354 + $0x88] sm:$0xf] %vm879, %v1236
      %v1441 = vld [vmem:[%s1354 + $0x8c] sm:$0x1]
      %v1442 = vsel %vm1363, %v1237, %v1441
      %1443 = vst [vmem:[%s1354 + $0x8c] sm:$0x1] %v1442
      %v1444 = vld [vmem:[%s1354 + $0x90] sm:$0xf]
      %v1445 = vsel %vm1357, %v1244, %v1444
      %1446 = vst [vmem:[%s1354 + $0x90] sm:$0xf] %v1445
      %1447 = vst.msk [vmem:[%s1354 + $0x94] sm:$0xf] %vm879, %v1253
      %v1448 = vld [vmem:[%s1354 + $0x98] sm:$0x1]
      %v1449 = vsel %vm1363, %v1254, %v1448
      %1450 = vst [vmem:[%s1354 + $0x98] sm:$0x1] %v1449
      %v1451 = vld [vmem:[%s1354 + $0x9c] sm:$0xf]
      %v1452 = vsel %vm1357, %v1261, %v1451
      %1453 = vst [vmem:[%s1354 + $0x9c] sm:$0xf] %v1452
      %1454 = vst.msk [vmem:[%s1354 + $0xa0] sm:$0xf] %vm879, %v1270
      %v1455 = vld [vmem:[%s1354 + $0xa4] sm:$0x1]
      %v1456 = vsel %vm1363, %v1271, %v1455
      %1457 = vst [vmem:[%s1354 + $0xa4] sm:$0x1] %v1456
      %v1458 = vld [vmem:[%s1354 + $0xa8] sm:$0xf]
      %v1459 = vsel %vm1357, %v1278, %v1458
      %1460 = vst [vmem:[%s1354 + $0xa8] sm:$0xf] %v1459
      %1461 = vst.msk [vmem:[%s1354 + $0xac] sm:$0xf] %vm879, %v1287
      %v1462 = vld [vmem:[%s1354 + $0xb0] sm:$0x1]
      %v1463 = vsel %vm1363, %v1288, %v1462
      %1464 = vst [vmem:[%s1354 + $0xb0] sm:$0x1] %v1463
      %v1465 = vld [vmem:[%s1354 + $0xb4] sm:$0xf]
      %v1466 = vsel %vm1357, %v1295, %v1465
      %1467 = vst [vmem:[%s1354 + $0xb4] sm:$0xf] %v1466
      %1468 = vst.msk [vmem:[%s1354 + $0xb8] sm:$0xf] %vm879, %v1304
      %v1469 = vld [vmem:[%s1354 + $0xbc] sm:$0x1]
      %v1470 = vsel %vm1363, %v1305, %v1469
      %1471 = vst [vmem:[%s1354 + $0xbc] sm:$0x1] %v1470
      %v1472 = vld [vmem:[#allocation2] sm:$0xf]
      %v1473 = vld [vmem:[#allocation2 + $0x4] sm:$0xf]
      %v1474 = vld [vmem:[#allocation2 + $0x8] sm:$0x1]
      %v1475 = vld [vmem:[#allocation2 + $0xc] sm:$0xf]
      %v1476 = vld [vmem:[#allocation2 + $0x10] sm:$0xf]
      %v1477 = vld [vmem:[#allocation2 + $0x14] sm:$0x1]
      %v1478 = vld [vmem:[#allocation2 + $0x18] sm:$0xf]
      %v1479 = vld [vmem:[#allocation2 + $0x1c] sm:$0xf]
      %v1480 = vld [vmem:[#allocation2 + $0x20] sm:$0x1]
      %v1481 = vld [vmem:[#allocation2 + $0x24] sm:$0xf]
      %v1482 = vld [vmem:[#allocation2 + $0x28] sm:$0xf]
      %v1483 = vld [vmem:[#allocation2 + $0x2c] sm:$0x1]
      %v1484 = vld [vmem:[#allocation2 + $0x30] sm:$0xf]
      %v1485 = vld [vmem:[#allocation2 + $0x34] sm:$0xf]
      %v1486 = vld [vmem:[#allocation2 + $0x38] sm:$0x1]
      %v1487 = vld [vmem:[#allocation2 + $0x3c] sm:$0xf]
      %v1488 = vld [vmem:[#allocation2 + $0x40] sm:$0xf]
      %v1489 = vld [vmem:[#allocation2 + $0x44] sm:$0x1]
      %v1490 = vld [vmem:[#allocation2 + $0x48] sm:$0xf]
      %v1491 = vld [vmem:[#allocation2 + $0x4c] sm:$0xf]
      %v1492 = vld [vmem:[#allocation2 + $0x50] sm:$0x1]
      %v1493 = vld [vmem:[#allocation2 + $0x54] sm:$0xf]
      %v1494 = vld [vmem:[#allocation2 + $0x58] sm:$0xf]
      %v1495 = vld [vmem:[#allocation2 + $0x5c] sm:$0x1]
      %v1496 = vld [vmem:[#allocation2 + $0x60] sm:$0xf]
      %v1497 = vld [vmem:[#allocation2 + $0x64] sm:$0xf]
      %v1498 = vld [vmem:[#allocation2 + $0x68] sm:$0x1]
      %v1499 = vld [vmem:[#allocation2 + $0x6c] sm:$0xf]
      %v1500 = vld [vmem:[#allocation2 + $0x70] sm:$0xf]
      %v1501 = vld [vmem:[#allocation2 + $0x74] sm:$0x1]
      %v1502 = vld [vmem:[#allocation2 + $0x78] sm:$0xf]
      %v1503 = vld [vmem:[#allocation2 + $0x7c] sm:$0xf]
      %v1504 = vld [vmem:[#allocation2 + $0x80] sm:$0x1]
      %v1505 = vld [vmem:[#allocation2 + $0x84] sm:$0xf]
      %v1506 = vld [vmem:[#allocation2 + $0x88] sm:$0xf]
      %v1507 = vld [vmem:[#allocation2 + $0x8c] sm:$0x1]
      %v1508 = vld [vmem:[#allocation2 + $0x90] sm:$0xf]
      %v1509 = vld [vmem:[#allocation2 + $0x94] sm:$0xf]
      %v1510 = vld [vmem:[#allocation2 + $0x98] sm:$0x1]
      %v1511 = vld [vmem:[#allocation2 + $0x9c] sm:$0xf]
      %v1512 = vld [vmem:[#allocation2 + $0xa0] sm:$0xf]
      %v1513 = vld [vmem:[#allocation2 + $0xa4] sm:$0x1]
      %v1514 = vld [vmem:[#allocation2 + $0xa8] sm:$0xf]
      %v1515 = vld [vmem:[#allocation2 + $0xac] sm:$0xf]
      %v1516 = vld [vmem:[#allocation2 + $0xb0] sm:$0x1]
      %v1517 = vld [vmem:[#allocation2 + $0xb4] sm:$0xf]
      %v1518 = vld [vmem:[#allocation2 + $0xb8] sm:$0xf]
      %v1519 = vld [vmem:[#allocation2 + $0xbc] sm:$0x1]
      %v1520 = vld [vmem:[#allocation2 + $0xc0] sm:$0xf]
      %v1521 = vld [vmem:[#allocation2 + $0xc4] sm:$0xf]
      %v1522 = vld [vmem:[#allocation2 + $0xc8] sm:$0x1]
      %v1523 = vld [vmem:[#allocation2 + $0xcc] sm:$0xf]
      %v1524 = vld [vmem:[#allocation2 + $0xd0] sm:$0xf]
      %v1525 = vld [vmem:[#allocation2 + $0xd4] sm:$0x1]
      %v1526 = vld [vmem:[%s4] sm:$0x3]
      %vm1527 = vsmask.f32 3328
      %vm1528 = vsmask.f32 7440
      %vm1529 = vmor %vm1527, %vm1528
      %v1531 = vshrl.u32 %v1472, 16
      %v1533 = vrot.slane %v1531, 4
      %v1534 = vshll.u32 %v1472, 16
      %v1536 = vrot.slane %v1534, 5
      %v1537 = vor.u32 %v1533, %v1536
      %v1538 = vrot.slane %v1537, 4
      %v1540 = vshll.u32 %v1473, 16
      %v1542 = vrot.slane %v1540, 5
      %v1543 = vsel %vm1529, %v1538, %v1542
      %v1544 = vshrl.u32 %v1473, 16
      %v1546 = vrot.slane %v1544, 4
      %v1547 = vor.u32 %v1546, %v1542
      %v1548 = vrot.slane %v1547, 4
      %v1550 = vshll.u32 %v1474, 16
      %v1552 = vrot.slane %v1550, 5
      %v1553 = vsel %vm1529, %v1548, %v1552
      %v1555 = vshrl.u32 %v1475, 16
      %v1557 = vrot.slane %v1555, 4
      %v1558 = vshll.u32 %v1475, 16
      %v1560 = vrot.slane %v1558, 5
      %v1561 = vor.u32 %v1557, %v1560
      %v1562 = vrot.slane %v1561, 4
      %v1564 = vshll.u32 %v1476, 16
      %v1566 = vrot.slane %v1564, 5
      %v1567 = vsel %vm1529, %v1562, %v1566
      %v1568 = vshrl.u32 %v1476, 16
      %v1570 = vrot.slane %v1568, 4
      %v1571 = vor.u32 %v1570, %v1566
      %v1572 = vrot.slane %v1571, 4
      %v1574 = vshll.u32 %v1477, 16
      %v1576 = vrot.slane %v1574, 5
      %v1577 = vsel %vm1529, %v1572, %v1576
      %v1579 = vshrl.u32 %v1478, 16
      %v1581 = vrot.slane %v1579, 4
      %v1582 = vshll.u32 %v1478, 16
      %v1584 = vrot.slane %v1582, 5
      %v1585 = vor.u32 %v1581, %v1584
      %v1586 = vrot.slane %v1585, 4
      %v1588 = vshll.u32 %v1479, 16
      %v1590 = vrot.slane %v1588, 5
      %v1591 = vsel %vm1529, %v1586, %v1590
      %v1592 = vshrl.u32 %v1479, 16
      %v1594 = vrot.slane %v1592, 4
      %v1595 = vor.u32 %v1594, %v1590
      %v1596 = vrot.slane %v1595, 4
      %v1598 = vshll.u32 %v1480, 16
      %v1600 = vrot.slane %v1598, 5
      %v1601 = vsel %vm1529, %v1596, %v1600
      %v1603 = vshrl.u32 %v1481, 16
      %v1605 = vrot.slane %v1603, 4
      %v1606 = vshll.u32 %v1481, 16
      %v1608 = vrot.slane %v1606, 5
      %v1609 = vor.u32 %v1605, %v1608
      %v1610 = vrot.slane %v1609, 4
      %v1612 = vshll.u32 %v1482, 16
      %v1614 = vrot.slane %v1612, 5
      %v1615 = vsel %vm1529, %v1610, %v1614
      %v1616 = vshrl.u32 %v1482, 16
      %v1618 = vrot.slane %v1616, 4
      %v1619 = vor.u32 %v1618, %v1614
      %v1620 = vrot.slane %v1619, 4
      %v1622 = vshll.u32 %v1483, 16
      %v1624 = vrot.slane %v1622, 5
      %v1625 = vsel %vm1529, %v1620, %v1624
      %v1627 = vshrl.u32 %v1484, 16
      %v1629 = vrot.slane %v1627, 4
      %v1630 = vshll.u32 %v1484, 16
      %v1632 = vrot.slane %v1630, 5
      %v1633 = vor.u32 %v1629, %v1632
      %v1634 = vrot.slane %v1633, 4
      %v1636 = vshll.u32 %v1485, 16
      %v1638 = vrot.slane %v1636, 5
      %v1639 = vsel %vm1529, %v1634, %v1638
      %v1640 = vshrl.u32 %v1485, 16
      %v1642 = vrot.slane %v1640, 4
      %v1643 = vor.u32 %v1642, %v1638
      %v1644 = vrot.slane %v1643, 4
      %v1646 = vshll.u32 %v1486, 16
      %v1648 = vrot.slane %v1646, 5
      %v1649 = vsel %vm1529, %v1644, %v1648
      %v1651 = vshrl.u32 %v1487, 16
      %v1653 = vrot.slane %v1651, 4
      %v1654 = vshll.u32 %v1487, 16
      %v1656 = vrot.slane %v1654, 5
      %v1657 = vor.u32 %v1653, %v1656
      %v1658 = vrot.slane %v1657, 4
      %v1660 = vshll.u32 %v1488, 16
      %v1662 = vrot.slane %v1660, 5
      %v1663 = vsel %vm1529, %v1658, %v1662
      %v1664 = vshrl.u32 %v1488, 16
      %v1666 = vrot.slane %v1664, 4
      %v1667 = vor.u32 %v1666, %v1662
      %v1668 = vrot.slane %v1667, 4
      %v1670 = vshll.u32 %v1489, 16
      %v1672 = vrot.slane %v1670, 5
      %v1673 = vsel %vm1529, %v1668, %v1672
      %v1675 = vshrl.u32 %v1490, 16
      %v1677 = vrot.slane %v1675, 4
      %v1678 = vshll.u32 %v1490, 16
      %v1680 = vrot.slane %v1678, 5
      %v1681 = vor.u32 %v1677, %v1680
      %v1682 = vrot.slane %v1681, 4
      %v1684 = vshll.u32 %v1491, 16
      %v1686 = vrot.slane %v1684, 5
      %v1687 = vsel %vm1529, %v1682, %v1686
      %v1688 = vshrl.u32 %v1491, 16
      %v1690 = vrot.slane %v1688, 4
      %v1691 = vor.u32 %v1690, %v1686
      %v1692 = vrot.slane %v1691, 4
      %v1694 = vshll.u32 %v1492, 16
      %v1696 = vrot.slane %v1694, 5
      %v1697 = vsel %vm1529, %v1692, %v1696
      %v1699 = vshrl.u32 %v1493, 16
      %v1701 = vrot.slane %v1699, 4
      %v1702 = vshll.u32 %v1493, 16
      %v1704 = vrot.slane %v1702, 5
      %v1705 = vor.u32 %v1701, %v1704
      %v1706 = vrot.slane %v1705, 4
      %v1708 = vshll.u32 %v1494, 16
      %v1710 = vrot.slane %v1708, 5
      %v1711 = vsel %vm1529, %v1706, %v1710
      %v1712 = vshrl.u32 %v1494, 16
      %v1714 = vrot.slane %v1712, 4
      %v1715 = vor.u32 %v1714, %v1710
      %v1716 = vrot.slane %v1715, 4
      %v1718 = vshll.u32 %v1495, 16
      %v1720 = vrot.slane %v1718, 5
      %v1721 = vsel %vm1529, %v1716, %v1720
      %v1723 = vshrl.u32 %v1496, 16
      %v1725 = vrot.slane %v1723, 4
      %v1726 = vshll.u32 %v1496, 16
      %v1728 = vrot.slane %v1726, 5
      %v1729 = vor.u32 %v1725, %v1728
      %v1730 = vrot.slane %v1729, 4
      %v1732 = vshll.u32 %v1497, 16
      %v1734 = vrot.slane %v1732, 5
      %v1735 = vsel %vm1529, %v1730, %v1734
      %v1736 = vshrl.u32 %v1497, 16
      %v1738 = vrot.slane %v1736, 4
      %v1739 = vor.u32 %v1738, %v1734
      %v1740 = vrot.slane %v1739, 4
      %v1742 = vshll.u32 %v1498, 16
      %v1744 = vrot.slane %v1742, 5
      %v1745 = vsel %vm1529, %v1740, %v1744
      %v1747 = vshrl.u32 %v1499, 16
      %v1749 = vrot.slane %v1747, 4
      %v1750 = vshll.u32 %v1499, 16
      %v1752 = vrot.slane %v1750, 5
      %v1753 = vor.u32 %v1749, %v1752
      %v1754 = vrot.slane %v1753, 4
      %v1756 = vshll.u32 %v1500, 16
      %v1758 = vrot.slane %v1756, 5
      %v1759 = vsel %vm1529, %v1754, %v1758
      %v1760 = vshrl.u32 %v1500, 16
      %v1762 = vrot.slane %v1760, 4
      %v1763 = vor.u32 %v1762, %v1758
      %v1764 = vrot.slane %v1763, 4
      %v1766 = vshll.u32 %v1501, 16
      %v1768 = vrot.slane %v1766, 5
      %v1769 = vsel %vm1529, %v1764, %v1768
      %v1771 = vshrl.u32 %v1502, 16
      %v1773 = vrot.slane %v1771, 4
      %v1774 = vshll.u32 %v1502, 16
      %v1776 = vrot.slane %v1774, 5
      %v1777 = vor.u32 %v1773, %v1776
      %v1778 = vrot.slane %v1777, 4
      %v1780 = vshll.u32 %v1503, 16
      %v1782 = vrot.slane %v1780, 5
      %v1783 = vsel %vm1529, %v1778, %v1782
      %v1784 = vshrl.u32 %v1503, 16
      %v1786 = vrot.slane %v1784, 4
      %v1787 = vor.u32 %v1786, %v1782
      %v1788 = vrot.slane %v1787, 4
      %v1790 = vshll.u32 %v1504, 16
      %v1792 = vrot.slane %v1790, 5
      %v1793 = vsel %vm1529, %v1788, %v1792
      %v1795 = vshrl.u32 %v1505, 16
      %v1797 = vrot.slane %v1795, 4
      %v1798 = vshll.u32 %v1505, 16
      %v1800 = vrot.slane %v1798, 5
      %v1801 = vor.u32 %v1797, %v1800
      %v1802 = vrot.slane %v1801, 4
      %v1804 = vshll.u32 %v1506, 16
      %v1806 = vrot.slane %v1804, 5
      %v1807 = vsel %vm1529, %v1802, %v1806
      %v1808 = vshrl.u32 %v1506, 16
      %v1810 = vrot.slane %v1808, 4
      %v1811 = vor.u32 %v1810, %v1806
      %v1812 = vrot.slane %v1811, 4
      %v1814 = vshll.u32 %v1507, 16
      %v1816 = vrot.slane %v1814, 5
      %v1817 = vsel %vm1529, %v1812, %v1816
      %v1819 = vshrl.u32 %v1508, 16
      %v1821 = vrot.slane %v1819, 4
      %v1822 = vshll.u32 %v1508, 16
      %v1824 = vrot.slane %v1822, 5
      %v1825 = vor.u32 %v1821, %v1824
      %v1826 = vrot.slane %v1825, 4
      %v1828 = vshll.u32 %v1509, 16
      %v1830 = vrot.slane %v1828, 5
      %v1831 = vsel %vm1529, %v1826, %v1830
      %v1832 = vshrl.u32 %v1509, 16
      %v1834 = vrot.slane %v1832, 4
      %v1835 = vor.u32 %v1834, %v1830
      %v1836 = vrot.slane %v1835, 4
      %v1838 = vshll.u32 %v1510, 16
      %v1840 = vrot.slane %v1838, 5
      %v1841 = vsel %vm1529, %v1836, %v1840
      %v1843 = vshrl.u32 %v1511, 16
      %v1845 = vrot.slane %v1843, 4
      %v1846 = vshll.u32 %v1511, 16
      %v1848 = vrot.slane %v1846, 5
      %v1849 = vor.u32 %v1845, %v1848
      %v1850 = vrot.slane %v1849, 4
      %v1852 = vshll.u32 %v1512, 16
      %v1854 = vrot.slane %v1852, 5
      %v1855 = vsel %vm1529, %v1850, %v1854
      %v1856 = vshrl.u32 %v1512, 16
      %v1858 = vrot.slane %v1856, 4
      %v1859 = vor.u32 %v1858, %v1854
      %v1860 = vrot.slane %v1859, 4
      %v1862 = vshll.u32 %v1513, 16
      %v1864 = vrot.slane %v1862, 5
      %v1865 = vsel %vm1529, %v1860, %v1864
      %v1867 = vshrl.u32 %v1514, 16
      %v1869 = vrot.slane %v1867, 4
      %v1870 = vshll.u32 %v1514, 16
      %v1872 = vrot.slane %v1870, 5
      %v1873 = vor.u32 %v1869, %v1872
      %v1874 = vrot.slane %v1873, 4
      %v1876 = vshll.u32 %v1515, 16
      %v1878 = vrot.slane %v1876, 5
      %v1879 = vsel %vm1529, %v1874, %v1878
      %v1880 = vshrl.u32 %v1515, 16
      %v1882 = vrot.slane %v1880, 4
      %v1883 = vor.u32 %v1882, %v1878
      %v1884 = vrot.slane %v1883, 4
      %v1886 = vshll.u32 %v1516, 16
      %v1888 = vrot.slane %v1886, 5
      %v1889 = vsel %vm1529, %v1884, %v1888
      %v1891 = vshrl.u32 %v1517, 16
      %v1893 = vrot.slane %v1891, 4
      %v1894 = vshll.u32 %v1517, 16
      %v1896 = vrot.slane %v1894, 5
      %v1897 = vor.u32 %v1893, %v1896
      %v1898 = vrot.slane %v1897, 4
      %v1900 = vshll.u32 %v1518, 16
      %v1902 = vrot.slane %v1900, 5
      %v1903 = vsel %vm1529, %v1898, %v1902
      %v1904 = vshrl.u32 %v1518, 16
      %v1906 = vrot.slane %v1904, 4
      %v1907 = vor.u32 %v1906, %v1902
      %v1908 = vrot.slane %v1907, 4
      %v1910 = vshll.u32 %v1519, 16
      %v1912 = vrot.slane %v1910, 5
      %v1913 = vsel %vm1529, %v1908, %v1912
      %s1914 = scalar_lea.vmem %s4, 2
      %v1915 = vld [vmem:[%s1914] sm:$0x3]
      %v1916 = vunpack.c.l.b16 %v1543
      %v1917 = vunpack.c.l.b16 %v1553
      %v1918 = vunpack.c.l.b16 %v1567
      %v1919 = vunpack.c.l.b16 %v1577
      %v1920 = vunpack.c.l.b16 %v1591
      %v1921 = vunpack.c.l.b16 %v1601
      %v1922 = vunpack.c.l.b16 %v1615
      %v1923 = vunpack.c.l.b16 %v1625
      %v1924 = vunpack.c.l.b16 %v1639
      %v1925 = vunpack.c.l.b16 %v1649
      %v1926 = vunpack.c.l.b16 %v1663
      %v1927 = vunpack.c.l.b16 %v1673
      %v1928 = vunpack.c.l.b16 %v1687
      %v1929 = vunpack.c.l.b16 %v1697
      %v1930 = vunpack.c.l.b16 %v1711
      %v1931 = vunpack.c.l.b16 %v1721
      %v1932 = vunpack.c.l.b16 %v1735
      %v1933 = vunpack.c.l.b16 %v1745
      %v1934 = vunpack.c.l.b16 %v1759
      %v1935 = vunpack.c.l.b16 %v1769
      %v1936 = vunpack.c.l.b16 %v1783
      %v1937 = vunpack.c.l.b16 %v1793
      %v1938 = vunpack.c.l.b16 %v1807
      %v1939 = vunpack.c.l.b16 %v1817
      %v1940 = vunpack.c.l.b16 %v1831
      %v1941 = vunpack.c.l.b16 %v1841
      %v1942 = vunpack.c.l.b16 %v1855
      %v1943 = vunpack.c.l.b16 %v1865
      %v1944 = vunpack.c.l.b16 %v1879
      %v1945 = vunpack.c.l.b16 %v1889
      %v1946 = vunpack.c.l.b16 %v1903
      %v1947 = vunpack.c.l.b16 %v1913
      %v1948 = vpack.c.b16 %v1917, %v1916
      %v1949 = vpack.c.b16 %v1919, %v1918
      %v1950 = vpack.c.b16 %v1921, %v1920
      %v1951 = vpack.c.b16 %v1923, %v1922
      %v1952 = vpack.c.b16 %v1925, %v1924
      %v1953 = vpack.c.b16 %v1927, %v1926
      %v1954 = vpack.c.b16 %v1929, %v1928
      %v1955 = vpack.c.b16 %v1931, %v1930
      %v1956 = vpack.c.b16 %v1933, %v1932
      %v1957 = vpack.c.b16 %v1935, %v1934
      %v1958 = vpack.c.b16 %v1937, %v1936
      %v1959 = vpack.c.b16 %v1939, %v1938
      %v1960 = vpack.c.b16 %v1941, %v1940
      %v1961 = vpack.c.b16 %v1943, %v1942
      %v1962 = vpack.c.b16 %v1945, %v1944
      %v1963 = vpack.c.b16 %v1947, %v1946
      %vm1964 = vcmask 31744
      %v1966 = vsel %vm1964, %v1948, 0
      %v1969 = vsel %vm1964, %v1949, 0
      %v1972 = vsel %vm1964, %v1950, 0
      %v1975 = vsel %vm1964, %v1951, 0
      %v1978 = vsel %vm1964, %v1952, 0
      %v1981 = vsel %vm1964, %v1953, 0
      %v1984 = vsel %vm1964, %v1954, 0
      %v1987 = vsel %vm1964, %v1955, 0
      %v1990 = vsel %vm1964, %v1956, 0
      %v1993 = vsel %vm1964, %v1957, 0
      %v1996 = vsel %vm1964, %v1958, 0
      %v1999 = vsel %vm1964, %v1959, 0
      %v2002 = vsel %vm1964, %v1960, 0
      %v2005 = vsel %vm1964, %v1961, 0
      %v2008 = vsel %vm1964, %v1962, 0
      %v2011 = vsel %vm1964, %v1963, 0
      %vm2013 = vcmask 1041408
      %v2015 = vsel %vm2013, %v1915, 0
      %2017 = vmatprep.subr.bf16.mxu0 0
      %2018 = vmatpush1.bf16.msra.mxu0 0
      %2019 = vmatprep.subr.bf16.mxu0 0
      %2020 = vmatpush1.bf16.msra.mxu0 0
      %2021 = vmatprep.subr.bf16.mxu0 0
      %2022 = vmatpush1.bf16.msra.mxu0 0
      %2023 = vmatprep.subr.bf16.mxu0 0
      %2024 = vmatpush1.bf16.msra.mxu0 0
      %2025 = vmatprep.subr.bf16.mxu0 0
      %2026 = vmatpush1.bf16.msra.mxu0 0
      %2027 = vmatprep.subr.bf16.mxu0 0
      %2028 = vmatpush1.bf16.msra.mxu0 0
      %2029 = vmatprep.subr.bf16.mxu0 0
      %2030 = vmatpush1.bf16.msra.mxu0 0
      %2031 = vmatprep.subr.bf16.mxu0 0
      %2032 = vmatpush1.bf16.msra.mxu0 %v2015
      %2033 = vmatprep.subr.bf16.mxu0 0
      %2034 = vmatpush2.bf16.msra.mxu0 0
      %2035 = vmatprep.subr.bf16.mxu0 0
      %2036 = vmatpush2.bf16.msra.mxu0 0
      %2037 = vmatprep.subr.bf16.mxu0 0
      %2038 = vmatpush2.bf16.msra.mxu0 0
      %2039 = vmatprep.subr.bf16.mxu0 0
      %2040 = vmatpush2.bf16.msra.mxu0 0
      %2041 = vmatprep.subr.bf16.mxu0 0
      %2042 = vmatpush2.bf16.msra.mxu0 0
      %2043 = vmatprep.subr.bf16.mxu0 0
      %2044 = vmatpush2.bf16.msra.mxu0 0
      %2045 = vmatprep.subr.bf16.mxu0 0
      %2046 = vmatpush2.bf16.msra.mxu0 0
      %2047 = vmatprep.subr.bf16.mxu0 0
      %2048 = vmatpush2.bf16.msra.mxu0 0
      %2049 = vmatprep.mubr.bf16.mxu0 0
      %2050 = vmatmul.mubr.bf16.gmra.mxu0 %v1966
      %v2051 = vpop.f32.mrf.mxu0
      %v2052 = vadd.f32 0.0, %v2051
      %v2053 = vpop.f32.mrf.mxu0
      %v2054 = vpop.f32.mrf.mxu0
      %v2055 = vadd.f32 0.0, %v2054
      %v2056 = vpop.f32.mrf.mxu0
      %2057 = vmatprep.mubr.bf16.mxu0 0
      %2058 = vmatmul.mubr.bf16.gmra.mxu0 %v1969
      %v2059 = vpop.f32.mrf.mxu0
      %v2060 = vadd.f32 0.0, %v2059
      %v2061 = vpop.f32.mrf.mxu0
      %v2062 = vpop.f32.mrf.mxu0
      %v2063 = vadd.f32 0.0, %v2062
      %v2064 = vpop.f32.mrf.mxu0
      %2065 = vmatprep.mubr.bf16.mxu0 0
      %2066 = vmatmul.mubr.bf16.gmra.mxu0 %v1972
      %v2067 = vpop.f32.mrf.mxu0
      %v2068 = vadd.f32 0.0, %v2067
      %v2069 = vpop.f32.mrf.mxu0
      %v2070 = vpop.f32.mrf.mxu0
      %v2071 = vadd.f32 0.0, %v2070
      %v2072 = vpop.f32.mrf.mxu0
      %2073 = vmatprep.mubr.bf16.mxu0 0
      %2074 = vmatmul.mubr.bf16.gmra.mxu0 %v1975
      %v2075 = vpop.f32.mrf.mxu0
      %v2076 = vadd.f32 0.0, %v2075
      %v2077 = vpop.f32.mrf.mxu0
      %v2078 = vpop.f32.mrf.mxu0
      %v2079 = vadd.f32 0.0, %v2078
      %v2080 = vpop.f32.mrf.mxu0
      %2081 = vmatprep.mubr.bf16.mxu0 0
      %2082 = vmatmul.mubr.bf16.gmra.mxu0 %v1978
      %v2083 = vpop.f32.mrf.mxu0
      %v2084 = vadd.f32 0.0, %v2083
      %v2085 = vpop.f32.mrf.mxu0
      %v2086 = vpop.f32.mrf.mxu0
      %v2087 = vadd.f32 0.0, %v2086
      %v2088 = vpop.f32.mrf.mxu0
      %2089 = vmatprep.mubr.bf16.mxu0 0
      %2090 = vmatmul.mubr.bf16.gmra.mxu0 %v1981
      %v2091 = vpop.f32.mrf.mxu0
      %v2092 = vadd.f32 0.0, %v2091
      %v2093 = vpop.f32.mrf.mxu0
      %v2094 = vpop.f32.mrf.mxu0
      %v2095 = vadd.f32 0.0, %v2094
      %v2096 = vpop.f32.mrf.mxu0
      %2097 = vmatprep.mubr.bf16.mxu0 0
      %2098 = vmatmul.mubr.bf16.gmra.mxu0 %v1984
      %v2099 = vpop.f32.mrf.mxu0
      %v2100 = vadd.f32 0.0, %v2099
      %v2101 = vpop.f32.mrf.mxu0
      %v2102 = vpop.f32.mrf.mxu0
      %v2103 = vadd.f32 0.0, %v2102
      %v2104 = vpop.f32.mrf.mxu0
      %2105 = vmatprep.mubr.bf16.mxu0 0
      %2106 = vmatmul.mubr.bf16.gmra.mxu0 %v1987
      %v2107 = vpop.f32.mrf.mxu0
      %v2108 = vadd.f32 0.0, %v2107
      %v2109 = vpop.f32.mrf.mxu0
      %v2110 = vpop.f32.mrf.mxu0
      %v2111 = vadd.f32 0.0, %v2110
      %v2112 = vpop.f32.mrf.mxu0
      %2113 = vmatprep.mubr.bf16.mxu0 0
      %2114 = vmatmul.mubr.bf16.gmra.mxu0 %v1990
      %v2115 = vpop.f32.mrf.mxu0
      %v2116 = vadd.f32 0.0, %v2115
      %v2117 = vpop.f32.mrf.mxu0
      %v2118 = vpop.f32.mrf.mxu0
      %v2119 = vadd.f32 0.0, %v2118
      %v2120 = vpop.f32.mrf.mxu0
      %2121 = vmatprep.mubr.bf16.mxu0 0
      %2122 = vmatmul.mubr.bf16.gmra.mxu0 %v1993
      %v2123 = vpop.f32.mrf.mxu0
      %v2124 = vadd.f32 0.0, %v2123
      %v2125 = vpop.f32.mrf.mxu0
      %v2126 = vpop.f32.mrf.mxu0
      %v2127 = vadd.f32 0.0, %v2126
      %v2128 = vpop.f32.mrf.mxu0
      %2129 = vmatprep.mubr.bf16.mxu0 0
      %2130 = vmatmul.mubr.bf16.gmra.mxu0 %v1996
      %v2131 = vpop.f32.mrf.mxu0
      %v2132 = vadd.f32 0.0, %v2131
      %v2133 = vpop.f32.mrf.mxu0
      %v2134 = vpop.f32.mrf.mxu0
      %v2135 = vadd.f32 0.0, %v2134
      %v2136 = vpop.f32.mrf.mxu0
      %2137 = vmatprep.mubr.bf16.mxu0 0
      %2138 = vmatmul.mubr.bf16.gmra.mxu0 %v1999
      %v2139 = vpop.f32.mrf.mxu0
      %v2140 = vadd.f32 0.0, %v2139
      %v2141 = vpop.f32.mrf.mxu0
      %v2142 = vpop.f32.mrf.mxu0
      %v2143 = vadd.f32 0.0, %v2142
      %v2144 = vpop.f32.mrf.mxu0
      %2145 = vmatprep.mubr.bf16.mxu0 0
      %2146 = vmatmul.mubr.bf16.gmra.mxu0 %v2002
      %v2147 = vpop.f32.mrf.mxu0
      %v2148 = vadd.f32 0.0, %v2147
      %v2149 = vpop.f32.mrf.mxu0
      %v2150 = vpop.f32.mrf.mxu0
      %v2151 = vadd.f32 0.0, %v2150
      %v2152 = vpop.f32.mrf.mxu0
      %2153 = vmatprep.mubr.bf16.mxu0 0
      %2154 = vmatmul.mubr.bf16.gmra.mxu0 %v2005
      %v2155 = vpop.f32.mrf.mxu0
      %v2156 = vadd.f32 0.0, %v2155
      %v2157 = vpop.f32.mrf.mxu0
      %v2158 = vpop.f32.mrf.mxu0
      %v2159 = vadd.f32 0.0, %v2158
      %v2160 = vpop.f32.mrf.mxu0
      %2161 = vmatprep.mubr.bf16.mxu0 0
      %2162 = vmatmul.mubr.bf16.gmra.mxu0 %v2008
      %v2163 = vpop.f32.mrf.mxu0
      %v2164 = vadd.f32 0.0, %v2163
      %v2165 = vpop.f32.mrf.mxu0
      %v2166 = vpop.f32.mrf.mxu0
      %v2167 = vadd.f32 0.0, %v2166
      %v2168 = vpop.f32.mrf.mxu0
      %2169 = vmatprep.mubr.bf16.mxu0 0
      %2170 = vmatmul.mubr.bf16.gmra.mxu0 %v2011
      %v2171 = vpop.f32.mrf.mxu0
      %v2172 = vadd.f32 0.0, %v2171
      %v2173 = vpop.f32.mrf.mxu0
      %v2174 = vpop.f32.mrf.mxu0
      %v2175 = vadd.f32 0.0, %v2174
      %v2176 = vpop.f32.mrf.mxu0
      %2177 = vdwg.mxu0
      %v2210 = vunpack.c.l.b16 %v1472
      %v2211 = vunpack.c.l.b16 %v1473
      %v2212 = vunpack.c.l.b16 %v1475
      %v2213 = vunpack.c.l.b16 %v1476
      %v2214 = vunpack.c.l.b16 %v1478
      %v2215 = vunpack.c.l.b16 %v1479
      %v2216 = vunpack.c.l.b16 %v1481
      %v2217 = vunpack.c.l.b16 %v1482
      %v2218 = vunpack.c.l.b16 %v1484
      %v2219 = vunpack.c.l.b16 %v1485
      %v2220 = vunpack.c.l.b16 %v1487
      %v2221 = vunpack.c.l.b16 %v1488
      %v2222 = vunpack.c.l.b16 %v1490
      %v2223 = vunpack.c.l.b16 %v1491
      %v2224 = vunpack.c.l.b16 %v1493
      %v2225 = vunpack.c.l.b16 %v1494
      %v2226 = vunpack.c.l.b16 %v1496
      %v2227 = vunpack.c.l.b16 %v1497
      %v2228 = vunpack.c.l.b16 %v1499
      %v2229 = vunpack.c.l.b16 %v1500
      %v2230 = vunpack.c.l.b16 %v1502
      %v2231 = vunpack.c.l.b16 %v1503
      %v2232 = vunpack.c.l.b16 %v1505
      %v2233 = vunpack.c.l.b16 %v1506
      %v2234 = vunpack.c.l.b16 %v1508
      %v2235 = vunpack.c.l.b16 %v1509
      %v2236 = vunpack.c.l.b16 %v1511
      %v2237 = vunpack.c.l.b16 %v1512
      %v2238 = vunpack.c.l.b16 %v1514
      %v2239 = vunpack.c.l.b16 %v1515
      %v2240 = vunpack.c.l.b16 %v1517
      %v2241 = vunpack.c.l.b16 %v1518
      %v2242 = vpack.c.b16 %v2211, %v2210
      %v2243 = vpack.c.b16 %v2213, %v2212
      %v2244 = vpack.c.b16 %v2215, %v2214
      %v2245 = vpack.c.b16 %v2217, %v2216
      %v2246 = vpack.c.b16 %v2219, %v2218
      %v2247 = vpack.c.b16 %v2221, %v2220
      %v2248 = vpack.c.b16 %v2223, %v2222
      %v2249 = vpack.c.b16 %v2225, %v2224
      %v2250 = vpack.c.b16 %v2227, %v2226
      %v2251 = vpack.c.b16 %v2229, %v2228
      %v2252 = vpack.c.b16 %v2231, %v2230
      %v2253 = vpack.c.b16 %v2233, %v2232
      %v2254 = vpack.c.b16 %v2235, %v2234
      %v2255 = vpack.c.b16 %v2237, %v2236
      %v2256 = vpack.c.b16 %v2239, %v2238
      %v2257 = vpack.c.b16 %v2241, %v2240
      %v2259 = vsel %vm1964, %v2242, 0
      %v2262 = vsel %vm1964, %v2243, 0
      %v2265 = vsel %vm1964, %v2244, 0
      %v2268 = vsel %vm1964, %v2245, 0
      %v2271 = vsel %vm1964, %v2246, 0
      %v2274 = vsel %vm1964, %v2247, 0
      %v2277 = vsel %vm1964, %v2248, 0
      %v2280 = vsel %vm1964, %v2249, 0
      %v2283 = vsel %vm1964, %v2250, 0
      %v2286 = vsel %vm1964, %v2251, 0
      %v2289 = vsel %vm1964, %v2252, 0
      %v2292 = vsel %vm1964, %v2253, 0
      %v2295 = vsel %vm1964, %v2254, 0
      %v2298 = vsel %vm1964, %v2255, 0
      %v2301 = vsel %vm1964, %v2256, 0
      %v2304 = vsel %vm1964, %v2257, 0
      %v2307 = vsel %vm2013, %v1526, 0
      %2309 = vmatprep.subr.bf16.mxu0 0
      %2310 = vmatpush1.bf16.msra.mxu0 0
      %2311 = vmatprep.subr.bf16.mxu0 0
      %2312 = vmatpush1.bf16.msra.mxu0 0
      %2313 = vmatprep.subr.bf16.mxu0 0
      %2314 = vmatpush1.bf16.msra.mxu0 0
      %2315 = vmatprep.subr.bf16.mxu0 0
      %2316 = vmatpush1.bf16.msra.mxu0 0
      %2317 = vmatprep.subr.bf16.mxu0 0
      %2318 = vmatpush1.bf16.msra.mxu0 0
      %2319 = vmatprep.subr.bf16.mxu0 0
      %2320 = vmatpush1.bf16.msra.mxu0 0
      %2321 = vmatprep.subr.bf16.mxu0 0
      %2322 = vmatpush1.bf16.msra.mxu0 0
      %2323 = vmatprep.subr.bf16.mxu0 0
      %2324 = vmatpush1.bf16.msra.mxu0 %v2307
      %2325 = vmatprep.subr.bf16.mxu0 0
      %2326 = vmatpush2.bf16.msra.mxu0 0
      %2327 = vmatprep.subr.bf16.mxu0 0
      %2328 = vmatpush2.bf16.msra.mxu0 0
      %2329 = vmatprep.subr.bf16.mxu0 0
      %2330 = vmatpush2.bf16.msra.mxu0 0
      %2331 = vmatprep.subr.bf16.mxu0 0
      %2332 = vmatpush2.bf16.msra.mxu0 0
      %2333 = vmatprep.subr.bf16.mxu0 0
      %2334 = vmatpush2.bf16.msra.mxu0 0
      %2335 = vmatprep.subr.bf16.mxu0 0
      %2336 = vmatpush2.bf16.msra.mxu0 0
      %2337 = vmatprep.subr.bf16.mxu0 0
      %2338 = vmatpush2.bf16.msra.mxu0 0
      %2339 = vmatprep.subr.bf16.mxu0 0
      %2340 = vmatpush2.bf16.msra.mxu0 0
      %2341 = vmatprep.mubr.bf16.mxu0 0
      %2342 = vmatmul.mubr.bf16.gmra.mxu0 %v2259
      %v2343 = vpop.f32.mrf.mxu0
      %v2344 = vadd.f32 %v2052, %v2343
      %v2345 = vpop.f32.mrf.mxu0
      %v2346 = vpop.f32.mrf.mxu0
      %v2347 = vadd.f32 %v2055, %v2346
      %v2348 = vpop.f32.mrf.mxu0
      %2349 = vmatprep.mubr.bf16.mxu0 0
      %2350 = vmatmul.mubr.bf16.gmra.mxu0 %v2262
      %v2351 = vpop.f32.mrf.mxu0
      %v2352 = vadd.f32 %v2060, %v2351
      %v2353 = vpop.f32.mrf.mxu0
      %v2354 = vpop.f32.mrf.mxu0
      %v2355 = vadd.f32 %v2063, %v2354
      %v2356 = vpop.f32.mrf.mxu0
      %2357 = vmatprep.mubr.bf16.mxu0 0
      %2358 = vmatmul.mubr.bf16.gmra.mxu0 %v2265
      %v2359 = vpop.f32.mrf.mxu0
      %v2360 = vadd.f32 %v2068, %v2359
      %v2361 = vpop.f32.mrf.mxu0
      %v2362 = vpop.f32.mrf.mxu0
      %v2363 = vadd.f32 %v2071, %v2362
      %v2364 = vpop.f32.mrf.mxu0
      %2365 = vmatprep.mubr.bf16.mxu0 0
      %2366 = vmatmul.mubr.bf16.gmra.mxu0 %v2268
      %v2367 = vpop.f32.mrf.mxu0
      %v2368 = vadd.f32 %v2076, %v2367
      %v2369 = vpop.f32.mrf.mxu0
      %v2370 = vpop.f32.mrf.mxu0
      %v2371 = vadd.f32 %v2079, %v2370
      %v2372 = vpop.f32.mrf.mxu0
      %2373 = vmatprep.mubr.bf16.mxu0 0
      %2374 = vmatmul.mubr.bf16.gmra.mxu0 %v2271
      %v2375 = vpop.f32.mrf.mxu0
      %v2376 = vadd.f32 %v2084, %v2375
      %v2377 = vpop.f32.mrf.mxu0
      %v2378 = vpop.f32.mrf.mxu0
      %v2379 = vadd.f32 %v2087, %v2378
      %v2380 = vpop.f32.mrf.mxu0
      %2381 = vmatprep.mubr.bf16.mxu0 0
      %2382 = vmatmul.mubr.bf16.gmra.mxu0 %v2274
      %v2383 = vpop.f32.mrf.mxu0
      %v2384 = vadd.f32 %v2092, %v2383
      %v2385 = vpop.f32.mrf.mxu0
      %v2386 = vpop.f32.mrf.mxu0
      %v2387 = vadd.f32 %v2095, %v2386
      %v2388 = vpop.f32.mrf.mxu0
      %2389 = vmatprep.mubr.bf16.mxu0 0
      %2390 = vmatmul.mubr.bf16.gmra.mxu0 %v2277
      %v2391 = vpop.f32.mrf.mxu0
      %v2392 = vadd.f32 %v2100, %v2391
      %v2393 = vpop.f32.mrf.mxu0
      %v2394 = vpop.f32.mrf.mxu0
      %v2395 = vadd.f32 %v2103, %v2394
      %v2396 = vpop.f32.mrf.mxu0
      %2397 = vmatprep.mubr.bf16.mxu0 0
      %2398 = vmatmul.mubr.bf16.gmra.mxu0 %v2280
      %v2399 = vpop.f32.mrf.mxu0
      %v2400 = vadd.f32 %v2108, %v2399
      %v2401 = vpop.f32.mrf.mxu0
      %v2402 = vpop.f32.mrf.mxu0
      %v2403 = vadd.f32 %v2111, %v2402
      %v2404 = vpop.f32.mrf.mxu0
      %2405 = vmatprep.mubr.bf16.mxu0 0
      %2406 = vmatmul.mubr.bf16.gmra.mxu0 %v2283
      %v2407 = vpop.f32.mrf.mxu0
      %v2408 = vadd.f32 %v2116, %v2407
      %v2409 = vpop.f32.mrf.mxu0
      %v2410 = vpop.f32.mrf.mxu0
      %v2411 = vadd.f32 %v2119, %v2410
      %v2412 = vpop.f32.mrf.mxu0
      %2413 = vmatprep.mubr.bf16.mxu0 0
      %2414 = vmatmul.mubr.bf16.gmra.mxu0 %v2286
      %v2415 = vpop.f32.mrf.mxu0
      %v2416 = vadd.f32 %v2124, %v2415
      %v2417 = vpop.f32.mrf.mxu0
      %v2418 = vpop.f32.mrf.mxu0
      %v2419 = vadd.f32 %v2127, %v2418
      %v2420 = vpop.f32.mrf.mxu0
      %2421 = vmatprep.mubr.bf16.mxu0 0
      %2422 = vmatmul.mubr.bf16.gmra.mxu0 %v2289
      %v2423 = vpop.f32.mrf.mxu0
      %v2424 = vadd.f32 %v2132, %v2423
      %v2425 = vpop.f32.mrf.mxu0
      %v2426 = vpop.f32.mrf.mxu0
      %v2427 = vadd.f32 %v2135, %v2426
      %v2428 = vpop.f32.mrf.mxu0
      %2429 = vmatprep.mubr.bf16.mxu0 0
      %2430 = vmatmul.mubr.bf16.gmra.mxu0 %v2292
      %v2431 = vpop.f32.mrf.mxu0
      %v2432 = vadd.f32 %v2140, %v2431
      %v2433 = vpop.f32.mrf.mxu0
      %v2434 = vpop.f32.mrf.mxu0
      %v2435 = vadd.f32 %v2143, %v2434
      %v2436 = vpop.f32.mrf.mxu0
      %2437 = vmatprep.mubr.bf16.mxu0 0
      %2438 = vmatmul.mubr.bf16.gmra.mxu0 %v2295
      %v2439 = vpop.f32.mrf.mxu0
      %v2440 = vadd.f32 %v2148, %v2439
      %v2441 = vpop.f32.mrf.mxu0
      %v2442 = vpop.f32.mrf.mxu0
      %v2443 = vadd.f32 %v2151, %v2442
      %v2444 = vpop.f32.mrf.mxu0
      %2445 = vmatprep.mubr.bf16.mxu0 0
      %2446 = vmatmul.mubr.bf16.gmra.mxu0 %v2298
      %v2447 = vpop.f32.mrf.mxu0
      %v2448 = vadd.f32 %v2156, %v2447
      %v2449 = vpop.f32.mrf.mxu0
      %v2450 = vpop.f32.mrf.mxu0
      %v2451 = vadd.f32 %v2159, %v2450
      %v2452 = vpop.f32.mrf.mxu0
      %2453 = vmatprep.mubr.bf16.mxu0 0
      %2454 = vmatmul.mubr.bf16.gmra.mxu0 %v2301
      %v2455 = vpop.f32.mrf.mxu0
      %v2456 = vadd.f32 %v2164, %v2455
      %v2457 = vpop.f32.mrf.mxu0
      %v2458 = vpop.f32.mrf.mxu0
      %v2459 = vadd.f32 %v2167, %v2458
      %v2460 = vpop.f32.mrf.mxu0
      %2461 = vmatprep.mubr.bf16.mxu0 0
      %2462 = vmatmul.mubr.bf16.gmra.mxu0 %v2304
      %v2463 = vpop.f32.mrf.mxu0
      %v2464 = vadd.f32 %v2172, %v2463
      %v2465 = vpop.f32.mrf.mxu0
      %v2466 = vpop.f32.mrf.mxu0
      %v2467 = vadd.f32 %v2175, %v2466
      %v2468 = vpop.f32.mrf.mxu0
      %2469 = vdwg.mxu0
      %vm2486 = vcmask 1042432
      %vm2487 = vcmask 1046532
      %vm2488 = vmor %vm2486, %vm2487
      %v2489 = vrot.slane %v1472, 5
      %v2490 = vrot.slane %v2489, 4
      %v2491 = vrot.slane %v1473, 5
      %v2492 = vsel %vm2488, %v2490, %v2491
      %v2493 = vrot.slane %v2491, 4
      %v2494 = vrot.slane %v1474, 5
      %v2495 = vsel %vm2488, %v2493, %v2494
      %v2496 = vrot.slane %v1475, 5
      %v2497 = vrot.slane %v2496, 4
      %v2498 = vrot.slane %v1476, 5
      %v2499 = vsel %vm2488, %v2497, %v2498
      %v2500 = vrot.slane %v2498, 4
      %v2501 = vrot.slane %v1477, 5
      %v2502 = vsel %vm2488, %v2500, %v2501
      %v2503 = vrot.slane %v1478, 5
      %v2504 = vrot.slane %v2503, 4
      %v2505 = vrot.slane %v1479, 5
      %v2506 = vsel %vm2488, %v2504, %v2505
      %v2507 = vrot.slane %v2505, 4
      %v2508 = vrot.slane %v1480, 5
      %v2509 = vsel %vm2488, %v2507, %v2508
      %v2510 = vrot.slane %v1481, 5
      %v2511 = vrot.slane %v2510, 4
      %v2512 = vrot.slane %v1482, 5
      %v2513 = vsel %vm2488, %v2511, %v2512
      %v2514 = vrot.slane %v2512, 4
      %v2515 = vrot.slane %v1483, 5
      %v2516 = vsel %vm2488, %v2514, %v2515
      %v2517 = vrot.slane %v1484, 5
      %v2518 = vrot.slane %v2517, 4
      %v2519 = vrot.slane %v1485, 5
      %v2520 = vsel %vm2488, %v2518, %v2519
      %v2521 = vrot.slane %v2519, 4
      %v2522 = vrot.slane %v1486, 5
      %v2523 = vsel %vm2488, %v2521, %v2522
      %v2524 = vrot.slane %v1487, 5
      %v2525 = vrot.slane %v2524, 4
      %v2526 = vrot.slane %v1488, 5
      %v2527 = vsel %vm2488, %v2525, %v2526
      %v2528 = vrot.slane %v2526, 4
      %v2529 = vrot.slane %v1489, 5
      %v2530 = vsel %vm2488, %v2528, %v2529
      %v2531 = vrot.slane %v1490, 5
      %v2532 = vrot.slane %v2531, 4
      %v2533 = vrot.slane %v1491, 5
      %v2534 = vsel %vm2488, %v2532, %v2533
      %v2535 = vrot.slane %v2533, 4
      %v2536 = vrot.slane %v1492, 5
      %v2537 = vsel %vm2488, %v2535, %v2536
      %v2538 = vrot.slane %v1493, 5
      %v2539 = vrot.slane %v2538, 4
      %v2540 = vrot.slane %v1494, 5
      %v2541 = vsel %vm2488, %v2539, %v2540
      %v2542 = vrot.slane %v2540, 4
      %v2543 = vrot.slane %v1495, 5
      %v2544 = vsel %vm2488, %v2542, %v2543
      %v2545 = vrot.slane %v1496, 5
      %v2546 = vrot.slane %v2545, 4
      %v2547 = vrot.slane %v1497, 5
      %v2548 = vsel %vm2488, %v2546, %v2547
      %v2549 = vrot.slane %v2547, 4
      %v2550 = vrot.slane %v1498, 5
      %v2551 = vsel %vm2488, %v2549, %v2550
      %v2552 = vrot.slane %v1499, 5
      %v2553 = vrot.slane %v2552, 4
      %v2554 = vrot.slane %v1500, 5
      %v2555 = vsel %vm2488, %v2553, %v2554
      %v2556 = vrot.slane %v2554, 4
      %v2557 = vrot.slane %v1501, 5
      %v2558 = vsel %vm2488, %v2556, %v2557
      %v2559 = vrot.slane %v1502, 5
      %v2560 = vrot.slane %v2559, 4
      %v2561 = vrot.slane %v1503, 5
      %v2562 = vsel %vm2488, %v2560, %v2561
      %v2563 = vrot.slane %v2561, 4
      %v2564 = vrot.slane %v1504, 5
      %v2565 = vsel %vm2488, %v2563, %v2564
      %v2566 = vrot.slane %v1505, 5
      %v2567 = vrot.slane %v2566, 4
      %v2568 = vrot.slane %v1506, 5
      %v2569 = vsel %vm2488, %v2567, %v2568
      %v2570 = vrot.slane %v2568, 4
      %v2571 = vrot.slane %v1507, 5
      %v2572 = vsel %vm2488, %v2570, %v2571
      %v2573 = vrot.slane %v1508, 5
      %v2574 = vrot.slane %v2573, 4
      %v2575 = vrot.slane %v1509, 5
      %v2576 = vsel %vm2488, %v2574, %v2575
      %v2577 = vrot.slane %v2575, 4
      %v2578 = vrot.slane %v1510, 5
      %v2579 = vsel %vm2488, %v2577, %v2578
      %v2580 = vrot.slane %v1511, 5
      %v2581 = vrot.slane %v2580, 4
      %v2582 = vrot.slane %v1512, 5
      %v2583 = vsel %vm2488, %v2581, %v2582
      %v2584 = vrot.slane %v2582, 4
      %v2585 = vrot.slane %v1513, 5
      %v2586 = vsel %vm2488, %v2584, %v2585
      %v2587 = vrot.slane %v1514, 5
      %v2588 = vrot.slane %v2587, 4
      %v2589 = vrot.slane %v1515, 5
      %v2590 = vsel %vm2488, %v2588, %v2589
      %v2591 = vrot.slane %v2589, 4
      %v2592 = vrot.slane %v1516, 5
      %v2593 = vsel %vm2488, %v2591, %v2592
      %v2594 = vrot.slane %v1517, 5
      %v2595 = vrot.slane %v2594, 4
      %v2596 = vrot.slane %v1518, 5
      %v2597 = vsel %vm2488, %v2595, %v2596
      %v2598 = vrot.slane %v2596, 4
      %v2599 = vrot.slane %v1519, 5
      %v2600 = vsel %vm2488, %v2598, %v2599
      %s2601 = scalar_lea.vmem %s4, 4
      %v2602 = vld [vmem:[%s2601] sm:$0x3]
      %v2603 = vunpack.c.l.b16 %v2492
      %v2604 = vunpack.c.l.b16 %v2495
      %v2605 = vunpack.c.l.b16 %v2499
      %v2606 = vunpack.c.l.b16 %v2502
      %v2607 = vunpack.c.l.b16 %v2506
      %v2608 = vunpack.c.l.b16 %v2509
      %v2609 = vunpack.c.l.b16 %v2513
      %v2610 = vunpack.c.l.b16 %v2516
      %v2611 = vunpack.c.l.b16 %v2520
      %v2612 = vunpack.c.l.b16 %v2523
      %v2613 = vunpack.c.l.b16 %v2527
      %v2614 = vunpack.c.l.b16 %v2530
      %v2615 = vunpack.c.l.b16 %v2534
      %v2616 = vunpack.c.l.b16 %v2537
      %v2617 = vunpack.c.l.b16 %v2541
      %v2618 = vunpack.c.l.b16 %v2544
      %v2619 = vunpack.c.l.b16 %v2548
      %v2620 = vunpack.c.l.b16 %v2551
      %v2621 = vunpack.c.l.b16 %v2555
      %v2622 = vunpack.c.l.b16 %v2558
      %v2623 = vunpack.c.l.b16 %v2562
      %v2624 = vunpack.c.l.b16 %v2565
      %v2625 = vunpack.c.l.b16 %v2569
      %v2626 = vunpack.c.l.b16 %v2572
      %v2627 = vunpack.c.l.b16 %v2576
      %v2628 = vunpack.c.l.b16 %v2579
      %v2629 = vunpack.c.l.b16 %v2583
      %v2630 = vunpack.c.l.b16 %v2586
      %v2631 = vunpack.c.l.b16 %v2590
      %v2632 = vunpack.c.l.b16 %v2593
      %v2633 = vunpack.c.l.b16 %v2597
      %v2634 = vunpack.c.l.b16 %v2600
      %v2635 = vpack.c.b16 %v2604, %v2603
      %v2636 = vpack.c.b16 %v2606, %v2605
      %v2637 = vpack.c.b16 %v2608, %v2607
      %v2638 = vpack.c.b16 %v2610, %v2609
      %v2639 = vpack.c.b16 %v2612, %v2611
      %v2640 = vpack.c.b16 %v2614, %v2613
      %v2641 = vpack.c.b16 %v2616, %v2615
      %v2642 = vpack.c.b16 %v2618, %v2617
      %v2643 = vpack.c.b16 %v2620, %v2619
      %v2644 = vpack.c.b16 %v2622, %v2621
      %v2645 = vpack.c.b16 %v2624, %v2623
      %v2646 = vpack.c.b16 %v2626, %v2625
      %v2647 = vpack.c.b16 %v2628, %v2627
      %v2648 = vpack.c.b16 %v2630, %v2629
      %v2649 = vpack.c.b16 %v2632, %v2631
      %v2650 = vpack.c.b16 %v2634, %v2633
      %v2652 = vsel %vm1964, %v2635, 0
      %v2655 = vsel %vm1964, %v2636, 0
      %v2658 = vsel %vm1964, %v2637, 0
      %v2661 = vsel %vm1964, %v2638, 0
      %v2664 = vsel %vm1964, %v2639, 0
      %v2667 = vsel %vm1964, %v2640, 0
      %v2670 = vsel %vm1964, %v2641, 0
      %v2673 = vsel %vm1964, %v2642, 0
      %v2676 = vsel %vm1964, %v2643, 0
      %v2679 = vsel %vm1964, %v2644, 0
      %v2682 = vsel %vm1964, %v2645, 0
      %v2685 = vsel %vm1964, %v2646, 0
      %v2688 = vsel %vm1964, %v2647, 0
      %v2691 = vsel %vm1964, %v2648, 0
      %v2694 = vsel %vm1964, %v2649, 0
      %v2697 = vsel %vm1964, %v2650, 0
      %v2700 = vsel %vm2013, %v2602, 0
      %2702 = vmatprep.subr.bf16.mxu0 0
      %2703 = vmatpush1.bf16.msra.mxu0 0
      %2704 = vmatprep.subr.bf16.mxu0 0
      %2705 = vmatpush1.bf16.msra.mxu0 0
      %2706 = vmatprep.subr.bf16.mxu0 0
      %2707 = vmatpush1.bf16.msra.mxu0 0
      %2708 = vmatprep.subr.bf16.mxu0 0
      %2709 = vmatpush1.bf16.msra.mxu0 0
      %2710 = vmatprep.subr.bf16.mxu0 0
      %2711 = vmatpush1.bf16.msra.mxu0 0
      %2712 = vmatprep.subr.bf16.mxu0 0
      %2713 = vmatpush1.bf16.msra.mxu0 0
      %2714 = vmatprep.subr.bf16.mxu0 0
      %2715 = vmatpush1.bf16.msra.mxu0 0
      %2716 = vmatprep.subr.bf16.mxu0 0
      %2717 = vmatpush1.bf16.msra.mxu0 %v2700
      %2718 = vmatprep.subr.bf16.mxu0 0
      %2719 = vmatpush2.bf16.msra.mxu0 0
      %2720 = vmatprep.subr.bf16.mxu0 0
      %2721 = vmatpush2.bf16.msra.mxu0 0
      %2722 = vmatprep.subr.bf16.mxu0 0
      %2723 = vmatpush2.bf16.msra.mxu0 0
      %2724 = vmatprep.subr.bf16.mxu0 0
      %2725 = vmatpush2.bf16.msra.mxu0 0
      %2726 = vmatprep.subr.bf16.mxu0 0
      %2727 = vmatpush2.bf16.msra.mxu0 0
      %2728 = vmatprep.subr.bf16.mxu0 0
      %2729 = vmatpush2.bf16.msra.mxu0 0
      %2730 = vmatprep.subr.bf16.mxu0 0
      %2731 = vmatpush2.bf16.msra.mxu0 0
      %2732 = vmatprep.subr.bf16.mxu0 0
      %2733 = vmatpush2.bf16.msra.mxu0 0
      %2734 = vmatprep.mubr.bf16.mxu0 0
      %2735 = vmatmul.mubr.bf16.gmra.mxu0 %v2652
      %v2736 = vpop.f32.mrf.mxu0
      %v2737 = vadd.f32 0.0, %v2736
      %v2738 = vpop.f32.mrf.mxu0
      %v2739 = vpop.f32.mrf.mxu0
      %v2740 = vadd.f32 0.0, %v2739
      %v2741 = vpop.f32.mrf.mxu0
      %2742 = vmatprep.mubr.bf16.mxu0 0
      %2743 = vmatmul.mubr.bf16.gmra.mxu0 %v2655
      %v2744 = vpop.f32.mrf.mxu0
      %v2745 = vadd.f32 0.0, %v2744
      %v2746 = vpop.f32.mrf.mxu0
      %v2747 = vpop.f32.mrf.mxu0
      %v2748 = vadd.f32 0.0, %v2747
      %v2749 = vpop.f32.mrf.mxu0
      %2750 = vmatprep.mubr.bf16.mxu0 0
      %2751 = vmatmul.mubr.bf16.gmra.mxu0 %v2658
      %v2752 = vpop.f32.mrf.mxu0
      %v2753 = vadd.f32 0.0, %v2752
      %v2754 = vpop.f32.mrf.mxu0
      %v2755 = vpop.f32.mrf.mxu0
      %v2756 = vadd.f32 0.0, %v2755
      %v2757 = vpop.f32.mrf.mxu0
      %2758 = vmatprep.mubr.bf16.mxu0 0
      %2759 = vmatmul.mubr.bf16.gmra.mxu0 %v2661
      %v2760 = vpop.f32.mrf.mxu0
      %v2761 = vadd.f32 0.0, %v2760
      %v2762 = vpop.f32.mrf.mxu0
      %v2763 = vpop.f32.mrf.mxu0
      %v2764 = vadd.f32 0.0, %v2763
      %v2765 = vpop.f32.mrf.mxu0
      %2766 = vmatprep.mubr.bf16.mxu0 0
      %2767 = vmatmul.mubr.bf16.gmra.mxu0 %v2664
      %v2768 = vpop.f32.mrf.mxu0
      %v2769 = vadd.f32 0.0, %v2768
      %v2770 = vpop.f32.mrf.mxu0
      %v2771 = vpop.f32.mrf.mxu0
      %v2772 = vadd.f32 0.0, %v2771
      %v2773 = vpop.f32.mrf.mxu0
      %2774 = vmatprep.mubr.bf16.mxu0 0
      %2775 = vmatmul.mubr.bf16.gmra.mxu0 %v2667
      %v2776 = vpop.f32.mrf.mxu0
      %v2777 = vadd.f32 0.0, %v2776
      %v2778 = vpop.f32.mrf.mxu0
      %v2779 = vpop.f32.mrf.mxu0
      %v2780 = vadd.f32 0.0, %v2779
      %v2781 = vpop.f32.mrf.mxu0
      %2782 = vmatprep.mubr.bf16.mxu0 0
      %2783 = vmatmul.mubr.bf16.gmra.mxu0 %v2670
      %v2784 = vpop.f32.mrf.mxu0
      %v2785 = vadd.f32 0.0, %v2784
      %v2786 = vpop.f32.mrf.mxu0
      %v2787 = vpop.f32.mrf.mxu0
      %v2788 = vadd.f32 0.0, %v2787
      %v2789 = vpop.f32.mrf.mxu0
      %2790 = vmatprep.mubr.bf16.mxu0 0
      %2791 = vmatmul.mubr.bf16.gmra.mxu0 %v2673
      %v2792 = vpop.f32.mrf.mxu0
      %v2793 = vadd.f32 0.0, %v2792
      %v2794 = vpop.f32.mrf.mxu0
      %v2795 = vpop.f32.mrf.mxu0
      %v2796 = vadd.f32 0.0, %v2795
      %v2797 = vpop.f32.mrf.mxu0
      %2798 = vmatprep.mubr.bf16.mxu0 0
      %2799 = vmatmul.mubr.bf16.gmra.mxu0 %v2676
      %v2800 = vpop.f32.mrf.mxu0
      %v2801 = vadd.f32 0.0, %v2800
      %v2802 = vpop.f32.mrf.mxu0
      %v2803 = vpop.f32.mrf.mxu0
      %v2804 = vadd.f32 0.0, %v2803
      %v2805 = vpop.f32.mrf.mxu0
      %2806 = vmatprep.mubr.bf16.mxu0 0
      %2807 = vmatmul.mubr.bf16.gmra.mxu0 %v2679
      %v2808 = vpop.f32.mrf.mxu0
      %v2809 = vadd.f32 0.0, %v2808
      %v2810 = vpop.f32.mrf.mxu0
      %v2811 = vpop.f32.mrf.mxu0
      %v2812 = vadd.f32 0.0, %v2811
      %v2813 = vpop.f32.mrf.mxu0
      %2814 = vmatprep.mubr.bf16.mxu0 0
      %2815 = vmatmul.mubr.bf16.gmra.mxu0 %v2682
      %v2816 = vpop.f32.mrf.mxu0
      %v2817 = vadd.f32 0.0, %v2816
      %v2818 = vpop.f32.mrf.mxu0
      %v2819 = vpop.f32.mrf.mxu0
      %v2820 = vadd.f32 0.0, %v2819
      %v2821 = vpop.f32.mrf.mxu0
      %2822 = vmatprep.mubr.bf16.mxu0 0
      %2823 = vmatmul.mubr.bf16.gmra.mxu0 %v2685
      %v2824 = vpop.f32.mrf.mxu0
      %v2825 = vadd.f32 0.0, %v2824
      %v2826 = vpop.f32.mrf.mxu0
      %v2827 = vpop.f32.mrf.mxu0
      %v2828 = vadd.f32 0.0, %v2827
      %v2829 = vpop.f32.mrf.mxu0
      %2830 = vmatprep.mubr.bf16.mxu0 0
      %2831 = vmatmul.mubr.bf16.gmra.mxu0 %v2688
      %v2832 = vpop.f32.mrf.mxu0
      %v2833 = vadd.f32 0.0, %v2832
      %v2834 = vpop.f32.mrf.mxu0
      %v2835 = vpop.f32.mrf.mxu0
      %v2836 = vadd.f32 0.0, %v2835
      %v2837 = vpop.f32.mrf.mxu0
      %2838 = vmatprep.mubr.bf16.mxu0 0
      %2839 = vmatmul.mubr.bf16.gmra.mxu0 %v2691
      %v2840 = vpop.f32.mrf.mxu0
      %v2841 = vadd.f32 0.0, %v2840
      %v2842 = vpop.f32.mrf.mxu0
      %v2843 = vpop.f32.mrf.mxu0
      %v2844 = vadd.f32 0.0, %v2843
      %v2845 = vpop.f32.mrf.mxu0
      %2846 = vmatprep.mubr.bf16.mxu0 0
      %2847 = vmatmul.mubr.bf16.gmra.mxu0 %v2694
      %v2848 = vpop.f32.mrf.mxu0
      %v2849 = vadd.f32 0.0, %v2848
      %v2850 = vpop.f32.mrf.mxu0
      %v2851 = vpop.f32.mrf.mxu0
      %v2852 = vadd.f32 0.0, %v2851
      %v2853 = vpop.f32.mrf.mxu0
      %2854 = vmatprep.mubr.bf16.mxu0 0
      %2855 = vmatmul.mubr.bf16.gmra.mxu0 %v2697
      %v2856 = vpop.f32.mrf.mxu0
      %v2857 = vadd.f32 0.0, %v2856
      %v2858 = vpop.f32.mrf.mxu0
      %v2859 = vpop.f32.mrf.mxu0
      %v2860 = vadd.f32 0.0, %v2859
      %v2861 = vpop.f32.mrf.mxu0
      %2862 = vdwg.mxu0
      %v2863 = vadd.f32 %v2344, %v2737
      %v2864 = vadd.f32 %v2347, %v2740
      %v2865 = vadd.f32 %v2352, %v2745
      %v2866 = vadd.f32 %v2355, %v2748
      %v2867 = vadd.f32 %v2360, %v2753
      %v2868 = vadd.f32 %v2363, %v2756
      %v2869 = vadd.f32 %v2368, %v2761
      %v2870 = vadd.f32 %v2371, %v2764
      %v2871 = vadd.f32 %v2376, %v2769
      %v2872 = vadd.f32 %v2379, %v2772
      %v2873 = vadd.f32 %v2384, %v2777
      %v2874 = vadd.f32 %v2387, %v2780
      %v2875 = vadd.f32 %v2392, %v2785
      %v2876 = vadd.f32 %v2395, %v2788
      %v2877 = vadd.f32 %v2400, %v2793
      %v2878 = vadd.f32 %v2403, %v2796
      %v2879 = vadd.f32 %v2408, %v2801
      %v2880 = vadd.f32 %v2411, %v2804
      %v2881 = vadd.f32 %v2416, %v2809
      %v2882 = vadd.f32 %v2419, %v2812
      %v2883 = vadd.f32 %v2424, %v2817
      %v2884 = vadd.f32 %v2427, %v2820
      %v2885 = vadd.f32 %v2432, %v2825
      %v2886 = vadd.f32 %v2435, %v2828
      %v2887 = vadd.f32 %v2440, %v2833
      %v2888 = vadd.f32 %v2443, %v2836
      %v2889 = vadd.f32 %v2448, %v2841
      %v2890 = vadd.f32 %v2451, %v2844
      %v2891 = vadd.f32 %v2456, %v2849
      %v2892 = vadd.f32 %v2459, %v2852
      %v2893 = vadd.f32 %v2464, %v2857
      %v2894 = vadd.f32 %v2467, %v2860
      %s2895 = scalar_lea.vmem %s4, 6
      %v2896 = vld [vmem:[%s2895] sm:$0x3]
      %v2899 = vunpack.c.l.b16 %v1520
      %v2900 = vunpack.c.l.b16 %v1521
      %v2901 = vpack.c.b16 %v2900, %v2899
      %v2903 = vsel %vm1964, %v2901, 0
      %v2906 = vsel %vm2013, %v2896, 0
      %2908 = vmatprep.subr.bf16.mxu0 0
      %2909 = vmatpush1.bf16.msra.mxu0 0
      %2910 = vmatprep.subr.bf16.mxu0 0
      %2911 = vmatpush1.bf16.msra.mxu0 0
      %2912 = vmatprep.subr.bf16.mxu0 0
      %2913 = vmatpush1.bf16.msra.mxu0 0
      %2914 = vmatprep.subr.bf16.mxu0 0
      %2915 = vmatpush1.bf16.msra.mxu0 0
      %2916 = vmatprep.subr.bf16.mxu0 0
      %2917 = vmatpush1.bf16.msra.mxu0 0
      %2918 = vmatprep.subr.bf16.mxu0 0
      %2919 = vmatpush1.bf16.msra.mxu0 0
      %2920 = vmatprep.subr.bf16.mxu0 0
      %2921 = vmatpush1.bf16.msra.mxu0 0
      %2922 = vmatprep.subr.bf16.mxu0 0
      %2923 = vmatpush1.bf16.msra.mxu0 %v2906
      %2924 = vmatprep.subr.bf16.mxu0 0
      %2925 = vmatpush2.bf16.msra.mxu0 0
      %2926 = vmatprep.subr.bf16.mxu0 0
      %2927 = vmatpush2.bf16.msra.mxu0 0
      %2928 = vmatprep.subr.bf16.mxu0 0
      %2929 = vmatpush2.bf16.msra.mxu0 0
      %2930 = vmatprep.subr.bf16.mxu0 0
      %2931 = vmatpush2.bf16.msra.mxu0 0
      %2932 = vmatprep.subr.bf16.mxu0 0
      %2933 = vmatpush2.bf16.msra.mxu0 0
      %2934 = vmatprep.subr.bf16.mxu0 0
      %2935 = vmatpush2.bf16.msra.mxu0 0
      %2936 = vmatprep.subr.bf16.mxu0 0
      %2937 = vmatpush2.bf16.msra.mxu0 0
      %2938 = vmatprep.subr.bf16.mxu0 0
      %2939 = vmatpush2.bf16.msra.mxu0 0
      %2940 = vmatprep.mubr.bf16.mxu0 0
      %2941 = vmatmul.mubr.bf16.gmra.mxu0 %v2262
      %v2942 = vpop.f32.mrf.mxu0
      %v2943 = vadd.f32 0.0, %v2942
      %v2944 = vpop.f32.mrf.mxu0
      %v2945 = vpop.f32.mrf.mxu0
      %v2946 = vadd.f32 0.0, %v2945
      %v2947 = vpop.f32.mrf.mxu0
      %2948 = vmatprep.mubr.bf16.mxu0 0
      %2949 = vmatmul.mubr.bf16.gmra.mxu0 %v2265
      %v2950 = vpop.f32.mrf.mxu0
      %v2951 = vadd.f32 0.0, %v2950
      %v2952 = vpop.f32.mrf.mxu0
      %v2953 = vpop.f32.mrf.mxu0
      %v2954 = vadd.f32 0.0, %v2953
      %v2955 = vpop.f32.mrf.mxu0
      %2956 = vmatprep.mubr.bf16.mxu0 0
      %2957 = vmatmul.mubr.bf16.gmra.mxu0 %v2268
      %v2958 = vpop.f32.mrf.mxu0
      %v2959 = vadd.f32 0.0, %v2958
      %v2960 = vpop.f32.mrf.mxu0
      %v2961 = vpop.f32.mrf.mxu0
      %v2962 = vadd.f32 0.0, %v2961
      %v2963 = vpop.f32.mrf.mxu0
      %2964 = vmatprep.mubr.bf16.mxu0 0
      %2965 = vmatmul.mubr.bf16.gmra.mxu0 %v2271
      %v2966 = vpop.f32.mrf.mxu0
      %v2967 = vadd.f32 0.0, %v2966
      %v2968 = vpop.f32.mrf.mxu0
      %v2969 = vpop.f32.mrf.mxu0
      %v2970 = vadd.f32 0.0, %v2969
      %v2971 = vpop.f32.mrf.mxu0
      %2972 = vmatprep.mubr.bf16.mxu0 0
      %2973 = vmatmul.mubr.bf16.gmra.mxu0 %v2274
      %v2974 = vpop.f32.mrf.mxu0
      %v2975 = vadd.f32 0.0, %v2974
      %v2976 = vpop.f32.mrf.mxu0
      %v2977 = vpop.f32.mrf.mxu0
      %v2978 = vadd.f32 0.0, %v2977
      %v2979 = vpop.f32.mrf.mxu0
      %2980 = vmatprep.mubr.bf16.mxu0 0
      %2981 = vmatmul.mubr.bf16.gmra.mxu0 %v2277
      %v2982 = vpop.f32.mrf.mxu0
      %v2983 = vadd.f32 0.0, %v2982
      %v2984 = vpop.f32.mrf.mxu0
      %v2985 = vpop.f32.mrf.mxu0
      %v2986 = vadd.f32 0.0, %v2985
      %v2987 = vpop.f32.mrf.mxu0
      %2988 = vmatprep.mubr.bf16.mxu0 0
      %2989 = vmatmul.mubr.bf16.gmra.mxu0 %v2280
      %v2990 = vpop.f32.mrf.mxu0
      %v2991 = vadd.f32 0.0, %v2990
      %v2992 = vpop.f32.mrf.mxu0
      %v2993 = vpop.f32.mrf.mxu0
      %v2994 = vadd.f32 0.0, %v2993
      %v2995 = vpop.f32.mrf.mxu0
      %2996 = vmatprep.mubr.bf16.mxu0 0
      %2997 = vmatmul.mubr.bf16.gmra.mxu0 %v2283
      %v2998 = vpop.f32.mrf.mxu0
      %v2999 = vadd.f32 0.0, %v2998
      %v3000 = vpop.f32.mrf.mxu0
      %v3001 = vpop.f32.mrf.mxu0
      %v3002 = vadd.f32 0.0, %v3001
      %v3003 = vpop.f32.mrf.mxu0
      %3004 = vmatprep.mubr.bf16.mxu0 0
      %3005 = vmatmul.mubr.bf16.gmra.mxu0 %v2286
      %v3006 = vpop.f32.mrf.mxu0
      %v3007 = vadd.f32 0.0, %v3006
      %v3008 = vpop.f32.mrf.mxu0
      %v3009 = vpop.f32.mrf.mxu0
      %v3010 = vadd.f32 0.0, %v3009
      %v3011 = vpop.f32.mrf.mxu0
      %3012 = vmatprep.mubr.bf16.mxu0 0
      %3013 = vmatmul.mubr.bf16.gmra.mxu0 %v2289
      %v3014 = vpop.f32.mrf.mxu0
      %v3015 = vadd.f32 0.0, %v3014
      %v3016 = vpop.f32.mrf.mxu0
      %v3017 = vpop.f32.mrf.mxu0
      %v3018 = vadd.f32 0.0, %v3017
      %v3019 = vpop.f32.mrf.mxu0
      %3020 = vmatprep.mubr.bf16.mxu0 0
      %3021 = vmatmul.mubr.bf16.gmra.mxu0 %v2292
      %v3022 = vpop.f32.mrf.mxu0
      %v3023 = vadd.f32 0.0, %v3022
      %v3024 = vpop.f32.mrf.mxu0
      %v3025 = vpop.f32.mrf.mxu0
      %v3026 = vadd.f32 0.0, %v3025
      %v3027 = vpop.f32.mrf.mxu0
      %3028 = vmatprep.mubr.bf16.mxu0 0
      %3029 = vmatmul.mubr.bf16.gmra.mxu0 %v2295
      %v3030 = vpop.f32.mrf.mxu0
      %v3031 = vadd.f32 0.0, %v3030
      %v3032 = vpop.f32.mrf.mxu0
      %v3033 = vpop.f32.mrf.mxu0
      %v3034 = vadd.f32 0.0, %v3033
      %v3035 = vpop.f32.mrf.mxu0
      %3036 = vmatprep.mubr.bf16.mxu0 0
      %3037 = vmatmul.mubr.bf16.gmra.mxu0 %v2298
      %v3038 = vpop.f32.mrf.mxu0
      %v3039 = vadd.f32 0.0, %v3038
      %v3040 = vpop.f32.mrf.mxu0
      %v3041 = vpop.f32.mrf.mxu0
      %v3042 = vadd.f32 0.0, %v3041
      %v3043 = vpop.f32.mrf.mxu0
      %3044 = vmatprep.mubr.bf16.mxu0 0
      %3045 = vmatmul.mubr.bf16.gmra.mxu0 %v2301
      %v3046 = vpop.f32.mrf.mxu0
      %v3047 = vadd.f32 0.0, %v3046
      %v3048 = vpop.f32.mrf.mxu0
      %v3049 = vpop.f32.mrf.mxu0
      %v3050 = vadd.f32 0.0, %v3049
      %v3051 = vpop.f32.mrf.mxu0
      %3052 = vmatprep.mubr.bf16.mxu0 0
      %3053 = vmatmul.mubr.bf16.gmra.mxu0 %v2304
      %v3054 = vpop.f32.mrf.mxu0
      %v3055 = vadd.f32 0.0, %v3054
      %v3056 = vpop.f32.mrf.mxu0
      %v3057 = vpop.f32.mrf.mxu0
      %v3058 = vadd.f32 0.0, %v3057
      %v3059 = vpop.f32.mrf.mxu0
      %3060 = vmatprep.mubr.bf16.mxu0 0
      %3061 = vmatmul.mubr.bf16.gmra.mxu0 %v2903
      %v3062 = vpop.f32.mrf.mxu0
      %v3063 = vadd.f32 0.0, %v3062
      %v3064 = vpop.f32.mrf.mxu0
      %v3065 = vpop.f32.mrf.mxu0
      %v3066 = vadd.f32 0.0, %v3065
      %v3067 = vpop.f32.mrf.mxu0
      %3068 = vdwg.mxu0
      %v3069 = vadd.f32 %v2863, %v2943
      %v3070 = vadd.f32 %v2864, %v2946
      %v3071 = vadd.f32 %v2865, %v2951
      %v3072 = vadd.f32 %v2866, %v2954
      %v3073 = vadd.f32 %v2867, %v2959
      %v3074 = vadd.f32 %v2868, %v2962
      %v3075 = vadd.f32 %v2869, %v2967
      %v3076 = vadd.f32 %v2870, %v2970
      %v3077 = vadd.f32 %v2871, %v2975
      %v3078 = vadd.f32 %v2872, %v2978
      %v3079 = vadd.f32 %v2873, %v2983
      %v3080 = vadd.f32 %v2874, %v2986
      %v3081 = vadd.f32 %v2875, %v2991
      %v3082 = vadd.f32 %v2876, %v2994
      %v3083 = vadd.f32 %v2877, %v2999
      %v3084 = vadd.f32 %v2878, %v3002
      %v3085 = vadd.f32 %v2879, %v3007
      %v3086 = vadd.f32 %v2880, %v3010
      %v3087 = vadd.f32 %v2881, %v3015
      %v3088 = vadd.f32 %v2882, %v3018
      %v3089 = vadd.f32 %v2883, %v3023
      %v3090 = vadd.f32 %v2884, %v3026
      %v3091 = vadd.f32 %v2885, %v3031
      %v3092 = vadd.f32 %v2886, %v3034
      %v3093 = vadd.f32 %v2887, %v3039
      %v3094 = vadd.f32 %v2888, %v3042
      %v3095 = vadd.f32 %v2889, %v3047
      %v3096 = vadd.f32 %v2890, %v3050
      %v3097 = vadd.f32 %v2891, %v3055
      %v3098 = vadd.f32 %v2892, %v3058
      %v3099 = vadd.f32 %v2893, %v3063
      %v3100 = vadd.f32 %v2894, %v3066
      %v3102 = vshrl.u32 %v1520, 16
      %v3104 = vrot.slane %v3102, 4
      %v3105 = vshll.u32 %v1520, 16
      %v3107 = vrot.slane %v3105, 5
      %v3108 = vor.u32 %v3104, %v3107
      %v3109 = vrot.slane %v3108, 4
      %v3111 = vshll.u32 %v1521, 16
      %v3113 = vrot.slane %v3111, 5
      %v3114 = vsel %vm1529, %v3109, %v3113
      %v3115 = vshrl.u32 %v1521, 16
      %v3117 = vrot.slane %v3115, 4
      %v3118 = vor.u32 %v3117, %v3113
      %v3119 = vrot.slane %v3118, 4
      %v3121 = vshll.u32 %v1522, 16
      %v3123 = vrot.slane %v3121, 5
      %v3124 = vsel %vm1529, %v3119, %v3123
      %s3125 = scalar_lea.vmem %s4, 8
      %v3126 = vld [vmem:[%s3125] sm:$0x3]
      %v3127 = vunpack.c.l.b16 %v3114
      %v3128 = vunpack.c.l.b16 %v3124
      %v3129 = vpack.c.b16 %v3128, %v3127
      %v3131 = vsel %vm1964, %v3129, 0
      %v3134 = vsel %vm2013, %v3126, 0
      %3136 = vmatprep.subr.bf16.mxu0 0
      %3137 = vmatpush1.bf16.msra.mxu0 0
      %3138 = vmatprep.subr.bf16.mxu0 0
      %3139 = vmatpush1.bf16.msra.mxu0 0
      %3140 = vmatprep.subr.bf16.mxu0 0
      %3141 = vmatpush1.bf16.msra.mxu0 0
      %3142 = vmatprep.subr.bf16.mxu0 0
      %3143 = vmatpush1.bf16.msra.mxu0 0
      %3144 = vmatprep.subr.bf16.mxu0 0
      %3145 = vmatpush1.bf16.msra.mxu0 0
      %3146 = vmatprep.subr.bf16.mxu0 0
      %3147 = vmatpush1.bf16.msra.mxu0 0
      %3148 = vmatprep.subr.bf16.mxu0 0
      %3149 = vmatpush1.bf16.msra.mxu0 0
      %3150 = vmatprep.subr.bf16.mxu0 0
      %3151 = vmatpush1.bf16.msra.mxu0 %v3134
      %3152 = vmatprep.subr.bf16.mxu0 0
      %3153 = vmatpush2.bf16.msra.mxu0 0
      %3154 = vmatprep.subr.bf16.mxu0 0
      %3155 = vmatpush2.bf16.msra.mxu0 0
      %3156 = vmatprep.subr.bf16.mxu0 0
      %3157 = vmatpush2.bf16.msra.mxu0 0
      %3158 = vmatprep.subr.bf16.mxu0 0
      %3159 = vmatpush2.bf16.msra.mxu0 0
      %3160 = vmatprep.subr.bf16.mxu0 0
      %3161 = vmatpush2.bf16.msra.mxu0 0
      %3162 = vmatprep.subr.bf16.mxu0 0
      %3163 = vmatpush2.bf16.msra.mxu0 0
      %3164 = vmatprep.subr.bf16.mxu0 0
      %3165 = vmatpush2.bf16.msra.mxu0 0
      %3166 = vmatprep.subr.bf16.mxu0 0
      %3167 = vmatpush2.bf16.msra.mxu0 0
      %3168 = vmatprep.mubr.bf16.mxu0 0
      %3169 = vmatmul.mubr.bf16.gmra.mxu0 %v1969
      %v3170 = vpop.f32.mrf.mxu0
      %v3171 = vadd.f32 0.0, %v3170
      %v3172 = vpop.f32.mrf.mxu0
      %v3173 = vpop.f32.mrf.mxu0
      %v3174 = vadd.f32 0.0, %v3173
      %v3175 = vpop.f32.mrf.mxu0
      %3176 = vmatprep.mubr.bf16.mxu0 0
      %3177 = vmatmul.mubr.bf16.gmra.mxu0 %v1972
      %v3178 = vpop.f32.mrf.mxu0
      %v3179 = vadd.f32 0.0, %v3178
      %v3180 = vpop.f32.mrf.mxu0
      %v3181 = vpop.f32.mrf.mxu0
      %v3182 = vadd.f32 0.0, %v3181
      %v3183 = vpop.f32.mrf.mxu0
      %3184 = vmatprep.mubr.bf16.mxu0 0
      %3185 = vmatmul.mubr.bf16.gmra.mxu0 %v1975
      %v3186 = vpop.f32.mrf.mxu0
      %v3187 = vadd.f32 0.0, %v3186
      %v3188 = vpop.f32.mrf.mxu0
      %v3189 = vpop.f32.mrf.mxu0
      %v3190 = vadd.f32 0.0, %v3189
      %v3191 = vpop.f32.mrf.mxu0
      %3192 = vmatprep.mubr.bf16.mxu0 0
      %3193 = vmatmul.mubr.bf16.gmra.mxu0 %v1978
      %v3194 = vpop.f32.mrf.mxu0
      %v3195 = vadd.f32 0.0, %v3194
      %v3196 = vpop.f32.mrf.mxu0
      %v3197 = vpop.f32.mrf.mxu0
      %v3198 = vadd.f32 0.0, %v3197
      %v3199 = vpop.f32.mrf.mxu0
      %3200 = vmatprep.mubr.bf16.mxu0 0
      %3201 = vmatmul.mubr.bf16.gmra.mxu0 %v1981
      %v3202 = vpop.f32.mrf.mxu0
      %v3203 = vadd.f32 0.0, %v3202
      %v3204 = vpop.f32.mrf.mxu0
      %v3205 = vpop.f32.mrf.mxu0
      %v3206 = vadd.f32 0.0, %v3205
      %v3207 = vpop.f32.mrf.mxu0
      %3208 = vmatprep.mubr.bf16.mxu0 0
      %3209 = vmatmul.mubr.bf16.gmra.mxu0 %v1984
      %v3210 = vpop.f32.mrf.mxu0
      %v3211 = vadd.f32 0.0, %v3210
      %v3212 = vpop.f32.mrf.mxu0
      %v3213 = vpop.f32.mrf.mxu0
      %v3214 = vadd.f32 0.0, %v3213
      %v3215 = vpop.f32.mrf.mxu0
      %3216 = vmatprep.mubr.bf16.mxu0 0
      %3217 = vmatmul.mubr.bf16.gmra.mxu0 %v1987
      %v3218 = vpop.f32.mrf.mxu0
      %v3219 = vadd.f32 0.0, %v3218
      %v3220 = vpop.f32.mrf.mxu0
      %v3221 = vpop.f32.mrf.mxu0
      %v3222 = vadd.f32 0.0, %v3221
      %v3223 = vpop.f32.mrf.mxu0
      %3224 = vmatprep.mubr.bf16.mxu0 0
      %3225 = vmatmul.mubr.bf16.gmra.mxu0 %v1990
      %v3226 = vpop.f32.mrf.mxu0
      %v3227 = vadd.f32 0.0, %v3226
      %v3228 = vpop.f32.mrf.mxu0
      %v3229 = vpop.f32.mrf.mxu0
      %v3230 = vadd.f32 0.0, %v3229
      %v3231 = vpop.f32.mrf.mxu0
      %3232 = vmatprep.mubr.bf16.mxu0 0
      %3233 = vmatmul.mubr.bf16.gmra.mxu0 %v1993
      %v3234 = vpop.f32.mrf.mxu0
      %v3235 = vadd.f32 0.0, %v3234
      %v3236 = vpop.f32.mrf.mxu0
      %v3237 = vpop.f32.mrf.mxu0
      %v3238 = vadd.f32 0.0, %v3237
      %v3239 = vpop.f32.mrf.mxu0
      %3240 = vmatprep.mubr.bf16.mxu0 0
      %3241 = vmatmul.mubr.bf16.gmra.mxu0 %v1996
      %v3242 = vpop.f32.mrf.mxu0
      %v3243 = vadd.f32 0.0, %v3242
      %v3244 = vpop.f32.mrf.mxu0
      %v3245 = vpop.f32.mrf.mxu0
      %v3246 = vadd.f32 0.0, %v3245
      %v3247 = vpop.f32.mrf.mxu0
      %3248 = vmatprep.mubr.bf16.mxu0 0
      %3249 = vmatmul.mubr.bf16.gmra.mxu0 %v1999
      %v3250 = vpop.f32.mrf.mxu0
      %v3251 = vadd.f32 0.0, %v3250
      %v3252 = vpop.f32.mrf.mxu0
      %v3253 = vpop.f32.mrf.mxu0
      %v3254 = vadd.f32 0.0, %v3253
      %v3255 = vpop.f32.mrf.mxu0
      %3256 = vmatprep.mubr.bf16.mxu0 0
      %3257 = vmatmul.mubr.bf16.gmra.mxu0 %v2002
      %v3258 = vpop.f32.mrf.mxu0
      %v3259 = vadd.f32 0.0, %v3258
      %v3260 = vpop.f32.mrf.mxu0
      %v3261 = vpop.f32.mrf.mxu0
      %v3262 = vadd.f32 0.0, %v3261
      %v3263 = vpop.f32.mrf.mxu0
      %3264 = vmatprep.mubr.bf16.mxu0 0
      %3265 = vmatmul.mubr.bf16.gmra.mxu0 %v2005
      %v3266 = vpop.f32.mrf.mxu0
      %v3267 = vadd.f32 0.0, %v3266
      %v3268 = vpop.f32.mrf.mxu0
      %v3269 = vpop.f32.mrf.mxu0
      %v3270 = vadd.f32 0.0, %v3269
      %v3271 = vpop.f32.mrf.mxu0
      %3272 = vmatprep.mubr.bf16.mxu0 0
      %3273 = vmatmul.mubr.bf16.gmra.mxu0 %v2008
      %v3274 = vpop.f32.mrf.mxu0
      %v3275 = vadd.f32 0.0, %v3274
      %v3276 = vpop.f32.mrf.mxu0
      %v3277 = vpop.f32.mrf.mxu0
      %v3278 = vadd.f32 0.0, %v3277
      %v3279 = vpop.f32.mrf.mxu0
      %3280 = vmatprep.mubr.bf16.mxu0 0
      %3281 = vmatmul.mubr.bf16.gmra.mxu0 %v2011
      %v3282 = vpop.f32.mrf.mxu0
      %v3283 = vadd.f32 0.0, %v3282
      %v3284 = vpop.f32.mrf.mxu0
      %v3285 = vpop.f32.mrf.mxu0
      %v3286 = vadd.f32 0.0, %v3285
      %v3287 = vpop.f32.mrf.mxu0
      %3288 = vmatprep.mubr.bf16.mxu0 0
      %3289 = vmatmul.mubr.bf16.gmra.mxu0 %v3131
      %v3290 = vpop.f32.mrf.mxu0
      %v3291 = vadd.f32 0.0, %v3290
      %v3292 = vpop.f32.mrf.mxu0
      %v3293 = vpop.f32.mrf.mxu0
      %v3294 = vadd.f32 0.0, %v3293
      %v3295 = vpop.f32.mrf.mxu0
      %3296 = vdwg.mxu0
      %v3297 = vadd.f32 %v3069, %v3171
      %v3298 = vadd.f32 %v3070, %v3174
      %v3299 = vadd.f32 %v3071, %v3179
      %v3300 = vadd.f32 %v3072, %v3182
      %v3301 = vadd.f32 %v3073, %v3187
      %v3302 = vadd.f32 %v3074, %v3190
      %v3303 = vadd.f32 %v3075, %v3195
      %v3304 = vadd.f32 %v3076, %v3198
      %v3305 = vadd.f32 %v3077, %v3203
      %v3306 = vadd.f32 %v3078, %v3206
      %v3307 = vadd.f32 %v3079, %v3211
      %v3308 = vadd.f32 %v3080, %v3214
      %v3309 = vadd.f32 %v3081, %v3219
      %v3310 = vadd.f32 %v3082, %v3222
      %v3311 = vadd.f32 %v3083, %v3227
      %v3312 = vadd.f32 %v3084, %v3230
      %v3313 = vadd.f32 %v3085, %v3235
      %v3314 = vadd.f32 %v3086, %v3238
      %v3315 = vadd.f32 %v3087, %v3243
      %v3316 = vadd.f32 %v3088, %v3246
      %v3317 = vadd.f32 %v3089, %v3251
      %v3318 = vadd.f32 %v3090, %v3254
      %v3319 = vadd.f32 %v3091, %v3259
      %v3320 = vadd.f32 %v3092, %v3262
      %v3321 = vadd.f32 %v3093, %v3267
      %v3322 = vadd.f32 %v3094, %v3270
      %v3323 = vadd.f32 %v3095, %v3275
      %v3324 = vadd.f32 %v3096, %v3278
      %v3325 = vadd.f32 %v3097, %v3283
      %v3326 = vadd.f32 %v3098, %v3286
      %v3327 = vadd.f32 %v3099, %v3291
      %v3328 = vadd.f32 %v3100, %v3294
      %v3330 = vrot.slane %v1520, 5
      %v3331 = vrot.slane %v3330, 4
      %v3332 = vrot.slane %v1521, 5
      %v3333 = vsel %vm2488, %v3331, %v3332
      %v3334 = vrot.slane %v3332, 4
      %v3335 = vrot.slane %v1522, 5
      %v3336 = vsel %vm2488, %v3334, %v3335
      %s3337 = scalar_lea.vmem %s4, 10
      %v3338 = vld [vmem:[%s3337] sm:$0x3]
      %v3339 = vunpack.c.l.b16 %v3333
      %v3340 = vunpack.c.l.b16 %v3336
      %v3341 = vpack.c.b16 %v3340, %v3339
      %v3343 = vsel %vm1964, %v3341, 0
      %v3346 = vsel %vm2013, %v3338, 0
      %3348 = vmatprep.subr.bf16.mxu0 0
      %3349 = vmatpush1.bf16.msra.mxu0 0
      %3350 = vmatprep.subr.bf16.mxu0 0
      %3351 = vmatpush1.bf16.msra.mxu0 0
      %3352 = vmatprep.subr.bf16.mxu0 0
      %3353 = vmatpush1.bf16.msra.mxu0 0
      %3354 = vmatprep.subr.bf16.mxu0 0
      %3355 = vmatpush1.bf16.msra.mxu0 0
      %3356 = vmatprep.subr.bf16.mxu0 0
      %3357 = vmatpush1.bf16.msra.mxu0 0
      %3358 = vmatprep.subr.bf16.mxu0 0
      %3359 = vmatpush1.bf16.msra.mxu0 0
      %3360 = vmatprep.subr.bf16.mxu0 0
      %3361 = vmatpush1.bf16.msra.mxu0 0
      %3362 = vmatprep.subr.bf16.mxu0 0
      %3363 = vmatpush1.bf16.msra.mxu0 %v3346
      %3364 = vmatprep.subr.bf16.mxu0 0
      %3365 = vmatpush2.bf16.msra.mxu0 0
      %3366 = vmatprep.subr.bf16.mxu0 0
      %3367 = vmatpush2.bf16.msra.mxu0 0
      %3368 = vmatprep.subr.bf16.mxu0 0
      %3369 = vmatpush2.bf16.msra.mxu0 0
      %3370 = vmatprep.subr.bf16.mxu0 0
      %3371 = vmatpush2.bf16.msra.mxu0 0
      %3372 = vmatprep.subr.bf16.mxu0 0
      %3373 = vmatpush2.bf16.msra.mxu0 0
      %3374 = vmatprep.subr.bf16.mxu0 0
      %3375 = vmatpush2.bf16.msra.mxu0 0
      %3376 = vmatprep.subr.bf16.mxu0 0
      %3377 = vmatpush2.bf16.msra.mxu0 0
      %3378 = vmatprep.subr.bf16.mxu0 0
      %3379 = vmatpush2.bf16.msra.mxu0 0
      %3380 = vmatprep.mubr.bf16.mxu0 0
      %3381 = vmatmul.mubr.bf16.gmra.mxu0 %v2655
      %v3382 = vpop.f32.mrf.mxu0
      %v3383 = vadd.f32 0.0, %v3382
      %v3384 = vpop.f32.mrf.mxu0
      %v3385 = vpop.f32.mrf.mxu0
      %v3386 = vadd.f32 0.0, %v3385
      %v3387 = vpop.f32.mrf.mxu0
      %3388 = vmatprep.mubr.bf16.mxu0 0
      %3389 = vmatmul.mubr.bf16.gmra.mxu0 %v2658
      %v3390 = vpop.f32.mrf.mxu0
      %v3391 = vadd.f32 0.0, %v3390
      %v3392 = vpop.f32.mrf.mxu0
      %v3393 = vpop.f32.mrf.mxu0
      %v3394 = vadd.f32 0.0, %v3393
      %v3395 = vpop.f32.mrf.mxu0
      %3396 = vmatprep.mubr.bf16.mxu0 0
      %3397 = vmatmul.mubr.bf16.gmra.mxu0 %v2661
      %v3398 = vpop.f32.mrf.mxu0
      %v3399 = vadd.f32 0.0, %v3398
      %v3400 = vpop.f32.mrf.mxu0
      %v3401 = vpop.f32.mrf.mxu0
      %v3402 = vadd.f32 0.0, %v3401
      %v3403 = vpop.f32.mrf.mxu0
      %3404 = vmatprep.mubr.bf16.mxu0 0
      %3405 = vmatmul.mubr.bf16.gmra.mxu0 %v2664
      %v3406 = vpop.f32.mrf.mxu0
      %v3407 = vadd.f32 0.0, %v3406
      %v3408 = vpop.f32.mrf.mxu0
      %v3409 = vpop.f32.mrf.mxu0
      %v3410 = vadd.f32 0.0, %v3409
      %v3411 = vpop.f32.mrf.mxu0
      %3412 = vmatprep.mubr.bf16.mxu0 0
      %3413 = vmatmul.mubr.bf16.gmra.mxu0 %v2667
      %v3414 = vpop.f32.mrf.mxu0
      %v3415 = vadd.f32 0.0, %v3414
      %v3416 = vpop.f32.mrf.mxu0
      %v3417 = vpop.f32.mrf.mxu0
      %v3418 = vadd.f32 0.0, %v3417
      %v3419 = vpop.f32.mrf.mxu0
      %3420 = vmatprep.mubr.bf16.mxu0 0
      %3421 = vmatmul.mubr.bf16.gmra.mxu0 %v2670
      %v3422 = vpop.f32.mrf.mxu0
      %v3423 = vadd.f32 0.0, %v3422
      %v3424 = vpop.f32.mrf.mxu0
      %v3425 = vpop.f32.mrf.mxu0
      %v3426 = vadd.f32 0.0, %v3425
      %v3427 = vpop.f32.mrf.mxu0
      %3428 = vmatprep.mubr.bf16.mxu0 0
      %3429 = vmatmul.mubr.bf16.gmra.mxu0 %v2673
      %v3430 = vpop.f32.mrf.mxu0
      %v3431 = vadd.f32 0.0, %v3430
      %v3432 = vpop.f32.mrf.mxu0
      %v3433 = vpop.f32.mrf.mxu0
      %v3434 = vadd.f32 0.0, %v3433
      %v3435 = vpop.f32.mrf.mxu0
      %3436 = vmatprep.mubr.bf16.mxu0 0
      %3437 = vmatmul.mubr.bf16.gmra.mxu0 %v2676
      %v3438 = vpop.f32.mrf.mxu0
      %v3439 = vadd.f32 0.0, %v3438
      %v3440 = vpop.f32.mrf.mxu0
      %v3441 = vpop.f32.mrf.mxu0
      %v3442 = vadd.f32 0.0, %v3441
      %v3443 = vpop.f32.mrf.mxu0
      %3444 = vmatprep.mubr.bf16.mxu0 0
      %3445 = vmatmul.mubr.bf16.gmra.mxu0 %v2679
      %v3446 = vpop.f32.mrf.mxu0
      %v3447 = vadd.f32 0.0, %v3446
      %v3448 = vpop.f32.mrf.mxu0
      %v3449 = vpop.f32.mrf.mxu0
      %v3450 = vadd.f32 0.0, %v3449
      %v3451 = vpop.f32.mrf.mxu0
      %3452 = vmatprep.mubr.bf16.mxu0 0
      %3453 = vmatmul.mubr.bf16.gmra.mxu0 %v2682
      %v3454 = vpop.f32.mrf.mxu0
      %v3455 = vadd.f32 0.0, %v3454
      %v3456 = vpop.f32.mrf.mxu0
      %v3457 = vpop.f32.mrf.mxu0
      %v3458 = vadd.f32 0.0, %v3457
      %v3459 = vpop.f32.mrf.mxu0
      %3460 = vmatprep.mubr.bf16.mxu0 0
      %3461 = vmatmul.mubr.bf16.gmra.mxu0 %v2685
      %v3462 = vpop.f32.mrf.mxu0
      %v3463 = vadd.f32 0.0, %v3462
      %v3464 = vpop.f32.mrf.mxu0
      %v3465 = vpop.f32.mrf.mxu0
      %v3466 = vadd.f32 0.0, %v3465
      %v3467 = vpop.f32.mrf.mxu0
      %3468 = vmatprep.mubr.bf16.mxu0 0
      %3469 = vmatmul.mubr.bf16.gmra.mxu0 %v2688
      %v3470 = vpop.f32.mrf.mxu0
      %v3471 = vadd.f32 0.0, %v3470
      %v3472 = vpop.f32.mrf.mxu0
      %v3473 = vpop.f32.mrf.mxu0
      %v3474 = vadd.f32 0.0, %v3473
      %v3475 = vpop.f32.mrf.mxu0
      %3476 = vmatprep.mubr.bf16.mxu0 0
      %3477 = vmatmul.mubr.bf16.gmra.mxu0 %v2691
      %v3478 = vpop.f32.mrf.mxu0
      %v3479 = vadd.f32 0.0, %v3478
      %v3480 = vpop.f32.mrf.mxu0
      %v3481 = vpop.f32.mrf.mxu0
      %v3482 = vadd.f32 0.0, %v3481
      %v3483 = vpop.f32.mrf.mxu0
      %3484 = vmatprep.mubr.bf16.mxu0 0
      %3485 = vmatmul.mubr.bf16.gmra.mxu0 %v2694
      %v3486 = vpop.f32.mrf.mxu0
      %v3487 = vadd.f32 0.0, %v3486
      %v3488 = vpop.f32.mrf.mxu0
      %v3489 = vpop.f32.mrf.mxu0
      %v3490 = vadd.f32 0.0, %v3489
      %v3491 = vpop.f32.mrf.mxu0
      %3492 = vmatprep.mubr.bf16.mxu0 0
      %3493 = vmatmul.mubr.bf16.gmra.mxu0 %v2697
      %v3494 = vpop.f32.mrf.mxu0
      %v3495 = vadd.f32 0.0, %v3494
      %v3496 = vpop.f32.mrf.mxu0
      %v3497 = vpop.f32.mrf.mxu0
      %v3498 = vadd.f32 0.0, %v3497
      %v3499 = vpop.f32.mrf.mxu0
      %3500 = vmatprep.mubr.bf16.mxu0 0
      %3501 = vmatmul.mubr.bf16.gmra.mxu0 %v3343
      %v3502 = vpop.f32.mrf.mxu0
      %v3503 = vadd.f32 0.0, %v3502
      %v3504 = vpop.f32.mrf.mxu0
      %v3505 = vpop.f32.mrf.mxu0
      %v3506 = vadd.f32 0.0, %v3505
      %v3507 = vpop.f32.mrf.mxu0
      %3508 = vdwg.mxu0
      %v3509 = vadd.f32 %v3297, %v3383
      %v3510 = vadd.f32 %v3298, %v3386
      %v3511 = vadd.f32 %v3299, %v3391
      %v3512 = vadd.f32 %v3300, %v3394
      %v3513 = vadd.f32 %v3301, %v3399
      %v3514 = vadd.f32 %v3302, %v3402
      %v3515 = vadd.f32 %v3303, %v3407
      %v3516 = vadd.f32 %v3304, %v3410
      %v3517 = vadd.f32 %v3305, %v3415
      %v3518 = vadd.f32 %v3306, %v3418
      %v3519 = vadd.f32 %v3307, %v3423
      %v3520 = vadd.f32 %v3308, %v3426
      %v3521 = vadd.f32 %v3309, %v3431
      %v3522 = vadd.f32 %v3310, %v3434
      %v3523 = vadd.f32 %v3311, %v3439
      %v3524 = vadd.f32 %v3312, %v3442
      %v3525 = vadd.f32 %v3313, %v3447
      %v3526 = vadd.f32 %v3314, %v3450
      %v3527 = vadd.f32 %v3315, %v3455
      %v3528 = vadd.f32 %v3316, %v3458
      %v3529 = vadd.f32 %v3317, %v3463
      %v3530 = vadd.f32 %v3318, %v3466
      %v3531 = vadd.f32 %v3319, %v3471
      %v3532 = vadd.f32 %v3320, %v3474
      %v3533 = vadd.f32 %v3321, %v3479
      %v3534 = vadd.f32 %v3322, %v3482
      %v3535 = vadd.f32 %v3323, %v3487
      %v3536 = vadd.f32 %v3324, %v3490
      %v3537 = vadd.f32 %v3325, %v3495
      %v3538 = vadd.f32 %v3326, %v3498
      %v3539 = vadd.f32 %v3327, %v3503
      %v3540 = vadd.f32 %v3328, %v3506
      %s3541 = scalar_lea.vmem %s4, 12
      %v3542 = vld [vmem:[%s3541] sm:$0x3]
      %v3545 = vunpack.c.l.b16 %v1523
      %v3546 = vunpack.c.l.b16 %v1524
      %v3547 = vpack.c.b16 %v3546, %v3545
      %v3549 = vsel %vm1964, %v3547, 0
      %v3552 = vsel %vm2013, %v3542, 0
      %3554 = vmatprep.subr.bf16.mxu0 0
      %3555 = vmatpush1.bf16.msra.mxu0 0
      %3556 = vmatprep.subr.bf16.mxu0 0
      %3557 = vmatpush1.bf16.msra.mxu0 0
      %3558 = vmatprep.subr.bf16.mxu0 0
      %3559 = vmatpush1.bf16.msra.mxu0 0
      %3560 = vmatprep.subr.bf16.mxu0 0
      %3561 = vmatpush1.bf16.msra.mxu0 0
      %3562 = vmatprep.subr.bf16.mxu0 0
      %3563 = vmatpush1.bf16.msra.mxu0 0
      %3564 = vmatprep.subr.bf16.mxu0 0
      %3565 = vmatpush1.bf16.msra.mxu0 0
      %3566 = vmatprep.subr.bf16.mxu0 0
      %3567 = vmatpush1.bf16.msra.mxu0 0
      %3568 = vmatprep.subr.bf16.mxu0 0
      %3569 = vmatpush1.bf16.msra.mxu0 %v3552
      %3570 = vmatprep.subr.bf16.mxu0 0
      %3571 = vmatpush2.bf16.msra.mxu0 0
      %3572 = vmatprep.subr.bf16.mxu0 0
      %3573 = vmatpush2.bf16.msra.mxu0 0
      %3574 = vmatprep.subr.bf16.mxu0 0
      %3575 = vmatpush2.bf16.msra.mxu0 0
      %3576 = vmatprep.subr.bf16.mxu0 0
      %3577 = vmatpush2.bf16.msra.mxu0 0
      %3578 = vmatprep.subr.bf16.mxu0 0
      %3579 = vmatpush2.bf16.msra.mxu0 0
      %3580 = vmatprep.subr.bf16.mxu0 0
      %3581 = vmatpush2.bf16.msra.mxu0 0
      %3582 = vmatprep.subr.bf16.mxu0 0
      %3583 = vmatpush2.bf16.msra.mxu0 0
      %3584 = vmatprep.subr.bf16.mxu0 0
      %3585 = vmatpush2.bf16.msra.mxu0 0
      %3586 = vmatprep.mubr.bf16.mxu0 0
      %3587 = vmatmul.mubr.bf16.gmra.mxu0 %v2265
      %v3588 = vpop.f32.mrf.mxu0
      %v3589 = vadd.f32 0.0, %v3588
      %v3590 = vpop.f32.mrf.mxu0
      %v3591 = vpop.f32.mrf.mxu0
      %v3592 = vadd.f32 0.0, %v3591
      %v3593 = vpop.f32.mrf.mxu0
      %3594 = vmatprep.mubr.bf16.mxu0 0
      %3595 = vmatmul.mubr.bf16.gmra.mxu0 %v2268
      %v3596 = vpop.f32.mrf.mxu0
      %v3597 = vadd.f32 0.0, %v3596
      %v3598 = vpop.f32.mrf.mxu0
      %v3599 = vpop.f32.mrf.mxu0
      %v3600 = vadd.f32 0.0, %v3599
      %v3601 = vpop.f32.mrf.mxu0
      %3602 = vmatprep.mubr.bf16.mxu0 0
      %3603 = vmatmul.mubr.bf16.gmra.mxu0 %v2271
      %v3604 = vpop.f32.mrf.mxu0
      %v3605 = vadd.f32 0.0, %v3604
      %v3606 = vpop.f32.mrf.mxu0
      %v3607 = vpop.f32.mrf.mxu0
      %v3608 = vadd.f32 0.0, %v3607
      %v3609 = vpop.f32.mrf.mxu0
      %3610 = vmatprep.mubr.bf16.mxu0 0
      %3611 = vmatmul.mubr.bf16.gmra.mxu0 %v2274
      %v3612 = vpop.f32.mrf.mxu0
      %v3613 = vadd.f32 0.0, %v3612
      %v3614 = vpop.f32.mrf.mxu0
      %v3615 = vpop.f32.mrf.mxu0
      %v3616 = vadd.f32 0.0, %v3615
      %v3617 = vpop.f32.mrf.mxu0
      %3618 = vmatprep.mubr.bf16.mxu0 0
      %3619 = vmatmul.mubr.bf16.gmra.mxu0 %v2277
      %v3620 = vpop.f32.mrf.mxu0
      %v3621 = vadd.f32 0.0, %v3620
      %v3622 = vpop.f32.mrf.mxu0
      %v3623 = vpop.f32.mrf.mxu0
      %v3624 = vadd.f32 0.0, %v3623
      %v3625 = vpop.f32.mrf.mxu0
      %3626 = vmatprep.mubr.bf16.mxu0 0
      %3627 = vmatmul.mubr.bf16.gmra.mxu0 %v2280
      %v3628 = vpop.f32.mrf.mxu0
      %v3629 = vadd.f32 0.0, %v3628
      %v3630 = vpop.f32.mrf.mxu0
      %v3631 = vpop.f32.mrf.mxu0
      %v3632 = vadd.f32 0.0, %v3631
      %v3633 = vpop.f32.mrf.mxu0
      %3634 = vmatprep.mubr.bf16.mxu0 0
      %3635 = vmatmul.mubr.bf16.gmra.mxu0 %v2283
      %v3636 = vpop.f32.mrf.mxu0
      %v3637 = vadd.f32 0.0, %v3636
      %v3638 = vpop.f32.mrf.mxu0
      %v3639 = vpop.f32.mrf.mxu0
      %v3640 = vadd.f32 0.0, %v3639
      %v3641 = vpop.f32.mrf.mxu0
      %3642 = vmatprep.mubr.bf16.mxu0 0
      %3643 = vmatmul.mubr.bf16.gmra.mxu0 %v2286
      %v3644 = vpop.f32.mrf.mxu0
      %v3645 = vadd.f32 0.0, %v3644
      %v3646 = vpop.f32.mrf.mxu0
      %v3647 = vpop.f32.mrf.mxu0
      %v3648 = vadd.f32 0.0, %v3647
      %v3649 = vpop.f32.mrf.mxu0
      %3650 = vmatprep.mubr.bf16.mxu0 0
      %3651 = vmatmul.mubr.bf16.gmra.mxu0 %v2289
      %v3652 = vpop.f32.mrf.mxu0
      %v3653 = vadd.f32 0.0, %v3652
      %v3654 = vpop.f32.mrf.mxu0
      %v3655 = vpop.f32.mrf.mxu0
      %v3656 = vadd.f32 0.0, %v3655
      %v3657 = vpop.f32.mrf.mxu0
      %3658 = vmatprep.mubr.bf16.mxu0 0
      %3659 = vmatmul.mubr.bf16.gmra.mxu0 %v2292
      %v3660 = vpop.f32.mrf.mxu0
      %v3661 = vadd.f32 0.0, %v3660
      %v3662 = vpop.f32.mrf.mxu0
      %v3663 = vpop.f32.mrf.mxu0
      %v3664 = vadd.f32 0.0, %v3663
      %v3665 = vpop.f32.mrf.mxu0
      %3666 = vmatprep.mubr.bf16.mxu0 0
      %3667 = vmatmul.mubr.bf16.gmra.mxu0 %v2295
      %v3668 = vpop.f32.mrf.mxu0
      %v3669 = vadd.f32 0.0, %v3668
      %v3670 = vpop.f32.mrf.mxu0
      %v3671 = vpop.f32.mrf.mxu0
      %v3672 = vadd.f32 0.0, %v3671
      %v3673 = vpop.f32.mrf.mxu0
      %3674 = vmatprep.mubr.bf16.mxu0 0
      %3675 = vmatmul.mubr.bf16.gmra.mxu0 %v2298
      %v3676 = vpop.f32.mrf.mxu0
      %v3677 = vadd.f32 0.0, %v3676
      %v3678 = vpop.f32.mrf.mxu0
      %v3679 = vpop.f32.mrf.mxu0
      %v3680 = vadd.f32 0.0, %v3679
      %v3681 = vpop.f32.mrf.mxu0
      %3682 = vmatprep.mubr.bf16.mxu0 0
      %3683 = vmatmul.mubr.bf16.gmra.mxu0 %v2301
      %v3684 = vpop.f32.mrf.mxu0
      %v3685 = vadd.f32 0.0, %v3684
      %v3686 = vpop.f32.mrf.mxu0
      %v3687 = vpop.f32.mrf.mxu0
      %v3688 = vadd.f32 0.0, %v3687
      %v3689 = vpop.f32.mrf.mxu0
      %3690 = vmatprep.mubr.bf16.mxu0 0
      %3691 = vmatmul.mubr.bf16.gmra.mxu0 %v2304
      %v3692 = vpop.f32.mrf.mxu0
      %v3693 = vadd.f32 0.0, %v3692
      %v3694 = vpop.f32.mrf.mxu0
      %v3695 = vpop.f32.mrf.mxu0
      %v3696 = vadd.f32 0.0, %v3695
      %v3697 = vpop.f32.mrf.mxu0
      %3698 = vmatprep.mubr.bf16.mxu0 0
      %3699 = vmatmul.mubr.bf16.gmra.mxu0 %v2903
      %v3700 = vpop.f32.mrf.mxu0
      %v3701 = vadd.f32 0.0, %v3700
      %v3702 = vpop.f32.mrf.mxu0
      %v3703 = vpop.f32.mrf.mxu0
      %v3704 = vadd.f32 0.0, %v3703
      %v3705 = vpop.f32.mrf.mxu0
      %3706 = vmatprep.mubr.bf16.mxu0 0
      %3707 = vmatmul.mubr.bf16.gmra.mxu0 %v3549
      %v3708 = vpop.f32.mrf.mxu0
      %v3709 = vadd.f32 0.0, %v3708
      %v3710 = vpop.f32.mrf.mxu0
      %v3711 = vpop.f32.mrf.mxu0
      %v3712 = vadd.f32 0.0, %v3711
      %v3713 = vpop.f32.mrf.mxu0
      %3714 = vdwg.mxu0
      %v3715 = vadd.f32 %v3509, %v3589
      %v3716 = vadd.f32 %v3510, %v3592
      %v3717 = vadd.f32 %v3511, %v3597
      %v3718 = vadd.f32 %v3512, %v3600
      %v3719 = vadd.f32 %v3513, %v3605
      %v3720 = vadd.f32 %v3514, %v3608
      %v3721 = vadd.f32 %v3515, %v3613
      %v3722 = vadd.f32 %v3516, %v3616
      %v3723 = vadd.f32 %v3517, %v3621
      %v3724 = vadd.f32 %v3518, %v3624
      %v3725 = vadd.f32 %v3519, %v3629
      %v3726 = vadd.f32 %v3520, %v3632
      %v3727 = vadd.f32 %v3521, %v3637
      %v3728 = vadd.f32 %v3522, %v3640
      %v3729 = vadd.f32 %v3523, %v3645
      %v3730 = vadd.f32 %v3524, %v3648
      %v3731 = vadd.f32 %v3525, %v3653
      %v3732 = vadd.f32 %v3526, %v3656
      %v3733 = vadd.f32 %v3527, %v3661
      %v3734 = vadd.f32 %v3528, %v3664
      %v3735 = vadd.f32 %v3529, %v3669
      %v3736 = vadd.f32 %v3530, %v3672
      %v3737 = vadd.f32 %v3531, %v3677
      %v3738 = vadd.f32 %v3532, %v3680
      %v3739 = vadd.f32 %v3533, %v3685
      %v3740 = vadd.f32 %v3534, %v3688
      %v3741 = vadd.f32 %v3535, %v3693
      %v3742 = vadd.f32 %v3536, %v3696
      %v3743 = vadd.f32 %v3537, %v3701
      %v3744 = vadd.f32 %v3538, %v3704
      %v3745 = vadd.f32 %v3539, %v3709
      %v3746 = vadd.f32 %v3540, %v3712
      %v3748 = vshrl.u32 %v1523, 16
      %v3750 = vrot.slane %v3748, 4
      %v3751 = vshll.u32 %v1523, 16
      %v3753 = vrot.slane %v3751, 5
      %v3754 = vor.u32 %v3750, %v3753
      %v3755 = vrot.slane %v3754, 4
      %v3757 = vshll.u32 %v1524, 16
      %v3759 = vrot.slane %v3757, 5
      %v3760 = vsel %vm1529, %v3755, %v3759
      %v3761 = vshrl.u32 %v1524, 16
      %v3763 = vrot.slane %v3761, 4
      %v3764 = vor.u32 %v3763, %v3759
      %v3765 = vrot.slane %v3764, 4
      %v3767 = vshll.u32 %v1525, 16
      %v3769 = vrot.slane %v3767, 5
      %v3770 = vsel %vm1529, %v3765, %v3769
      %s3771 = scalar_lea.vmem %s4, 14
      %v3772 = vld [vmem:[%s3771] sm:$0x3]
      %v3773 = vunpack.c.l.b16 %v3760
      %v3774 = vunpack.c.l.b16 %v3770
      %v3775 = vpack.c.b16 %v3774, %v3773
      %v3777 = vsel %vm1964, %v3775, 0
      %v3780 = vsel %vm2013, %v3772, 0
      %3782 = vmatprep.subr.bf16.mxu0 0
      %3783 = vmatpush1.bf16.msra.mxu0 0
      %3784 = vmatprep.subr.bf16.mxu0 0
      %3785 = vmatpush1.bf16.msra.mxu0 0
      %3786 = vmatprep.subr.bf16.mxu0 0
      %3787 = vmatpush1.bf16.msra.mxu0 0
      %3788 = vmatprep.subr.bf16.mxu0 0
      %3789 = vmatpush1.bf16.msra.mxu0 0
      %3790 = vmatprep.subr.bf16.mxu0 0
      %3791 = vmatpush1.bf16.msra.mxu0 0
      %3792 = vmatprep.subr.bf16.mxu0 0
      %3793 = vmatpush1.bf16.msra.mxu0 0
      %3794 = vmatprep.subr.bf16.mxu0 0
      %3795 = vmatpush1.bf16.msra.mxu0 0
      %3796 = vmatprep.subr.bf16.mxu0 0
      %3797 = vmatpush1.bf16.msra.mxu0 %v3780
      %3798 = vmatprep.subr.bf16.mxu0 0
      %3799 = vmatpush2.bf16.msra.mxu0 0
      %3800 = vmatprep.subr.bf16.mxu0 0
      %3801 = vmatpush2.bf16.msra.mxu0 0
      %3802 = vmatprep.subr.bf16.mxu0 0
      %3803 = vmatpush2.bf16.msra.mxu0 0
      %3804 = vmatprep.subr.bf16.mxu0 0
      %3805 = vmatpush2.bf16.msra.mxu0 0
      %3806 = vmatprep.subr.bf16.mxu0 0
      %3807 = vmatpush2.bf16.msra.mxu0 0
      %3808 = vmatprep.subr.bf16.mxu0 0
      %3809 = vmatpush2.bf16.msra.mxu0 0
      %3810 = vmatprep.subr.bf16.mxu0 0
      %3811 = vmatpush2.bf16.msra.mxu0 0
      %3812 = vmatprep.subr.bf16.mxu0 0
      %3813 = vmatpush2.bf16.msra.mxu0 0
      %3814 = vmatprep.mubr.bf16.mxu0 0
      %3815 = vmatmul.mubr.bf16.gmra.mxu0 %v1972
      %v3816 = vpop.f32.mrf.mxu0
      %v3817 = vadd.f32 0.0, %v3816
      %v3818 = vpop.f32.mrf.mxu0
      %v3819 = vpop.f32.mrf.mxu0
      %v3820 = vadd.f32 0.0, %v3819
      %v3821 = vpop.f32.mrf.mxu0
      %3822 = vmatprep.mubr.bf16.mxu0 0
      %3823 = vmatmul.mubr.bf16.gmra.mxu0 %v1975
      %v3824 = vpop.f32.mrf.mxu0
      %v3825 = vadd.f32 0.0, %v3824
      %v3826 = vpop.f32.mrf.mxu0
      %v3827 = vpop.f32.mrf.mxu0
      %v3828 = vadd.f32 0.0, %v3827
      %v3829 = vpop.f32.mrf.mxu0
      %3830 = vmatprep.mubr.bf16.mxu0 0
      %3831 = vmatmul.mubr.bf16.gmra.mxu0 %v1978
      %v3832 = vpop.f32.mrf.mxu0
      %v3833 = vadd.f32 0.0, %v3832
      %v3834 = vpop.f32.mrf.mxu0
      %v3835 = vpop.f32.mrf.mxu0
      %v3836 = vadd.f32 0.0, %v3835
      %v3837 = vpop.f32.mrf.mxu0
      %3838 = vmatprep.mubr.bf16.mxu0 0
      %3839 = vmatmul.mubr.bf16.gmra.mxu0 %v1981
      %v3840 = vpop.f32.mrf.mxu0
      %v3841 = vadd.f32 0.0, %v3840
      %v3842 = vpop.f32.mrf.mxu0
      %v3843 = vpop.f32.mrf.mxu0
      %v3844 = vadd.f32 0.0, %v3843
      %v3845 = vpop.f32.mrf.mxu0
      %3846 = vmatprep.mubr.bf16.mxu0 0
      %3847 = vmatmul.mubr.bf16.gmra.mxu0 %v1984
      %v3848 = vpop.f32.mrf.mxu0
      %v3849 = vadd.f32 0.0, %v3848
      %v3850 = vpop.f32.mrf.mxu0
      %v3851 = vpop.f32.mrf.mxu0
      %v3852 = vadd.f32 0.0, %v3851
      %v3853 = vpop.f32.mrf.mxu0
      %3854 = vmatprep.mubr.bf16.mxu0 0
      %3855 = vmatmul.mubr.bf16.gmra.mxu0 %v1987
      %v3856 = vpop.f32.mrf.mxu0
      %v3857 = vadd.f32 0.0, %v3856
      %v3858 = vpop.f32.mrf.mxu0
      %v3859 = vpop.f32.mrf.mxu0
      %v3860 = vadd.f32 0.0, %v3859
      %v3861 = vpop.f32.mrf.mxu0
      %3862 = vmatprep.mubr.bf16.mxu0 0
      %3863 = vmatmul.mubr.bf16.gmra.mxu0 %v1990
      %v3864 = vpop.f32.mrf.mxu0
      %v3865 = vadd.f32 0.0, %v3864
      %v3866 = vpop.f32.mrf.mxu0
      %v3867 = vpop.f32.mrf.mxu0
      %v3868 = vadd.f32 0.0, %v3867
      %v3869 = vpop.f32.mrf.mxu0
      %3870 = vmatprep.mubr.bf16.mxu0 0
      %3871 = vmatmul.mubr.bf16.gmra.mxu0 %v1993
      %v3872 = vpop.f32.mrf.mxu0
      %v3873 = vadd.f32 0.0, %v3872
      %v3874 = vpop.f32.mrf.mxu0
      %v3875 = vpop.f32.mrf.mxu0
      %v3876 = vadd.f32 0.0, %v3875
      %v3877 = vpop.f32.mrf.mxu0
      %3878 = vmatprep.mubr.bf16.mxu0 0
      %3879 = vmatmul.mubr.bf16.gmra.mxu0 %v1996
      %v3880 = vpop.f32.mrf.mxu0
      %v3881 = vadd.f32 0.0, %v3880
      %v3882 = vpop.f32.mrf.mxu0
      %v3883 = vpop.f32.mrf.mxu0
      %v3884 = vadd.f32 0.0, %v3883
      %v3885 = vpop.f32.mrf.mxu0
      %3886 = vmatprep.mubr.bf16.mxu0 0
      %3887 = vmatmul.mubr.bf16.gmra.mxu0 %v1999
      %v3888 = vpop.f32.mrf.mxu0
      %v3889 = vadd.f32 0.0, %v3888
      %v3890 = vpop.f32.mrf.mxu0
      %v3891 = vpop.f32.mrf.mxu0
      %v3892 = vadd.f32 0.0, %v3891
      %v3893 = vpop.f32.mrf.mxu0
      %3894 = vmatprep.mubr.bf16.mxu0 0
      %3895 = vmatmul.mubr.bf16.gmra.mxu0 %v2002
      %v3896 = vpop.f32.mrf.mxu0
      %v3897 = vadd.f32 0.0, %v3896
      %v3898 = vpop.f32.mrf.mxu0
      %v3899 = vpop.f32.mrf.mxu0
      %v3900 = vadd.f32 0.0, %v3899
      %v3901 = vpop.f32.mrf.mxu0
      %3902 = vmatprep.mubr.bf16.mxu0 0
      %3903 = vmatmul.mubr.bf16.gmra.mxu0 %v2005
      %v3904 = vpop.f32.mrf.mxu0
      %v3905 = vadd.f32 0.0, %v3904
      %v3906 = vpop.f32.mrf.mxu0
      %v3907 = vpop.f32.mrf.mxu0
      %v3908 = vadd.f32 0.0, %v3907
      %v3909 = vpop.f32.mrf.mxu0
      %3910 = vmatprep.mubr.bf16.mxu0 0
      %3911 = vmatmul.mubr.bf16.gmra.mxu0 %v2008
      %v3912 = vpop.f32.mrf.mxu0
      %v3913 = vadd.f32 0.0, %v3912
      %v3914 = vpop.f32.mrf.mxu0
      %v3915 = vpop.f32.mrf.mxu0
      %v3916 = vadd.f32 0.0, %v3915
      %v3917 = vpop.f32.mrf.mxu0
      %3918 = vmatprep.mubr.bf16.mxu0 0
      %3919 = vmatmul.mubr.bf16.gmra.mxu0 %v2011
      %v3920 = vpop.f32.mrf.mxu0
      %v3921 = vadd.f32 0.0, %v3920
      %v3922 = vpop.f32.mrf.mxu0
      %v3923 = vpop.f32.mrf.mxu0
      %v3924 = vadd.f32 0.0, %v3923
      %v3925 = vpop.f32.mrf.mxu0
      %3926 = vmatprep.mubr.bf16.mxu0 0
      %3927 = vmatmul.mubr.bf16.gmra.mxu0 %v3131
      %v3928 = vpop.f32.mrf.mxu0
      %v3929 = vadd.f32 0.0, %v3928
      %v3930 = vpop.f32.mrf.mxu0
      %v3931 = vpop.f32.mrf.mxu0
      %v3932 = vadd.f32 0.0, %v3931
      %v3933 = vpop.f32.mrf.mxu0
      %3934 = vmatprep.mubr.bf16.mxu0 0
      %3935 = vmatmul.mubr.bf16.gmra.mxu0 %v3777
      %v3936 = vpop.f32.mrf.mxu0
      %v3937 = vadd.f32 0.0, %v3936
      %v3938 = vpop.f32.mrf.mxu0
      %v3939 = vpop.f32.mrf.mxu0
      %v3940 = vadd.f32 0.0, %v3939
      %v3941 = vpop.f32.mrf.mxu0
      %3942 = vdwg.mxu0
      %v3943 = vadd.f32 %v3715, %v3817
      %v3944 = vadd.f32 %v3716, %v3820
      %v3945 = vadd.f32 %v3717, %v3825
      %v3946 = vadd.f32 %v3718, %v3828
      %v3947 = vadd.f32 %v3719, %v3833
      %v3948 = vadd.f32 %v3720, %v3836
      %v3949 = vadd.f32 %v3721, %v3841
      %v3950 = vadd.f32 %v3722, %v3844
      %v3951 = vadd.f32 %v3723, %v3849
      %v3952 = vadd.f32 %v3724, %v3852
      %v3953 = vadd.f32 %v3725, %v3857
      %v3954 = vadd.f32 %v3726, %v3860
      %v3955 = vadd.f32 %v3727, %v3865
      %v3956 = vadd.f32 %v3728, %v3868
      %v3957 = vadd.f32 %v3729, %v3873
      %v3958 = vadd.f32 %v3730, %v3876
      %v3959 = vadd.f32 %v3731, %v3881
      %v3960 = vadd.f32 %v3732, %v3884
      %v3961 = vadd.f32 %v3733, %v3889
      %v3962 = vadd.f32 %v3734, %v3892
      %v3963 = vadd.f32 %v3735, %v3897
      %v3964 = vadd.f32 %v3736, %v3900
      %v3965 = vadd.f32 %v3737, %v3905
      %v3966 = vadd.f32 %v3738, %v3908
      %v3967 = vadd.f32 %v3739, %v3913
      %v3968 = vadd.f32 %v3740, %v3916
      %v3969 = vadd.f32 %v3741, %v3921
      %v3970 = vadd.f32 %v3742, %v3924
      %v3971 = vadd.f32 %v3743, %v3929
      %v3972 = vadd.f32 %v3744, %v3932
      %v3973 = vadd.f32 %v3745, %v3937
      %v3974 = vadd.f32 %v3746, %v3940
      %v3976 = vrot.slane %v1523, 5
      %v3977 = vrot.slane %v3976, 4
      %v3978 = vrot.slane %v1524, 5
      %v3979 = vsel %vm2488, %v3977, %v3978
      %v3980 = vrot.slane %v3978, 4
      %v3981 = vrot.slane %v1525, 5
      %v3982 = vsel %vm2488, %v3980, %v3981
      %s3983 = scalar_lea.vmem %s4, 16
      %v3984 = vld [vmem:[%s3983] sm:$0x3]
      %v3985 = vunpack.c.l.b16 %v3979
      %v3986 = vunpack.c.l.b16 %v3982
      %v3987 = vpack.c.b16 %v3986, %v3985
      %v3989 = vsel %vm1964, %v3987, 0
      %v3992 = vsel %vm2013, %v3984, 0
      %3994 = vmatprep.subr.bf16.mxu0 0
      %3995 = vmatpush1.bf16.msra.mxu0 0
      %3996 = vmatprep.subr.bf16.mxu0 0
      %3997 = vmatpush1.bf16.msra.mxu0 0
      %3998 = vmatprep.subr.bf16.mxu0 0
      %3999 = vmatpush1.bf16.msra.mxu0 0
      %4000 = vmatprep.subr.bf16.mxu0 0
      %4001 = vmatpush1.bf16.msra.mxu0 0
      %4002 = vmatprep.subr.bf16.mxu0 0
      %4003 = vmatpush1.bf16.msra.mxu0 0
      %4004 = vmatprep.subr.bf16.mxu0 0
      %4005 = vmatpush1.bf16.msra.mxu0 0
      %4006 = vmatprep.subr.bf16.mxu0 0
      %4007 = vmatpush1.bf16.msra.mxu0 0
      %4008 = vmatprep.subr.bf16.mxu0 0
      %4009 = vmatpush1.bf16.msra.mxu0 %v3992
      %4010 = vmatprep.subr.bf16.mxu0 0
      %4011 = vmatpush2.bf16.msra.mxu0 0
      %4012 = vmatprep.subr.bf16.mxu0 0
      %4013 = vmatpush2.bf16.msra.mxu0 0
      %4014 = vmatprep.subr.bf16.mxu0 0
      %4015 = vmatpush2.bf16.msra.mxu0 0
      %4016 = vmatprep.subr.bf16.mxu0 0
      %4017 = vmatpush2.bf16.msra.mxu0 0
      %4018 = vmatprep.subr.bf16.mxu0 0
      %4019 = vmatpush2.bf16.msra.mxu0 0
      %4020 = vmatprep.subr.bf16.mxu0 0
      %4021 = vmatpush2.bf16.msra.mxu0 0
      %4022 = vmatprep.subr.bf16.mxu0 0
      %4023 = vmatpush2.bf16.msra.mxu0 0
      %4024 = vmatprep.subr.bf16.mxu0 0
      %4025 = vmatpush2.bf16.msra.mxu0 0
      %4026 = vmatprep.mubr.bf16.mxu0 0
      %4027 = vmatmul.mubr.bf16.gmra.mxu0 %v2658
      %v4028 = vpop.f32.mrf.mxu0
      %v4029 = vadd.f32 0.0, %v4028
      %v4030 = vpop.f32.mrf.mxu0
      %v4031 = vpop.f32.mrf.mxu0
      %v4032 = vadd.f32 0.0, %v4031
      %v4033 = vpop.f32.mrf.mxu0
      %4034 = vmatprep.mubr.bf16.mxu0 0
      %4035 = vmatmul.mubr.bf16.gmra.mxu0 %v2661
      %v4036 = vpop.f32.mrf.mxu0
      %v4037 = vadd.f32 0.0, %v4036
      %v4038 = vpop.f32.mrf.mxu0
      %v4039 = vpop.f32.mrf.mxu0
      %v4040 = vadd.f32 0.0, %v4039
      %v4041 = vpop.f32.mrf.mxu0
      %4042 = vmatprep.mubr.bf16.mxu0 0
      %4043 = vmatmul.mubr.bf16.gmra.mxu0 %v2664
      %v4044 = vpop.f32.mrf.mxu0
      %v4045 = vadd.f32 0.0, %v4044
      %v4046 = vpop.f32.mrf.mxu0
      %v4047 = vpop.f32.mrf.mxu0
      %v4048 = vadd.f32 0.0, %v4047
      %v4049 = vpop.f32.mrf.mxu0
      %4050 = vmatprep.mubr.bf16.mxu0 0
      %4051 = vmatmul.mubr.bf16.gmra.mxu0 %v2667
      %v4052 = vpop.f32.mrf.mxu0
      %v4053 = vadd.f32 0.0, %v4052
      %v4054 = vpop.f32.mrf.mxu0
      %v4055 = vpop.f32.mrf.mxu0
      %v4056 = vadd.f32 0.0, %v4055
      %v4057 = vpop.f32.mrf.mxu0
      %4058 = vmatprep.mubr.bf16.mxu0 0
      %4059 = vmatmul.mubr.bf16.gmra.mxu0 %v2670
      %v4060 = vpop.f32.mrf.mxu0
      %v4061 = vadd.f32 0.0, %v4060
      %v4062 = vpop.f32.mrf.mxu0
      %v4063 = vpop.f32.mrf.mxu0
      %v4064 = vadd.f32 0.0, %v4063
      %v4065 = vpop.f32.mrf.mxu0
      %4066 = vmatprep.mubr.bf16.mxu0 0
      %4067 = vmatmul.mubr.bf16.gmra.mxu0 %v2673
      %v4068 = vpop.f32.mrf.mxu0
      %v4069 = vadd.f32 0.0, %v4068
      %v4070 = vpop.f32.mrf.mxu0
      %v4071 = vpop.f32.mrf.mxu0
      %v4072 = vadd.f32 0.0, %v4071
      %v4073 = vpop.f32.mrf.mxu0
      %4074 = vmatprep.mubr.bf16.mxu0 0
      %4075 = vmatmul.mubr.bf16.gmra.mxu0 %v2676
      %v4076 = vpop.f32.mrf.mxu0
      %v4077 = vadd.f32 0.0, %v4076
      %v4078 = vpop.f32.mrf.mxu0
      %v4079 = vpop.f32.mrf.mxu0
      %v4080 = vadd.f32 0.0, %v4079
      %v4081 = vpop.f32.mrf.mxu0
      %4082 = vmatprep.mubr.bf16.mxu0 0
      %4083 = vmatmul.mubr.bf16.gmra.mxu0 %v2679
      %v4084 = vpop.f32.mrf.mxu0
      %v4085 = vadd.f32 0.0, %v4084
      %v4086 = vpop.f32.mrf.mxu0
      %v4087 = vpop.f32.mrf.mxu0
      %v4088 = vadd.f32 0.0, %v4087
      %v4089 = vpop.f32.mrf.mxu0
      %4090 = vmatprep.mubr.bf16.mxu0 0
      %4091 = vmatmul.mubr.bf16.gmra.mxu0 %v2682
      %v4092 = vpop.f32.mrf.mxu0
      %v4093 = vadd.f32 0.0, %v4092
      %v4094 = vpop.f32.mrf.mxu0
      %v4095 = vpop.f32.mrf.mxu0
      %v4096 = vadd.f32 0.0, %v4095
      %v4097 = vpop.f32.mrf.mxu0
      %4098 = vmatprep.mubr.bf16.mxu0 0
      %4099 = vmatmul.mubr.bf16.gmra.mxu0 %v2685
      %v4100 = vpop.f32.mrf.mxu0
      %v4101 = vadd.f32 0.0, %v4100
      %v4102 = vpop.f32.mrf.mxu0
      %v4103 = vpop.f32.mrf.mxu0
      %v4104 = vadd.f32 0.0, %v4103
      %v4105 = vpop.f32.mrf.mxu0
      %4106 = vmatprep.mubr.bf16.mxu0 0
      %4107 = vmatmul.mubr.bf16.gmra.mxu0 %v2688
      %v4108 = vpop.f32.mrf.mxu0
      %v4109 = vadd.f32 0.0, %v4108
      %v4110 = vpop.f32.mrf.mxu0
      %v4111 = vpop.f32.mrf.mxu0
      %v4112 = vadd.f32 0.0, %v4111
      %v4113 = vpop.f32.mrf.mxu0
      %4114 = vmatprep.mubr.bf16.mxu0 0
      %4115 = vmatmul.mubr.bf16.gmra.mxu0 %v2691
      %v4116 = vpop.f32.mrf.mxu0
      %v4117 = vadd.f32 0.0, %v4116
      %v4118 = vpop.f32.mrf.mxu0
      %v4119 = vpop.f32.mrf.mxu0
      %v4120 = vadd.f32 0.0, %v4119
      %v4121 = vpop.f32.mrf.mxu0
      %4122 = vmatprep.mubr.bf16.mxu0 0
      %4123 = vmatmul.mubr.bf16.gmra.mxu0 %v2694
      %v4124 = vpop.f32.mrf.mxu0
      %v4125 = vadd.f32 0.0, %v4124
      %v4126 = vpop.f32.mrf.mxu0
      %v4127 = vpop.f32.mrf.mxu0
      %v4128 = vadd.f32 0.0, %v4127
      %v4129 = vpop.f32.mrf.mxu0
      %4130 = vmatprep.mubr.bf16.mxu0 0
      %4131 = vmatmul.mubr.bf16.gmra.mxu0 %v2697
      %v4132 = vpop.f32.mrf.mxu0
      %v4133 = vadd.f32 0.0, %v4132
      %v4134 = vpop.f32.mrf.mxu0
      %v4135 = vpop.f32.mrf.mxu0
      %v4136 = vadd.f32 0.0, %v4135
      %v4137 = vpop.f32.mrf.mxu0
      %4138 = vmatprep.mubr.bf16.mxu0 0
      %4139 = vmatmul.mubr.bf16.gmra.mxu0 %v3343
      %v4140 = vpop.f32.mrf.mxu0
      %v4141 = vadd.f32 0.0, %v4140
      %v4142 = vpop.f32.mrf.mxu0
      %v4143 = vpop.f32.mrf.mxu0
      %v4144 = vadd.f32 0.0, %v4143
      %v4145 = vpop.f32.mrf.mxu0
      %4146 = vmatprep.mubr.bf16.mxu0 0
      %4147 = vmatmul.mubr.bf16.gmra.mxu0 %v3989
      %v4148 = vpop.f32.mrf.mxu0
      %v4149 = vadd.f32 0.0, %v4148
      %v4150 = vpop.f32.mrf.mxu0
      %v4151 = vpop.f32.mrf.mxu0
      %v4152 = vadd.f32 0.0, %v4151
      %v4153 = vpop.f32.mrf.mxu0
      %4154 = vdwg.mxu0
      %v4155 = vadd.f32 %v3943, %v4029
      %v4156 = vadd.f32 %v3944, %v4032
      %v4157 = vadd.f32 %v3945, %v4037
      %v4158 = vadd.f32 %v3946, %v4040
      %v4159 = vadd.f32 %v3947, %v4045
      %v4160 = vadd.f32 %v3948, %v4048
      %v4161 = vadd.f32 %v3949, %v4053
      %v4162 = vadd.f32 %v3950, %v4056
      %v4163 = vadd.f32 %v3951, %v4061
      %v4164 = vadd.f32 %v3952, %v4064
      %v4165 = vadd.f32 %v3953, %v4069
      %v4166 = vadd.f32 %v3954, %v4072
      %v4167 = vadd.f32 %v3955, %v4077
      %v4168 = vadd.f32 %v3956, %v4080
      %v4169 = vadd.f32 %v3957, %v4085
      %v4170 = vadd.f32 %v3958, %v4088
      %v4171 = vadd.f32 %v3959, %v4093
      %v4172 = vadd.f32 %v3960, %v4096
      %v4173 = vadd.f32 %v3961, %v4101
      %v4174 = vadd.f32 %v3962, %v4104
      %v4175 = vadd.f32 %v3963, %v4109
      %v4176 = vadd.f32 %v3964, %v4112
      %v4177 = vadd.f32 %v3965, %v4117
      %v4178 = vadd.f32 %v3966, %v4120
      %v4179 = vadd.f32 %v3967, %v4125
      %v4180 = vadd.f32 %v3968, %v4128
      %v4181 = vadd.f32 %v3969, %v4133
      %v4182 = vadd.f32 %v3970, %v4136
      %v4183 = vadd.f32 %v3971, %v4141
      %v4184 = vadd.f32 %v3972, %v4144
      %v4185 = vadd.f32 %v3973, %v4149
      %v4186 = vadd.f32 %v3974, %v4152
      %v4187 = vld [vmem:[%s5] sm:$0x1]
      %v4189 = vlaneseq
      %v4190 = vshrl.u32 %v4189, 7
      %v4191 = vsub.s32 0, %v4190
      %v4192 = vrot.slane %v4187, %v4191
      %v4194 = vmul.f32 %v4155, %v4192
      %v4195 = vmul.f32 %v4156, %v4192
      %v4196 = vmul.f32 %v4157, %v4192
      %v4197 = vmul.f32 %v4158, %v4192
      %v4198 = vmul.f32 %v4159, %v4192
      %v4199 = vmul.f32 %v4160, %v4192
      %v4200 = vmul.f32 %v4161, %v4192
      %v4201 = vmul.f32 %v4162, %v4192
      %v4202 = vmul.f32 %v4163, %v4192
      %v4203 = vmul.f32 %v4164, %v4192
      %v4204 = vmul.f32 %v4165, %v4192
      %v4205 = vmul.f32 %v4166, %v4192
      %v4206 = vmul.f32 %v4167, %v4192
      %v4207 = vmul.f32 %v4168, %v4192
      %v4208 = vmul.f32 %v4169, %v4192
      %v4209 = vmul.f32 %v4170, %v4192
      %v4210 = vmul.f32 %v4171, %v4192
      %v4211 = vmul.f32 %v4172, %v4192
      %v4212 = vmul.f32 %v4173, %v4192
      %v4213 = vmul.f32 %v4174, %v4192
      %v4214 = vmul.f32 %v4175, %v4192
      %v4215 = vmul.f32 %v4176, %v4192
      %v4216 = vmul.f32 %v4177, %v4192
      %v4217 = vmul.f32 %v4178, %v4192
      %v4218 = vmul.f32 %v4179, %v4192
      %v4219 = vmul.f32 %v4180, %v4192
      %v4220 = vmul.f32 %v4181, %v4192
      %v4221 = vmul.f32 %v4182, %v4192
      %v4222 = vmul.f32 %v4183, %v4192
      %v4223 = vmul.f32 %v4184, %v4192
      %v4224 = vmul.f32 %v4185, %v4192
      %v4225 = vmul.f32 %v4186, %v4192
      %v4226 = vld [vmem:[%s6] sm:$0x1]
      %v4228 = vlaneseq
      %v4229 = vshrl.u32 %v4228, 7
      %v4230 = vsub.s32 0, %v4229
      %v4231 = vrot.slane %v4226, %v4230
      %v4233 = vadd.f32 %v4194, %v4231
      %v4234 = vadd.f32 %v4195, %v4231
      %v4235 = vadd.f32 %v4196, %v4231
      %v4236 = vadd.f32 %v4197, %v4231
      %v4237 = vadd.f32 %v4198, %v4231
      %v4238 = vadd.f32 %v4199, %v4231
      %v4239 = vadd.f32 %v4200, %v4231
      %v4240 = vadd.f32 %v4201, %v4231
      %v4241 = vadd.f32 %v4202, %v4231
      %v4242 = vadd.f32 %v4203, %v4231
      %v4243 = vadd.f32 %v4204, %v4231
      %v4244 = vadd.f32 %v4205, %v4231
      %v4245 = vadd.f32 %v4206, %v4231
      %v4246 = vadd.f32 %v4207, %v4231
      %v4247 = vadd.f32 %v4208, %v4231
      %v4248 = vadd.f32 %v4209, %v4231
      %v4249 = vadd.f32 %v4210, %v4231
      %v4250 = vadd.f32 %v4211, %v4231
      %v4251 = vadd.f32 %v4212, %v4231
      %v4252 = vadd.f32 %v4213, %v4231
      %v4253 = vadd.f32 %v4214, %v4231
      %v4254 = vadd.f32 %v4215, %v4231
      %v4255 = vadd.f32 %v4216, %v4231
      %v4256 = vadd.f32 %v4217, %v4231
      %v4257 = vadd.f32 %v4218, %v4231
      %v4258 = vadd.f32 %v4219, %v4231
      %v4259 = vadd.f32 %v4220, %v4231
      %v4260 = vadd.f32 %v4221, %v4231
      %v4261 = vadd.f32 %v4222, %v4231
      %v4262 = vadd.f32 %v4223, %v4231
      %v4263 = vadd.f32 %v4224, %v4231
      %v4264 = vadd.f32 %v4225, %v4231
      %v4265 = vmax.f32 %v4233, 0.0
      %v4266 = vmax.f32 %v4234, 0.0
      %v4267 = vmax.f32 %v4235, 0.0
      %v4268 = vmax.f32 %v4236, 0.0
      %v4269 = vmax.f32 %v4237, 0.0
      %v4270 = vmax.f32 %v4238, 0.0
      %v4271 = vmax.f32 %v4239, 0.0
      %v4272 = vmax.f32 %v4240, 0.0
      %v4273 = vmax.f32 %v4241, 0.0
      %v4274 = vmax.f32 %v4242, 0.0
      %v4275 = vmax.f32 %v4243, 0.0
      %v4276 = vmax.f32 %v4244, 0.0
      %v4277 = vmax.f32 %v4245, 0.0
      %v4278 = vmax.f32 %v4246, 0.0
      %v4279 = vmax.f32 %v4247, 0.0
      %v4280 = vmax.f32 %v4248, 0.0
      %v4281 = vmax.f32 %v4249, 0.0
      %v4282 = vmax.f32 %v4250, 0.0
      %v4283 = vmax.f32 %v4251, 0.0
      %v4284 = vmax.f32 %v4252, 0.0
      %v4285 = vmax.f32 %v4253, 0.0
      %v4286 = vmax.f32 %v4254, 0.0
      %v4287 = vmax.f32 %v4255, 0.0
      %v4288 = vmax.f32 %v4256, 0.0
      %v4289 = vmax.f32 %v4257, 0.0
      %v4290 = vmax.f32 %v4258, 0.0
      %v4291 = vmax.f32 %v4259, 0.0
      %v4292 = vmax.f32 %v4260, 0.0
      %v4293 = vmax.f32 %v4261, 0.0
      %v4294 = vmax.f32 %v4262, 0.0
      %v4295 = vmax.f32 %v4263, 0.0
      %v4296 = vmax.f32 %v4264, 0.0
      %v4297 = vpack.c.bf16 %v4266, %v4265
      %v4298 = vpack.c.bf16 %v4268, %v4267
      %v4299 = vpack.c.bf16 %v4270, %v4269
      %v4300 = vpack.c.bf16 %v4272, %v4271
      %v4301 = vpack.c.bf16 %v4274, %v4273
      %v4302 = vpack.c.bf16 %v4276, %v4275
      %v4303 = vpack.c.bf16 %v4278, %v4277
      %v4304 = vpack.c.bf16 %v4280, %v4279
      %v4305 = vpack.c.bf16 %v4282, %v4281
      %v4306 = vpack.c.bf16 %v4284, %v4283
      %v4307 = vpack.c.bf16 %v4286, %v4285
      %v4308 = vpack.c.bf16 %v4288, %v4287
      %v4309 = vpack.c.bf16 %v4290, %v4289
      %v4310 = vpack.c.bf16 %v4292, %v4291
      %v4311 = vpack.c.bf16 %v4294, %v4293
      %v4312 = vpack.c.bf16 %v4296, %v4295
      %v4313 = vld [vmem:[%s7] sm:$0x3]
      %v4315 = vsel %vm1964, %v4297, 0
      %v4318 = vsel %vm1964, %v4298, 0
      %v4321 = vsel %vm1964, %v4299, 0
      %v4324 = vsel %vm1964, %v4300, 0
      %v4327 = vsel %vm1964, %v4301, 0
      %v4330 = vsel %vm1964, %v4302, 0
      %v4333 = vsel %vm1964, %v4303, 0
      %v4336 = vsel %vm1964, %v4304, 0
      %v4339 = vsel %vm1964, %v4305, 0
      %v4342 = vsel %vm1964, %v4306, 0
      %v4345 = vsel %vm1964, %v4307, 0
      %v4348 = vsel %vm1964, %v4308, 0
      %v4351 = vsel %vm1964, %v4309, 0
      %v4354 = vsel %vm1964, %v4310, 0
      %v4357 = vsel %vm1964, %v4311, 0
      %v4360 = vsel %vm1964, %v4312, 0
      %v4363 = vsel %vm2013, %v4313, 0
      %4365 = vmatprep.subr.bf16.mxu0 0
      %4366 = vmatpush1.bf16.msra.mxu0 0
      %4367 = vmatprep.subr.bf16.mxu0 0
      %4368 = vmatpush1.bf16.msra.mxu0 0
      %4369 = vmatprep.subr.bf16.mxu0 0
      %4370 = vmatpush1.bf16.msra.mxu0 0
      %4371 = vmatprep.subr.bf16.mxu0 0
      %4372 = vmatpush1.bf16.msra.mxu0 0
      %4373 = vmatprep.subr.bf16.mxu0 0
      %4374 = vmatpush1.bf16.msra.mxu0 0
      %4375 = vmatprep.subr.bf16.mxu0 0
      %4376 = vmatpush1.bf16.msra.mxu0 0
      %4377 = vmatprep.subr.bf16.mxu0 0
      %4378 = vmatpush1.bf16.msra.mxu0 0
      %4379 = vmatprep.subr.bf16.mxu0 0
      %4380 = vmatpush1.bf16.msra.mxu0 %v4363
      %4381 = vmatprep.subr.bf16.mxu0 0
      %4382 = vmatpush2.bf16.msra.mxu0 0
      %4383 = vmatprep.subr.bf16.mxu0 0
      %4384 = vmatpush2.bf16.msra.mxu0 0
      %4385 = vmatprep.subr.bf16.mxu0 0
      %4386 = vmatpush2.bf16.msra.mxu0 0
      %4387 = vmatprep.subr.bf16.mxu0 0
      %4388 = vmatpush2.bf16.msra.mxu0 0
      %4389 = vmatprep.subr.bf16.mxu0 0
      %4390 = vmatpush2.bf16.msra.mxu0 0
      %4391 = vmatprep.subr.bf16.mxu0 0
      %4392 = vmatpush2.bf16.msra.mxu0 0
      %4393 = vmatprep.subr.bf16.mxu0 0
      %4394 = vmatpush2.bf16.msra.mxu0 0
      %4395 = vmatprep.subr.bf16.mxu0 0
      %4396 = vmatpush2.bf16.msra.mxu0 0
      %4397 = vmatprep.mubr.bf16.mxu0 0
      %4398 = vmatmul.mubr.bf16.gmra.mxu0 %v4315
      %v4399 = vpop.f32.mrf.mxu0
      %v4400 = vadd.f32 0.0, %v4399
      %v4401 = vpop.f32.mrf.mxu0
      %v4402 = vpop.f32.mrf.mxu0
      %v4403 = vadd.f32 0.0, %v4402
      %v4404 = vpop.f32.mrf.mxu0
      %4405 = vmatprep.mubr.bf16.mxu0 0
      %4406 = vmatmul.mubr.bf16.gmra.mxu0 %v4318
      %v4407 = vpop.f32.mrf.mxu0
      %v4408 = vadd.f32 0.0, %v4407
      %v4409 = vpop.f32.mrf.mxu0
      %v4410 = vpop.f32.mrf.mxu0
      %v4411 = vadd.f32 0.0, %v4410
      %v4412 = vpop.f32.mrf.mxu0
      %4413 = vmatprep.mubr.bf16.mxu0 0
      %4414 = vmatmul.mubr.bf16.gmra.mxu0 %v4321
      %v4415 = vpop.f32.mrf.mxu0
      %v4416 = vadd.f32 0.0, %v4415
      %v4417 = vpop.f32.mrf.mxu0
      %v4418 = vpop.f32.mrf.mxu0
      %v4419 = vadd.f32 0.0, %v4418
      %v4420 = vpop.f32.mrf.mxu0
      %4421 = vmatprep.mubr.bf16.mxu0 0
      %4422 = vmatmul.mubr.bf16.gmra.mxu0 %v4324
      %v4423 = vpop.f32.mrf.mxu0
      %v4424 = vadd.f32 0.0, %v4423
      %v4425 = vpop.f32.mrf.mxu0
      %v4426 = vpop.f32.mrf.mxu0
      %v4427 = vadd.f32 0.0, %v4426
      %v4428 = vpop.f32.mrf.mxu0
      %4429 = vmatprep.mubr.bf16.mxu0 0
      %4430 = vmatmul.mubr.bf16.gmra.mxu0 %v4327
      %v4431 = vpop.f32.mrf.mxu0
      %v4432 = vadd.f32 0.0, %v4431
      %v4433 = vpop.f32.mrf.mxu0
      %v4434 = vpop.f32.mrf.mxu0
      %v4435 = vadd.f32 0.0, %v4434
      %v4436 = vpop.f32.mrf.mxu0
      %4437 = vmatprep.mubr.bf16.mxu0 0
      %4438 = vmatmul.mubr.bf16.gmra.mxu0 %v4330
      %v4439 = vpop.f32.mrf.mxu0
      %v4440 = vadd.f32 0.0, %v4439
      %v4441 = vpop.f32.mrf.mxu0
      %v4442 = vpop.f32.mrf.mxu0
      %v4443 = vadd.f32 0.0, %v4442
      %v4444 = vpop.f32.mrf.mxu0
      %4445 = vmatprep.mubr.bf16.mxu0 0
      %4446 = vmatmul.mubr.bf16.gmra.mxu0 %v4333
      %v4447 = vpop.f32.mrf.mxu0
      %v4448 = vadd.f32 0.0, %v4447
      %v4449 = vpop.f32.mrf.mxu0
      %v4450 = vpop.f32.mrf.mxu0
      %v4451 = vadd.f32 0.0, %v4450
      %v4452 = vpop.f32.mrf.mxu0
      %4453 = vmatprep.mubr.bf16.mxu0 0
      %4454 = vmatmul.mubr.bf16.gmra.mxu0 %v4336
      %v4455 = vpop.f32.mrf.mxu0
      %v4456 = vadd.f32 0.0, %v4455
      %v4457 = vpop.f32.mrf.mxu0
      %v4458 = vpop.f32.mrf.mxu0
      %v4459 = vadd.f32 0.0, %v4458
      %v4460 = vpop.f32.mrf.mxu0
      %4461 = vmatprep.mubr.bf16.mxu0 0
      %4462 = vmatmul.mubr.bf16.gmra.mxu0 %v4339
      %v4463 = vpop.f32.mrf.mxu0
      %v4464 = vadd.f32 0.0, %v4463
      %v4465 = vpop.f32.mrf.mxu0
      %v4466 = vpop.f32.mrf.mxu0
      %v4467 = vadd.f32 0.0, %v4466
      %v4468 = vpop.f32.mrf.mxu0
      %4469 = vmatprep.mubr.bf16.mxu0 0
      %4470 = vmatmul.mubr.bf16.gmra.mxu0 %v4342
      %v4471 = vpop.f32.mrf.mxu0
      %v4472 = vadd.f32 0.0, %v4471
      %v4473 = vpop.f32.mrf.mxu0
      %v4474 = vpop.f32.mrf.mxu0
      %v4475 = vadd.f32 0.0, %v4474
      %v4476 = vpop.f32.mrf.mxu0
      %4477 = vmatprep.mubr.bf16.mxu0 0
      %4478 = vmatmul.mubr.bf16.gmra.mxu0 %v4345
      %v4479 = vpop.f32.mrf.mxu0
      %v4480 = vadd.f32 0.0, %v4479
      %v4481 = vpop.f32.mrf.mxu0
      %v4482 = vpop.f32.mrf.mxu0
      %v4483 = vadd.f32 0.0, %v4482
      %v4484 = vpop.f32.mrf.mxu0
      %4485 = vmatprep.mubr.bf16.mxu0 0
      %4486 = vmatmul.mubr.bf16.gmra.mxu0 %v4348
      %v4487 = vpop.f32.mrf.mxu0
      %v4488 = vadd.f32 0.0, %v4487
      %v4489 = vpop.f32.mrf.mxu0
      %v4490 = vpop.f32.mrf.mxu0
      %v4491 = vadd.f32 0.0, %v4490
      %v4492 = vpop.f32.mrf.mxu0
      %4493 = vmatprep.mubr.bf16.mxu0 0
      %4494 = vmatmul.mubr.bf16.gmra.mxu0 %v4351
      %v4495 = vpop.f32.mrf.mxu0
      %v4496 = vadd.f32 0.0, %v4495
      %v4497 = vpop.f32.mrf.mxu0
      %v4498 = vpop.f32.mrf.mxu0
      %v4499 = vadd.f32 0.0, %v4498
      %v4500 = vpop.f32.mrf.mxu0
      %4501 = vmatprep.mubr.bf16.mxu0 0
      %4502 = vmatmul.mubr.bf16.gmra.mxu0 %v4354
      %v4503 = vpop.f32.mrf.mxu0
      %v4504 = vadd.f32 0.0, %v4503
      %v4505 = vpop.f32.mrf.mxu0
      %v4506 = vpop.f32.mrf.mxu0
      %v4507 = vadd.f32 0.0, %v4506
      %v4508 = vpop.f32.mrf.mxu0
      %4509 = vmatprep.mubr.bf16.mxu0 0
      %4510 = vmatmul.mubr.bf16.gmra.mxu0 %v4357
      %v4511 = vpop.f32.mrf.mxu0
      %v4512 = vadd.f32 0.0, %v4511
      %v4513 = vpop.f32.mrf.mxu0
      %v4514 = vpop.f32.mrf.mxu0
      %v4515 = vadd.f32 0.0, %v4514
      %v4516 = vpop.f32.mrf.mxu0
      %4517 = vmatprep.mubr.bf16.mxu0 0
      %4518 = vmatmul.mubr.bf16.gmra.mxu0 %v4360
      %v4519 = vpop.f32.mrf.mxu0
      %v4520 = vadd.f32 0.0, %v4519
      %v4521 = vpop.f32.mrf.mxu0
      %v4522 = vpop.f32.mrf.mxu0
      %v4523 = vadd.f32 0.0, %v4522
      %v4524 = vpop.f32.mrf.mxu0
      %4525 = vdwg.mxu0
      %v4526 = vld [vmem:[%s8] sm:$0x1]
      %v4528 = vlaneseq
      %v4529 = vshrl.u32 %v4528, 7
      %v4530 = vsub.s32 0, %v4529
      %v4531 = vrot.slane %v4526, %v4530
      %v4533 = vmul.f32 %v4400, %v4531
      %v4534 = vmul.f32 %v4403, %v4531
      %v4535 = vmul.f32 %v4408, %v4531
      %v4536 = vmul.f32 %v4411, %v4531
      %v4537 = vmul.f32 %v4416, %v4531
      %v4538 = vmul.f32 %v4419, %v4531
      %v4539 = vmul.f32 %v4424, %v4531
      %v4540 = vmul.f32 %v4427, %v4531
      %v4541 = vmul.f32 %v4432, %v4531
      %v4542 = vmul.f32 %v4435, %v4531
      %v4543 = vmul.f32 %v4440, %v4531
      %v4544 = vmul.f32 %v4443, %v4531
      %v4545 = vmul.f32 %v4448, %v4531
      %v4546 = vmul.f32 %v4451, %v4531
      %v4547 = vmul.f32 %v4456, %v4531
      %v4548 = vmul.f32 %v4459, %v4531
      %v4549 = vmul.f32 %v4464, %v4531
      %v4550 = vmul.f32 %v4467, %v4531
      %v4551 = vmul.f32 %v4472, %v4531
      %v4552 = vmul.f32 %v4475, %v4531
      %v4553 = vmul.f32 %v4480, %v4531
      %v4554 = vmul.f32 %v4483, %v4531
      %v4555 = vmul.f32 %v4488, %v4531
      %v4556 = vmul.f32 %v4491, %v4531
      %v4557 = vmul.f32 %v4496, %v4531
      %v4558 = vmul.f32 %v4499, %v4531
      %v4559 = vmul.f32 %v4504, %v4531
      %v4560 = vmul.f32 %v4507, %v4531
      %v4561 = vmul.f32 %v4512, %v4531
      %v4562 = vmul.f32 %v4515, %v4531
      %v4563 = vmul.f32 %v4520, %v4531
      %v4564 = vmul.f32 %v4523, %v4531
      %v4565 = vld [vmem:[%s9] sm:$0x1]
      %v4567 = vlaneseq
      %v4568 = vshrl.u32 %v4567, 7
      %v4569 = vsub.s32 0, %v4568
      %v4570 = vrot.slane %v4565, %v4569
      %v4572 = vadd.f32 %v4533, %v4570
      %v4573 = vadd.f32 %v4534, %v4570
      %v4574 = vadd.f32 %v4535, %v4570
      %v4575 = vadd.f32 %v4536, %v4570
      %v4576 = vadd.f32 %v4537, %v4570
      %v4577 = vadd.f32 %v4538, %v4570
      %v4578 = vadd.f32 %v4539, %v4570
      %v4579 = vadd.f32 %v4540, %v4570
      %v4580 = vadd.f32 %v4541, %v4570
      %v4581 = vadd.f32 %v4542, %v4570
      %v4582 = vadd.f32 %v4543, %v4570
      %v4583 = vadd.f32 %v4544, %v4570
      %v4584 = vadd.f32 %v4545, %v4570
      %v4585 = vadd.f32 %v4546, %v4570
      %v4586 = vadd.f32 %v4547, %v4570
      %v4587 = vadd.f32 %v4548, %v4570
      %v4588 = vadd.f32 %v4549, %v4570
      %v4589 = vadd.f32 %v4550, %v4570
      %v4590 = vadd.f32 %v4551, %v4570
      %v4591 = vadd.f32 %v4552, %v4570
      %v4592 = vadd.f32 %v4553, %v4570
      %v4593 = vadd.f32 %v4554, %v4570
      %v4594 = vadd.f32 %v4555, %v4570
      %v4595 = vadd.f32 %v4556, %v4570
      %v4596 = vadd.f32 %v4557, %v4570
      %v4597 = vadd.f32 %v4558, %v4570
      %v4598 = vadd.f32 %v4559, %v4570
      %v4599 = vadd.f32 %v4560, %v4570
      %v4600 = vadd.f32 %v4561, %v4570
      %v4601 = vadd.f32 %v4562, %v4570
      %v4602 = vadd.f32 %v4563, %v4570
      %v4603 = vadd.f32 %v4564, %v4570
      %v4604 = vld [vmem:[%s10] sm:$0xf]
      %v4606 = vsel %vm604, %v4604, 0
      %4608 = vmatprep.subr.bf16.mxu0 0
      %4609 = vmatpush1.bf16.msra.mxu0 0
      %4610 = vmatprep.subr.bf16.mxu0 0
      %4611 = vmatpush1.bf16.msra.mxu0 0
      %4612 = vmatprep.subr.bf16.mxu0 0
      %4613 = vmatpush1.bf16.msra.mxu0 0
      %4614 = vmatprep.subr.bf16.mxu0 0
      %4615 = vmatpush1.bf16.msra.mxu0 0
      %4616 = vmatprep.subr.bf16.mxu0 0
      %4617 = vmatpush1.bf16.msra.mxu0 0
      %4618 = vmatprep.subr.bf16.mxu0 0
      %4619 = vmatpush1.bf16.msra.mxu0 0
      %4620 = vmatprep.subr.bf16.mxu0 0
      %4621 = vmatpush1.bf16.msra.mxu0 0
      %4622 = vmatprep.subr.bf16.mxu0 0
      %4623 = vmatpush1.bf16.msra.mxu0 %v4606
      %4624 = vmatprep.subr.bf16.mxu0 0
      %4625 = vmatpush2.bf16.msra.mxu0 0
      %4626 = vmatprep.subr.bf16.mxu0 0
      %4627 = vmatpush2.bf16.msra.mxu0 0
      %4628 = vmatprep.subr.bf16.mxu0 0
      %4629 = vmatpush2.bf16.msra.mxu0 0
      %4630 = vmatprep.subr.bf16.mxu0 0
      %4631 = vmatpush2.bf16.msra.mxu0 0
      %4632 = vmatprep.subr.bf16.mxu0 0
      %4633 = vmatpush2.bf16.msra.mxu0 0
      %4634 = vmatprep.subr.bf16.mxu0 0
      %4635 = vmatpush2.bf16.msra.mxu0 0
      %4636 = vmatprep.subr.bf16.mxu0 0
      %4637 = vmatpush2.bf16.msra.mxu0 0
      %4638 = vmatprep.subr.bf16.mxu0 0
      %4639 = vmatpush2.bf16.msra.mxu0 0
      %4640 = vmatprep.mubr.bf16.mxu0 0
      %4641 = vmatmul.mubr.bf16.gmra.mxu0 %v557
      %v4642 = vpop.f32.mrf.mxu0
      %v4643 = vadd.f32 0.0, %v4642
      %v4644 = vpop.f32.mrf.mxu0
      %v4645 = vpop.f32.mrf.mxu0
      %v4646 = vadd.f32 0.0, %v4645
      %v4647 = vpop.f32.mrf.mxu0
      %4648 = vmatprep.mubr.bf16.mxu0 0
      %4649 = vmatmul.mubr.bf16.gmra.mxu0 %v560
      %v4650 = vpop.f32.mrf.mxu0
      %v4651 = vadd.f32 0.0, %v4650
      %v4652 = vpop.f32.mrf.mxu0
      %v4653 = vpop.f32.mrf.mxu0
      %v4654 = vadd.f32 0.0, %v4653
      %v4655 = vpop.f32.mrf.mxu0
      %4656 = vmatprep.mubr.bf16.mxu0 0
      %4657 = vmatmul.mubr.bf16.gmra.mxu0 %v563
      %v4658 = vpop.f32.mrf.mxu0
      %v4659 = vadd.f32 0.0, %v4658
      %v4660 = vpop.f32.mrf.mxu0
      %v4661 = vpop.f32.mrf.mxu0
      %v4662 = vadd.f32 0.0, %v4661
      %v4663 = vpop.f32.mrf.mxu0
      %4664 = vmatprep.mubr.bf16.mxu0 0
      %4665 = vmatmul.mubr.bf16.gmra.mxu0 %v566
      %v4666 = vpop.f32.mrf.mxu0
      %v4667 = vadd.f32 0.0, %v4666
      %v4668 = vpop.f32.mrf.mxu0
      %v4669 = vpop.f32.mrf.mxu0
      %v4670 = vadd.f32 0.0, %v4669
      %v4671 = vpop.f32.mrf.mxu0
      %4672 = vmatprep.mubr.bf16.mxu0 0
      %4673 = vmatmul.mubr.bf16.gmra.mxu0 %v569
      %v4674 = vpop.f32.mrf.mxu0
      %v4675 = vadd.f32 0.0, %v4674
      %v4676 = vpop.f32.mrf.mxu0
      %v4677 = vpop.f32.mrf.mxu0
      %v4678 = vadd.f32 0.0, %v4677
      %v4679 = vpop.f32.mrf.mxu0
      %4680 = vmatprep.mubr.bf16.mxu0 0
      %4681 = vmatmul.mubr.bf16.gmra.mxu0 %v572
      %v4682 = vpop.f32.mrf.mxu0
      %v4683 = vadd.f32 0.0, %v4682
      %v4684 = vpop.f32.mrf.mxu0
      %v4685 = vpop.f32.mrf.mxu0
      %v4686 = vadd.f32 0.0, %v4685
      %v4687 = vpop.f32.mrf.mxu0
      %4688 = vmatprep.mubr.bf16.mxu0 0
      %4689 = vmatmul.mubr.bf16.gmra.mxu0 %v575
      %v4690 = vpop.f32.mrf.mxu0
      %v4691 = vadd.f32 0.0, %v4690
      %v4692 = vpop.f32.mrf.mxu0
      %v4693 = vpop.f32.mrf.mxu0
      %v4694 = vadd.f32 0.0, %v4693
      %v4695 = vpop.f32.mrf.mxu0
      %4696 = vmatprep.mubr.bf16.mxu0 0
      %4697 = vmatmul.mubr.bf16.gmra.mxu0 %v578
      %v4698 = vpop.f32.mrf.mxu0
      %v4699 = vadd.f32 0.0, %v4698
      %v4700 = vpop.f32.mrf.mxu0
      %v4701 = vpop.f32.mrf.mxu0
      %v4702 = vadd.f32 0.0, %v4701
      %v4703 = vpop.f32.mrf.mxu0
      %4704 = vmatprep.mubr.bf16.mxu0 0
      %4705 = vmatmul.mubr.bf16.gmra.mxu0 %v581
      %v4706 = vpop.f32.mrf.mxu0
      %v4707 = vadd.f32 0.0, %v4706
      %v4708 = vpop.f32.mrf.mxu0
      %v4709 = vpop.f32.mrf.mxu0
      %v4710 = vadd.f32 0.0, %v4709
      %v4711 = vpop.f32.mrf.mxu0
      %4712 = vmatprep.mubr.bf16.mxu0 0
      %4713 = vmatmul.mubr.bf16.gmra.mxu0 %v584
      %v4714 = vpop.f32.mrf.mxu0
      %v4715 = vadd.f32 0.0, %v4714
      %v4716 = vpop.f32.mrf.mxu0
      %v4717 = vpop.f32.mrf.mxu0
      %v4718 = vadd.f32 0.0, %v4717
      %v4719 = vpop.f32.mrf.mxu0
      %4720 = vmatprep.mubr.bf16.mxu0 0
      %4721 = vmatmul.mubr.bf16.gmra.mxu0 %v587
      %v4722 = vpop.f32.mrf.mxu0
      %v4723 = vadd.f32 0.0, %v4722
      %v4724 = vpop.f32.mrf.mxu0
      %v4725 = vpop.f32.mrf.mxu0
      %v4726 = vadd.f32 0.0, %v4725
      %v4727 = vpop.f32.mrf.mxu0
      %4728 = vmatprep.mubr.bf16.mxu0 0
      %4729 = vmatmul.mubr.bf16.gmra.mxu0 %v590
      %v4730 = vpop.f32.mrf.mxu0
      %v4731 = vadd.f32 0.0, %v4730
      %v4732 = vpop.f32.mrf.mxu0
      %v4733 = vpop.f32.mrf.mxu0
      %v4734 = vadd.f32 0.0, %v4733
      %v4735 = vpop.f32.mrf.mxu0
      %4736 = vmatprep.mubr.bf16.mxu0 0
      %4737 = vmatmul.mubr.bf16.gmra.mxu0 %v593
      %v4738 = vpop.f32.mrf.mxu0
      %v4739 = vadd.f32 0.0, %v4738
      %v4740 = vpop.f32.mrf.mxu0
      %v4741 = vpop.f32.mrf.mxu0
      %v4742 = vadd.f32 0.0, %v4741
      %v4743 = vpop.f32.mrf.mxu0
      %4744 = vmatprep.mubr.bf16.mxu0 0
      %4745 = vmatmul.mubr.bf16.gmra.mxu0 %v596
      %v4746 = vpop.f32.mrf.mxu0
      %v4747 = vadd.f32 0.0, %v4746
      %v4748 = vpop.f32.mrf.mxu0
      %v4749 = vpop.f32.mrf.mxu0
      %v4750 = vadd.f32 0.0, %v4749
      %v4751 = vpop.f32.mrf.mxu0
      %4752 = vmatprep.mubr.bf16.mxu0 0
      %4753 = vmatmul.mubr.bf16.gmra.mxu0 %v599
      %v4754 = vpop.f32.mrf.mxu0
      %v4755 = vadd.f32 0.0, %v4754
      %v4756 = vpop.f32.mrf.mxu0
      %v4757 = vpop.f32.mrf.mxu0
      %v4758 = vadd.f32 0.0, %v4757
      %v4759 = vpop.f32.mrf.mxu0
      %4760 = vmatprep.mubr.bf16.mxu0 0
      %4761 = vmatmul.mubr.bf16.gmra.mxu0 %v602
      %v4762 = vpop.f32.mrf.mxu0
      %v4763 = vadd.f32 0.0, %v4762
      %v4764 = vpop.f32.mrf.mxu0
      %v4765 = vpop.f32.mrf.mxu0
      %v4766 = vadd.f32 0.0, %v4765
      %v4767 = vpop.f32.mrf.mxu0
      %4768 = vdwg.mxu0
      %v4769 = vld [vmem:[%s11] sm:$0x1]
      %v4771 = vlaneseq
      %v4772 = vshrl.u32 %v4771, 7
      %v4773 = vsub.s32 0, %v4772
      %v4774 = vrot.slane %v4769, %v4773
      %v4776 = vmul.f32 %v4643, %v4774
      %v4777 = vmul.f32 %v4646, %v4774
      %v4778 = vmul.f32 %v4651, %v4774
      %v4779 = vmul.f32 %v4654, %v4774
      %v4780 = vmul.f32 %v4659, %v4774
      %v4781 = vmul.f32 %v4662, %v4774
      %v4782 = vmul.f32 %v4667, %v4774
      %v4783 = vmul.f32 %v4670, %v4774
      %v4784 = vmul.f32 %v4675, %v4774
      %v4785 = vmul.f32 %v4678, %v4774
      %v4786 = vmul.f32 %v4683, %v4774
      %v4787 = vmul.f32 %v4686, %v4774
      %v4788 = vmul.f32 %v4691, %v4774
      %v4789 = vmul.f32 %v4694, %v4774
      %v4790 = vmul.f32 %v4699, %v4774
      %v4791 = vmul.f32 %v4702, %v4774
      %v4792 = vmul.f32 %v4707, %v4774
      %v4793 = vmul.f32 %v4710, %v4774
      %v4794 = vmul.f32 %v4715, %v4774
      %v4795 = vmul.f32 %v4718, %v4774
      %v4796 = vmul.f32 %v4723, %v4774
      %v4797 = vmul.f32 %v4726, %v4774
      %v4798 = vmul.f32 %v4731, %v4774
      %v4799 = vmul.f32 %v4734, %v4774
      %v4800 = vmul.f32 %v4739, %v4774
      %v4801 = vmul.f32 %v4742, %v4774
      %v4802 = vmul.f32 %v4747, %v4774
      %v4803 = vmul.f32 %v4750, %v4774
      %v4804 = vmul.f32 %v4755, %v4774
      %v4805 = vmul.f32 %v4758, %v4774
      %v4806 = vmul.f32 %v4763, %v4774
      %v4807 = vmul.f32 %v4766, %v4774
      %v4808 = vld [vmem:[%s12] sm:$0x1]
      %v4810 = vlaneseq
      %v4811 = vshrl.u32 %v4810, 7
      %v4812 = vsub.s32 0, %v4811
      %v4813 = vrot.slane %v4808, %v4812
      %v4815 = vadd.f32 %v4776, %v4813
      %v4816 = vadd.f32 %v4777, %v4813
      %v4817 = vadd.f32 %v4778, %v4813
      %v4818 = vadd.f32 %v4779, %v4813
      %v4819 = vadd.f32 %v4780, %v4813
      %v4820 = vadd.f32 %v4781, %v4813
      %v4821 = vadd.f32 %v4782, %v4813
      %v4822 = vadd.f32 %v4783, %v4813
      %v4823 = vadd.f32 %v4784, %v4813
      %v4824 = vadd.f32 %v4785, %v4813
      %v4825 = vadd.f32 %v4786, %v4813
      %v4826 = vadd.f32 %v4787, %v4813
      %v4827 = vadd.f32 %v4788, %v4813
      %v4828 = vadd.f32 %v4789, %v4813
      %v4829 = vadd.f32 %v4790, %v4813
      %v4830 = vadd.f32 %v4791, %v4813
      %v4831 = vadd.f32 %v4792, %v4813
      %v4832 = vadd.f32 %v4793, %v4813
      %v4833 = vadd.f32 %v4794, %v4813
      %v4834 = vadd.f32 %v4795, %v4813
      %v4835 = vadd.f32 %v4796, %v4813
      %v4836 = vadd.f32 %v4797, %v4813
      %v4837 = vadd.f32 %v4798, %v4813
      %v4838 = vadd.f32 %v4799, %v4813
      %v4839 = vadd.f32 %v4800, %v4813
      %v4840 = vadd.f32 %v4801, %v4813
      %v4841 = vadd.f32 %v4802, %v4813
      %v4842 = vadd.f32 %v4803, %v4813
      %v4843 = vadd.f32 %v4804, %v4813
      %v4844 = vadd.f32 %v4805, %v4813
      %v4845 = vadd.f32 %v4806, %v4813
      %v4846 = vadd.f32 %v4807, %v4813
      %v4847 = vadd.f32 %v4572, %v4815
      %v4848 = vadd.f32 %v4573, %v4816
      %v4849 = vadd.f32 %v4574, %v4817
      %v4850 = vadd.f32 %v4575, %v4818
      %v4851 = vadd.f32 %v4576, %v4819
      %v4852 = vadd.f32 %v4577, %v4820
      %v4853 = vadd.f32 %v4578, %v4821
      %v4854 = vadd.f32 %v4579, %v4822
      %v4855 = vadd.f32 %v4580, %v4823
      %v4856 = vadd.f32 %v4581, %v4824
      %v4857 = vadd.f32 %v4582, %v4825
      %v4858 = vadd.f32 %v4583, %v4826
      %v4859 = vadd.f32 %v4584, %v4827
      %v4860 = vadd.f32 %v4585, %v4828
      %v4861 = vadd.f32 %v4586, %v4829
      %v4862 = vadd.f32 %v4587, %v4830
      %v4863 = vadd.f32 %v4588, %v4831
      %v4864 = vadd.f32 %v4589, %v4832
      %v4865 = vadd.f32 %v4590, %v4833
      %v4866 = vadd.f32 %v4591, %v4834
      %v4867 = vadd.f32 %v4592, %v4835
      %v4868 = vadd.f32 %v4593, %v4836
      %v4869 = vadd.f32 %v4594, %v4837
      %v4870 = vadd.f32 %v4595, %v4838
      %v4871 = vadd.f32 %v4596, %v4839
      %v4872 = vadd.f32 %v4597, %v4840
      %v4873 = vadd.f32 %v4598, %v4841
      %v4874 = vadd.f32 %v4599, %v4842
      %v4875 = vadd.f32 %v4600, %v4843
      %v4876 = vadd.f32 %v4601, %v4844
      %v4877 = vadd.f32 %v4602, %v4845
      %v4878 = vadd.f32 %v4603, %v4846
      %v4879 = vmax.f32 %v4847, 0.0
      %v4880 = vmax.f32 %v4848, 0.0
      %v4881 = vmax.f32 %v4849, 0.0
      %v4882 = vmax.f32 %v4850, 0.0
      %v4883 = vmax.f32 %v4851, 0.0
      %v4884 = vmax.f32 %v4852, 0.0
      %v4885 = vmax.f32 %v4853, 0.0
      %v4886 = vmax.f32 %v4854, 0.0
      %v4887 = vmax.f32 %v4855, 0.0
      %v4888 = vmax.f32 %v4856, 0.0
      %v4889 = vmax.f32 %v4857, 0.0
      %v4890 = vmax.f32 %v4858, 0.0
      %v4891 = vmax.f32 %v4859, 0.0
      %v4892 = vmax.f32 %v4860, 0.0
      %v4893 = vmax.f32 %v4861, 0.0
      %v4894 = vmax.f32 %v4862, 0.0
      %v4895 = vmax.f32 %v4863, 0.0
      %v4896 = vmax.f32 %v4864, 0.0
      %v4897 = vmax.f32 %v4865, 0.0
      %v4898 = vmax.f32 %v4866, 0.0
      %v4899 = vmax.f32 %v4867, 0.0
      %v4900 = vmax.f32 %v4868, 0.0
      %v4901 = vmax.f32 %v4869, 0.0
      %v4902 = vmax.f32 %v4870, 0.0
      %v4903 = vmax.f32 %v4871, 0.0
      %v4904 = vmax.f32 %v4872, 0.0
      %v4905 = vmax.f32 %v4873, 0.0
      %v4906 = vmax.f32 %v4874, 0.0
      %v4907 = vmax.f32 %v4875, 0.0
      %v4908 = vmax.f32 %v4876, 0.0
      %v4909 = vmax.f32 %v4877, 0.0
      %v4910 = vmax.f32 %v4878, 0.0
      %vm4911 = vcmask 130048
      %4912 = vst.msk [vmem:[%s440] sm:$0xff] %vm4911, %v4879
      %4913 = vst.msk [vmem:[%s440 + $0x8] sm:$0xff] %vm4911, %v4880
      %4914 = vst.msk [vmem:[%s440 + $0x10] sm:$0xff] %vm4911, %v4881
      %4915 = vst.msk [vmem:[%s440 + $0x18] sm:$0xff] %vm4911, %v4882
      %4916 = vst.msk [vmem:[%s440 + $0x20] sm:$0xff] %vm4911, %v4883
      %4917 = vst.msk [vmem:[%s440 + $0x28] sm:$0xff] %vm4911, %v4884
      %4918 = vst.msk [vmem:[%s440 + $0x30] sm:$0xff] %vm4911, %v4885
      %4919 = vst.msk [vmem:[%s440 + $0x38] sm:$0xff] %vm4911, %v4886
      %4920 = vst.msk [vmem:[%s440 + $0x40] sm:$0xff] %vm4911, %v4887
      %4921 = vst.msk [vmem:[%s440 + $0x48] sm:$0xff] %vm4911, %v4888
      %4922 = vst.msk [vmem:[%s440 + $0x50] sm:$0xff] %vm4911, %v4889
      %4923 = vst.msk [vmem:[%s440 + $0x58] sm:$0xff] %vm4911, %v4890
      %4924 = vst.msk [vmem:[%s440 + $0x60] sm:$0xff] %vm4911, %v4891
      %4925 = vst.msk [vmem:[%s440 + $0x68] sm:$0xff] %vm4911, %v4892
      %4926 = vst.msk [vmem:[%s440 + $0x70] sm:$0xff] %vm4911, %v4893
      %4927 = vst.msk [vmem:[%s440 + $0x78] sm:$0xff] %vm4911, %v4894
      %4928 = vst.msk [vmem:[%s440 + $0x80] sm:$0xff] %vm4911, %v4895
      %4929 = vst.msk [vmem:[%s440 + $0x88] sm:$0xff] %vm4911, %v4896
      %4930 = vst.msk [vmem:[%s440 + $0x90] sm:$0xff] %vm4911, %v4897
      %4931 = vst.msk [vmem:[%s440 + $0x98] sm:$0xff] %vm4911, %v4898
      %4932 = vst.msk [vmem:[%s440 + $0xa0] sm:$0xff] %vm4911, %v4899
      %4933 = vst.msk [vmem:[%s440 + $0xa8] sm:$0xff] %vm4911, %v4900
      %4934 = vst.msk [vmem:[%s440 + $0xb0] sm:$0xff] %vm4911, %v4901
      %4935 = vst.msk [vmem:[%s440 + $0xb8] sm:$0xff] %vm4911, %v4902
      %4936 = vst.msk [vmem:[%s440 + $0xc0] sm:$0xff] %vm4911, %v4903
      %4937 = vst.msk [vmem:[%s440 + $0xc8] sm:$0xff] %vm4911, %v4904
      %4938 = vst.msk [vmem:[%s440 + $0xd0] sm:$0xff] %vm4911, %v4905
      %4939 = vst.msk [vmem:[%s440 + $0xd8] sm:$0xff] %vm4911, %v4906
      %4940 = vst.msk [vmem:[%s440 + $0xe0] sm:$0xff] %vm4911, %v4907
      %4941 = vst.msk [vmem:[%s440 + $0xe8] sm:$0xff] %vm4911, %v4908
      %4942 = vst.msk [vmem:[%s440 + $0xf0] sm:$0xff] %vm4911, %v4909
      %4943 = vst.msk [vmem:[%s440 + $0xf8] sm:$0xff] %vm4911, %v4910
      %p4944 = scmp.lt.s32.totalorder %s24, 1
      %s4945 = scalar_select %p4944, %s24, 1
      %s4946 = smul.addr %s4945, 32
      %s4947 = smul.addr %s4946, 8
      %s4948 = scalar_lea.vmem %s13, %s4947
      // Predicated region
      $region73: #{bottleneck_forward.1} parent=71 // pred_check
        %p4949 = pneg %p320
      $region74: #{bottleneck_forward.1} parent=71 // pred_check_branch
        %4951 = sbr.rel (%p4949) target = $region76
      $region75: #{bottleneck_forward.1} parent=71 // pred_region
        _
      $region76: #{bottleneck_forward.1} parent=71 // pred_fallthru
        _
    $region72: #{bottleneck_forward.1} parent=5 // pred_fallthru
      _
    %p4952 = scmp.le.s32.totalorder 2, %s19
    // Predicated region
    $region77: #{bottleneck_forward.1} parent=5 // pred_check
      %p4953 = pneg %p4952
    $region78: #{bottleneck_forward.1} parent=5 // pred_check_branch
      %4955 = sbr.rel (%p4953) target = $region80
    $region79: #{bottleneck_forward.1} parent=5 // pred_region
      %s4956 = ssub.s32 %s19, 2
      // Predicated region
      $region81: #{bottleneck_forward.1} parent=79 // pred_check
        %p4957 = pneg %p326
      $region82: #{bottleneck_forward.1} parent=79 // pred_check_branch
        %4959 = sbr.rel (%p4957) target = $region84
      $region83: #{bottleneck_forward.1} parent=79 // pred_region
        %p4960 = scmp.lt.s32.totalorder %s25, 1
        %s4961 = scalar_select %p4960, %s25, 1
        %s4962 = smul.addr %s4961, 32
        %s4963 = smul.addr %s4962, 8
        %s4964 = scalar_lea.vmem %s13, %s4963
      $region84: #{bottleneck_forward.1} parent=79 // pred_fallthru
        _
    $region80: #{bottleneck_forward.1} parent=5 // pred_fallthru
      _
  $region6: #{bottleneck_forward.1} parent=0 // loop_footer
    %s23 = sadd.s32 1, %s19
  $region7: #{bottleneck_forward.1} parent=0 // loop_footer_branch
    %18 = sbr.rel target = $region3
  $region8: #{bottleneck_forward.1} parent=0 // loop_exit
    _

</llo_original>
